<compile_context>
chip_gen: v7x
topology: tpu7x:2x2x1
jax: 0.10.0
libtpu: 0.0.40
codegen_flags: <defaults>
</compile_context>

<pallas_src>
import functools
import math

import jax
import jax.numpy as jnp
from jax import lax
from jax.experimental import pallas as pl
from jax.experimental.pallas import tpu as pltpu

HIDDEN = 256
IN_DIM = 1024
N_LAYERS = 1
ATTN_HEADS = 1          # single head -> d_k == HIDDEN
NC_PAD = 128            # fc_action output padded to one full lane width
_SQRT_2_OVER_PI = math.sqrt(2.0 / math.pi)


# ----------------------------- kernel helpers ------------------------------

def _mm(x, w):
    """bf16 MXU matmul with f32 accumulation."""
    return jnp.dot(x.astype(jnp.bfloat16), w.astype(jnp.bfloat16),
                   preferred_element_type=jnp.float32)


def _layernorm(x, g, b):
    # unbiased std (ddof=1) + eps outside the sqrt — matches the repo's
    # custom LayerNorm used inside BERT7.
    d = x.shape[-1]
    mean = jnp.mean(x, axis=-1, keepdims=True)
    c = x - mean
    var = jnp.sum(c * c, axis=-1, keepdims=True) / (d - 1)
    std = jnp.sqrt(var)
    return g * c / (std + 1e-6) + b


def _gelu(x):
    return 0.5 * x * (1.0 + jnp.tanh(_SQRT_2_OVER_PI * (x + 0.044715 * x * x * x)))


# ------------------------------ fused kernel -------------------------------

def _fused_forward_kernel(
    x_ref, w_embed_ref, b_embed_ref, cls_ref, pos_ref,
    ln1_g_ref, ln1_b_ref, wqkv_ref, bqkv_ref, wo_ref, bo_ref,
    ln2_g_ref, ln2_b_ref, w1_ref, b1_ref, w2_ref, b2_ref,
    w_action_ref, b_action_ref, w_onehot_ref, b_onehot_ref,
    fc_ref, onehot_ref,
):
    x = x_ref[0]                                                 # (L, IN_DIM)
    emb = _mm(x, w_embed_ref[...]) + b_embed_ref[...]            # (L, H)
    # prepend learned CLS token, add positional embedding
    h = jnp.concatenate([cls_ref[...], emb], axis=0) + pos_ref[...]   # (S, H)
    # TODO(synk): training-mode Bernoulli attention mask / dropout omitted
    # (eval mode); maskSample is None at inference.

    H = h.shape[-1]
    inv_sqrt_dk = 1.0 / math.sqrt(H)                             # single head

    for l in range(N_LAYERS):
        # ----- attention sublayer (pre-norm residual) -----
        hn = _layernorm(h, ln1_g_ref[l], ln1_b_ref[l])
        qkv = _mm(hn, wqkv_ref[l]) + bqkv_ref[l]                 # (S, 3H)
        q = qkv[:, 0 * H:1 * H]
        k = qkv[:, 1 * H:2 * H]
        v = qkv[:, 2 * H:3 * H]
        # contract on the last dim of both operands -> no explicit k.T relayout
        scores = lax.dot_general(
            q.astype(jnp.bfloat16), k.astype(jnp.bfloat16),
            (((1,), (1,)), ((), ())),
            preferred_element_type=jnp.float32) * inv_sqrt_dk    # (S, S)
        scores = scores - jnp.max(scores, axis=-1, keepdims=True)
        p = jnp.exp(scores)
        p = p * pl.reciprocal(jnp.sum(p, axis=-1, keepdims=True), approx=True)
        a = _mm(p, v)                                            # (S, H)
        a = _mm(a, wo_ref[l]) + bo_ref[l]
        h = h + a
        # ----- feed-forward sublayer (pre-norm residual) -----
        hn = _layernorm(h, ln2_g_ref[l], ln2_b_ref[l])
        ff = _mm(hn, w1_ref[l]) + b1_ref[l]                      # (S, 4H)
        ff = _gelu(ff)
        ff = _mm(ff, w2_ref[l]) + b2_ref[l]                      # (S, H)
        h = h + ff

    cls_out = h[0:1, :]                                          # (1, H)
    seq_out = h[1:, :]                                           # (L, H)

    onehot_ref[0] = (_mm(seq_out, w_onehot_ref[...]) + b_onehot_ref[...]
                     ).astype(onehot_ref.dtype)
    # Dropout(p=0.2) on classificationOut is identity at inference.
    fc_ref[0] = (_mm(cls_out, w_action_ref[...]) + b_action_ref[...]
                 ).astype(fc_ref.dtype)


# ------------------------------- parameters --------------------------------

def init_params(key, num_classes, length):
    ks = iter(jax.random.split(key, 64))

    def lin(fan_in, fan_out):
        s = 1.0 / math.sqrt(fan_in)
        w = jax.random.uniform(next(ks), (fan_in, fan_out), jnp.float32, -s, s)
        b = jax.random.uniform(next(ks), (fan_out,), jnp.float32, -s, s)
        return w, b

    p = {}
    w, b = lin(IN_DIM, HIDDEN)                         # one_hot_to_word_embedding
    p["w_embed"] = w.astype(jnp.bfloat16)
    p["b_embed"] = b.reshape(1, HIDDEN)
    p["cls_token"] = 0.02 * jax.random.normal(next(ks), (1, HIDDEN), jnp.float32)
    p["pos_emb"] = 0.02 * jax.random.normal(
        next(ks), (length + 1, HIDDEN), jnp.float32)

    wqkv, bqkv, wo, bo = [], [], [], []
    w1, b1, w2, b2 = [], [], [], []
    ln1_g, ln1_b, ln2_g, ln2_b = [], [], [], []
    for _ in range(N_LAYERS):
        wq, bq = lin(HIDDEN, HIDDEN)
        wk, bk = lin(HIDDEN, HIDDEN)
        wv, bv = lin(HIDDEN, HIDDEN)
        wqkv.append(jnp.concatenate([wq, wk, wv], axis=1))
        bqkv.append(jnp.concatenate([bq, bk, bv], axis=0).reshape(1, 3 * HIDDEN))
        w_, b_ = lin(HIDDEN, HIDDEN)
        wo.append(w_); bo.append(b_.reshape(1, HIDDEN))
        w_, b_ = lin(HIDDEN, 4 * HIDDEN)
        w1.append(w_); b1.append(b_.reshape(1, 4 * HIDDEN))
        w_, b_ = lin(4 * HIDDEN, HIDDEN)
        w2.append(w_); b2.append(b_.reshape(1, HIDDEN))
        ln1_g.append(jnp.ones((1, HIDDEN), jnp.float32))
        ln1_b.append(jnp.zeros((1, HIDDEN), jnp.float32))
        ln2_g.append(jnp.ones((1, HIDDEN), jnp.float32))
        ln2_b.append(jnp.zeros((1, HIDDEN), jnp.float32))

    p["wqkv"] = jnp.stack(wqkv).astype(jnp.bfloat16)    # (N_LAYERS, H, 3H)
    p["bqkv"] = jnp.stack(bqkv)                         # (N_LAYERS, 1, 3H)
    p["wo"] = jnp.stack(wo).astype(jnp.bfloat16)
    p["bo"] = jnp.stack(bo)
    p["w1"] = jnp.stack(w1).astype(jnp.bfloat16)
    p["b1"] = jnp.stack(b1)
    p["w2"] = jnp.stack(w2).astype(jnp.bfloat16)
    p["b2"] = jnp.stack(b2)
    p["ln1_g"] = jnp.stack(ln1_g)
    p["ln1_b"] = jnp.stack(ln1_b)
    p["ln2_g"] = jnp.stack(ln2_g)
    p["ln2_b"] = jnp.stack(ln2_b)

    # fc_action: xavier_uniform weight, zero bias; output padded to NC_PAD lanes
    xs = math.sqrt(6.0 / (HIDDEN + num_classes))
    wa = jax.random.uniform(next(ks), (HIDDEN, num_classes), jnp.float32, -xs, xs)
    p["w_action"] = (jnp.zeros((HIDDEN, NC_PAD), jnp.float32)
                     .at[:, :num_classes].set(wa).astype(jnp.bfloat16))
    p["b_action"] = jnp.zeros((1, NC_PAD), jnp.float32)

    w, b = lin(HIDDEN, IN_DIM)                          # word_embedding_to_one_hot
    p["w_onehot"] = w.astype(jnp.bfloat16)
    p["b_onehot"] = b.reshape(1, IN_DIM)
    return p


# -------------------------------- forward ----------------------------------

def pose_raw2_bert7_forward(params, x, num_classes):
    """x: (B, length, 1024) -> (fc_out (B, C), one_hot_output (B, length, 1024))"""
    B, L, _ = x.shape
    S = L + 1

    def batch_map(b):
        return (b, 0, 0)

    def const2(b):
        return (0, 0)

    def const3(b):
        return (0, 0, 0)

    in_specs = [
        pl.BlockSpec((1, L, IN_DIM), batch_map),                  # x
        pl.BlockSpec((IN_DIM, HIDDEN), const2),                   # w_embed
        pl.BlockSpec((1, HIDDEN), const2),                        # b_embed
        pl.BlockSpec((1, HIDDEN), const2),                        # cls_token
        pl.BlockSpec((S, HIDDEN), const2),                        # pos_emb
        pl.BlockSpec((N_LAYERS, 1, HIDDEN), const3),              # ln1_g
        pl.BlockSpec((N_LAYERS, 1, HIDDEN), const3),              # ln1_b
        pl.BlockSpec((N_LAYERS, HIDDEN, 3 * HIDDEN), const3),     # wqkv
        pl.BlockSpec((N_LAYERS, 1, 3 * HIDDEN), const3),          # bqkv
        pl.BlockSpec((N_LAYERS, HIDDEN, HIDDEN), const3),         # wo
        pl.BlockSpec((N_LAYERS, 1, HIDDEN), const3),              # bo
        pl.BlockSpec((N_LAYERS, 1, HIDDEN), const3),              # ln2_g
        pl.BlockSpec((N_LAYERS, 1, HIDDEN), const3),              # ln2_b
        pl.BlockSpec((N_LAYERS, HIDDEN, 4 * HIDDEN), const3),     # w1
        pl.BlockSpec((N_LAYERS, 1, 4 * HIDDEN), const3),          # b1
        pl.BlockSpec((N_LAYERS, 4 * HIDDEN, HIDDEN), const3),     # w2
        pl.BlockSpec((N_LAYERS, 1, HIDDEN), const3),              # b2
        pl.BlockSpec((HIDDEN, NC_PAD), const2),                   # w_action (padded)
        pl.BlockSpec((1, NC_PAD), const2),                        # b_action (padded)
        pl.BlockSpec((HIDDEN, IN_DIM), const2),                   # w_onehot
        pl.BlockSpec((1, IN_DIM), const2),                        # b_onehot
    ]
    out_specs = (
        pl.BlockSpec((1, 1, NC_PAD), batch_map),                  # fc_out (padded)
        pl.BlockSpec((1, L, IN_DIM), batch_map),                  # one_hot_output
    )
    out_shape = (
        jax.ShapeDtypeStruct((B, 1, NC_PAD), jnp.float32),
        jax.ShapeDtypeStruct((B, L, IN_DIM), jnp.float32),
    )

    fc_pad, one_hot_output = pl.pallas_call(
        _fused_forward_kernel,
        grid=(B,),
        in_specs=in_specs,
        out_specs=out_specs,
        out_shape=out_shape,
        compiler_params=pltpu.CompilerParams(
            dimension_semantics=("parallel",)),
    )(
        x,
        params["w_embed"], params["b_embed"], params["cls_token"], params["pos_emb"],
        params["ln1_g"], params["ln1_b"], params["wqkv"], params["bqkv"],
        params["wo"], params["bo"], params["ln2_g"], params["ln2_b"],
        params["w1"], params["b1"], params["w2"], params["b2"],
        params["w_action"], params["b_action"], params["w_onehot"], params["b_onehot"],
    )
    fc_out = fc_pad[:, 0, :num_classes]
    return fc_out, one_hot_output


# ----------------------- pure-JAX reference (sanity) ------------------------

def reference_forward(params, x, num_classes):
    def mm(a, w):
        return jnp.dot(a.astype(jnp.bfloat16), w.astype(jnp.bfloat16),
                       preferred_element_type=jnp.float32)

    def layernorm(y, g, b):
        d = y.shape[-1]
        mean = jnp.mean(y, axis=-1, keepdims=True)
        c = y - mean
        var = jnp.sum(c * c, axis=-1, keepdims=True) / (d - 1)
        return g * c / (jnp.sqrt(var) + 1e-6) + b

    def gelu(y):
        return 0.5 * y * (1.0 + jnp.tanh(_SQRT_2_OVER_PI * (y + 0.044715 * y ** 3)))

    B = x.shape[0]
    emb = mm(x, params["w_embed"]) + params["b_embed"]
    cls = jnp.broadcast_to(params["cls_token"][None], (B, 1, HIDDEN))
    h = jnp.concatenate([cls, emb], axis=1) + params["pos_emb"][None]
    for l in range(N_LAYERS):
        hn = layernorm(h, params["ln1_g"][l], params["ln1_b"][l])
        qkv = mm(hn, params["wqkv"][l]) + params["bqkv"][l]
        q, k, v = jnp.split(qkv, 3, axis=-1)
        s = jnp.einsum("bqd,bkd->bqk", q.astype(jnp.bfloat16),
                       k.astype(jnp.bfloat16),
                       preferred_element_type=jnp.float32) / math.sqrt(HIDDEN)
        p = jax.nn.softmax(s, axis=-1)
        a = jnp.einsum("bqk,bkd->bqd", p.astype(jnp.bfloat16),
                       v.astype(jnp.bfloat16),
                       preferred_element_type=jnp.float32)
        a = mm(a, params["wo"][l]) + params["bo"][l]
        h = h + a
        hn = layernorm(h, params["ln2_g"][l], params["ln2_b"][l])
        ff = mm(hn, params["w1"][l]) + params["b1"][l]
        ff = gelu(ff)
        ff = mm(ff, params["w2"][l]) + params["b2"][l]
        h = h + ff
    cls_out = h[:, 0, :]
    seq_out = h[:, 1:, :]
    one_hot = mm(seq_out, params["w_onehot"]) + params["b_onehot"]
    fc = (mm(cls_out, params["w_action"]) + params["b_action"])[:, :num_classes]
    return fc, one_hot


# --------------------------------- main -------------------------------------

if __name__ == "__main__":
    num_classes = 16
    length = 8
    batch = 2

    key = jax.random.PRNGKey(0)
    k_param, k_x = jax.random.split(key)

    params = init_params(k_param, num_classes, length)
    x = jax.random.normal(k_x, (batch, length, IN_DIM), jnp.float32)

    fwd = jax.jit(functools.partial(pose_raw2_bert7_forward,
                                    num_classes=num_classes))
    fc_out, one_hot_output = fwd(params, x)
    jax.block_until_ready((fc_out, one_hot_output))

    assert fc_out.shape == (batch, num_classes)
    assert one_hot_output.shape == (batch, length, IN_DIM)
    assert bool(jnp.all(jnp.isfinite(fc_out)))
    assert bool(jnp.all(jnp.isfinite(one_hot_output)))

    # numerical sanity check against a pure-JAX reference with the same
    # bf16 weights / LN / GELU math (loose tolerance covers approx reciprocal)
    fc_ref, oh_ref = reference_forward(params, x, num_classes)
    assert bool(jnp.allclose(fc_out, fc_ref, atol=5e-2, rtol=5e-2))
    assert bool(jnp.allclose(one_hot_output, oh_ref, atol=5e-2, rtol=5e-2))

    print("KERNEL_OK")
</pallas_src>

<mosaic_0001>
module attributes {stable_mosaic.version = 11 : i64} {
  func.func @_fused_forward_kernel(%arg0: i32, %arg1: memref<1x8x1024xf32, #tpu.memory_space<vmem>>, %arg2: memref<1024x256xbf16, #tpu.memory_space<vmem>>, %arg3: memref<1x256xf32, #tpu.memory_space<vmem>>, %arg4: memref<1x256xf32, #tpu.memory_space<vmem>>, %arg5: memref<9x256xf32, #tpu.memory_space<vmem>>, %arg6: memref<1x1x256xf32, #tpu.memory_space<vmem>>, %arg7: memref<1x1x256xf32, #tpu.memory_space<vmem>>, %arg8: memref<1x256x768xbf16, #tpu.memory_space<vmem>>, %arg9: memref<1x1x768xf32, #tpu.memory_space<vmem>>, %arg10: memref<1x256x256xbf16, #tpu.memory_space<vmem>>, %arg11: memref<1x1x256xf32, #tpu.memory_space<vmem>>, %arg12: memref<1x1x256xf32, #tpu.memory_space<vmem>>, %arg13: memref<1x1x256xf32, #tpu.memory_space<vmem>>, %arg14: memref<1x256x1024xbf16, #tpu.memory_space<vmem>>, %arg15: memref<1x1x1024xf32, #tpu.memory_space<vmem>>, %arg16: memref<1x1024x256xbf16, #tpu.memory_space<vmem>>, %arg17: memref<1x1x256xf32, #tpu.memory_space<vmem>>, %arg18: memref<256x128xbf16, #tpu.memory_space<vmem>>, %arg19: memref<1x128xf32, #tpu.memory_space<vmem>>, %arg20: memref<256x1024xbf16, #tpu.memory_space<vmem>>, %arg21: memref<1x1024xf32, #tpu.memory_space<vmem>>, %arg22: memref<1x1x128xf32, #tpu.memory_space<vmem>>, %arg23: memref<1x8x1024xf32, #tpu.memory_space<vmem>>) attributes {dimension_semantics = [#tpu.dimension_semantics<parallel>], iteration_bounds = array<i64: 2>, scalar_prefetch = 0 : i64, scratch_operands = 0 : i64, tpu.core_type = #tpu.core_type<tc>, window_params = [{transform_indices = @transform_0, window_bounds = array<i64: 1, 8, 1024>}, {pipeline_mode = #tpu.pipeline_mode<synchronous>, transform_indices = @transform_1, window_bounds = array<i64: 1024, 256>}, {pipeline_mode = #tpu.pipeline_mode<synchronous>, transform_indices = @transform_2, window_bounds = array<i64: 1, 256>}, {pipeline_mode = #tpu.pipeline_mode<synchronous>, transform_indices = @transform_3, window_bounds = array<i64: 1, 256>}, {pipeline_mode = #tpu.pipeline_mode<synchronous>, transform_indices = @transform_4, window_bounds = array<i64: 9, 256>}, {pipeline_mode = #tpu.pipeline_mode<synchronous>, transform_indices = @transform_5, window_bounds = array<i64: 1, 1, 256>}, {pipeline_mode = #tpu.pipeline_mode<synchronous>, transform_indices = @transform_6, window_bounds = array<i64: 1, 1, 256>}, {pipeline_mode = #tpu.pipeline_mode<synchronous>, transform_indices = @transform_7, window_bounds = array<i64: 1, 256, 768>}, {pipeline_mode = #tpu.pipeline_mode<synchronous>, transform_indices = @transform_8, window_bounds = array<i64: 1, 1, 768>}, {pipeline_mode = #tpu.pipeline_mode<synchronous>, transform_indices = @transform_9, window_bounds = array<i64: 1, 256, 256>}, {pipeline_mode = #tpu.pipeline_mode<synchronous>, transform_indices = @transform_10, window_bounds = array<i64: 1, 1, 256>}, {pipeline_mode = #tpu.pipeline_mode<synchronous>, transform_indices = @transform_11, window_bounds = array<i64: 1, 1, 256>}, {pipeline_mode = #tpu.pipeline_mode<synchronous>, transform_indices = @transform_12, window_bounds = array<i64: 1, 1, 256>}, {pipeline_mode = #tpu.pipeline_mode<synchronous>, transform_indices = @transform_13, window_bounds = array<i64: 1, 256, 1024>}, {pipeline_mode = #tpu.pipeline_mode<synchronous>, transform_indices = @transform_14, window_bounds = array<i64: 1, 1, 1024>}, {pipeline_mode = #tpu.pipeline_mode<synchronous>, transform_indices = @transform_15, window_bounds = array<i64: 1, 1024, 256>}, {pipeline_mode = #tpu.pipeline_mode<synchronous>, transform_indices = @transform_16, window_bounds = array<i64: 1, 1, 256>}, {pipeline_mode = #tpu.pipeline_mode<synchronous>, transform_indices = @transform_17, window_bounds = array<i64: 256, 128>}, {pipeline_mode = #tpu.pipeline_mode<synchronous>, transform_indices = @transform_18, window_bounds = array<i64: 1, 128>}, {pipeline_mode = #tpu.pipeline_mode<synchronous>, transform_indices = @transform_19, window_bounds = array<i64: 256, 1024>}, {pipeline_mode = #tpu.pipeline_mode<synchronous>, transform_indices = @transform_20, window_bounds = array<i64: 1, 1024>}, {transform_indices = @transform_21, window_bounds = array<i64: 1, 1, 128>}, {transform_indices = @transform_22, window_bounds = array<i64: 1, 8, 1024>}]} {
    %c0 = arith.constant 0 : index
    %c0_0 = arith.constant 0 : index
    %c0_1 = arith.constant 0 : index
    %0 = vector.load %arg1[%c0, %c0_0, %c0_1] : memref<1x8x1024xf32, #tpu.memory_space<vmem>>, vector<1x8x1024xf32>
    %1 = vector.shape_cast %0 : vector<1x8x1024xf32> to vector<8x1024xf32>
    %c0_2 = arith.constant 0 : index
    %c0_3 = arith.constant 0 : index
    %2 = vector.load %arg2[%c0_2, %c0_3] : memref<1024x256xbf16, #tpu.memory_space<vmem>>, vector<1024x256xbf16>
    %3 = arith.truncf %1 : vector<8x1024xf32> to vector<8x1024xbf16>
    %cst = arith.constant dense<0.000000e+00> : vector<8x256xf32>
    %4 = tpu.matmul %3, %2, %cst {dimension_numbers = #tpu.dot_dimension_numbers<[1], [0], [0], [1], [0, 0, 1, 1], [], []>} : vector<8x1024xbf16>, vector<1024x256xbf16>, vector<8x256xf32> -> vector<8x256xf32>
    %c0_4 = arith.constant 0 : index
    %c0_5 = arith.constant 0 : index
    %5 = vector.load %arg3[%c0_4, %c0_5] : memref<1x256xf32, #tpu.memory_space<vmem>>, vector<1x256xf32>
    %6 = vector.broadcast %5 : vector<1x256xf32> to vector<8x256xf32>
    %7 = arith.addf %4, %6 : vector<8x256xf32>
    %c0_6 = arith.constant 0 : index
    %c0_7 = arith.constant 0 : index
    %8 = vector.load %arg4[%c0_6, %c0_7] : memref<1x256xf32, #tpu.memory_space<vmem>>, vector<1x256xf32>
    %9 = tpu.concatenate %8, %7 in 0 : vector<1x256xf32>, vector<8x256xf32> -> vector<9x256xf32>
    %c0_8 = arith.constant 0 : index
    %c0_9 = arith.constant 0 : index
    %10 = vector.load %arg5[%c0_8, %c0_9] : memref<9x256xf32, #tpu.memory_space<vmem>>, vector<9x256xf32>
    %11 = arith.addf %9, %10 : vector<9x256xf32>
    %c0_10 = arith.constant 0 : index
    %c0_11 = arith.constant 0 : index
    %c0_12 = arith.constant 0 : index
    %12 = vector.load %arg6[%c0_10, %c0_11, %c0_12] : memref<1x1x256xf32, #tpu.memory_space<vmem>>, vector<1x1x256xf32>
    %13 = vector.shape_cast %12 : vector<1x1x256xf32> to vector<1x256xf32>
    %c0_13 = arith.constant 0 : index
    %c0_14 = arith.constant 0 : index
    %c0_15 = arith.constant 0 : index
    %14 = vector.load %arg7[%c0_13, %c0_14, %c0_15] : memref<1x1x256xf32, #tpu.memory_space<vmem>>, vector<1x1x256xf32>
    %15 = vector.shape_cast %14 : vector<1x1x256xf32> to vector<1x256xf32>
    %cst_16 = arith.constant dense<0.000000e+00> : vector<9xf32>
    %16 = vector.multi_reduction <add>, %11, %cst_16 [1] : vector<9x256xf32> to vector<9xf32>
    %17 = vector.shape_cast %16 : vector<9xf32> to vector<9x1xf32>
    %cst_17 = arith.constant 2.560000e+02 : f32
    %18 = vector.broadcast %cst_17 : f32 to vector<9x1xf32>
    %19 = arith.divf %17, %18 : vector<9x1xf32>
    %20 = vector.broadcast %19 : vector<9x1xf32> to vector<9x256xf32>
    %21 = arith.subf %11, %20 : vector<9x256xf32>
    %22 = arith.mulf %21, %21 : vector<9x256xf32>
    %cst_18 = arith.constant dense<0.000000e+00> : vector<9xf32>
    %23 = vector.multi_reduction <add>, %22, %cst_18 [1] : vector<9x256xf32> to vector<9xf32>
    %24 = vector.shape_cast %23 : vector<9xf32> to vector<9x1xf32>
    %cst_19 = arith.constant 2.550000e+02 : f32
    %25 = vector.broadcast %cst_19 : f32 to vector<9x1xf32>
    %26 = arith.divf %24, %25 : vector<9x1xf32>
    %27 = math.sqrt %26 : vector<9x1xf32>
    %28 = vector.broadcast %13 : vector<1x256xf32> to vector<9x256xf32>
    %29 = arith.mulf %28, %21 : vector<9x256xf32>
    %cst_20 = arith.constant 9.99999997E-7 : f32
    %30 = vector.broadcast %cst_20 : f32 to vector<9x1xf32>
    %31 = arith.addf %27, %30 : vector<9x1xf32>
    %32 = vector.broadcast %31 : vector<9x1xf32> to vector<9x256xf32>
    %33 = arith.divf %29, %32 : vector<9x256xf32>
    %34 = vector.broadcast %15 : vector<1x256xf32> to vector<9x256xf32>
    %35 = arith.addf %33, %34 : vector<9x256xf32>
    %c0_21 = arith.constant 0 : index
    %c0_22 = arith.constant 0 : index
    %c0_23 = arith.constant 0 : index
    %36 = vector.load %arg8[%c0_21, %c0_22, %c0_23] : memref<1x256x768xbf16, #tpu.memory_space<vmem>>, vector<1x256x768xbf16>
    %37 = vector.shape_cast %36 : vector<1x256x768xbf16> to vector<256x768xbf16>
    %38 = arith.truncf %35 : vector<9x256xf32> to vector<9x256xbf16>
    %cst_24 = arith.constant dense<0.000000e+00> : vector<9x768xf32>
    %39 = tpu.matmul %38, %37, %cst_24 {dimension_numbers = #tpu.dot_dimension_numbers<[1], [0], [0], [1], [0, 0, 1, 1], [], []>} : vector<9x256xbf16>, vector<256x768xbf16>, vector<9x768xf32> -> vector<9x768xf32>
    %c0_25 = arith.constant 0 : index
    %c0_26 = arith.constant 0 : index
    %c0_27 = arith.constant 0 : index
    %40 = vector.load %arg9[%c0_25, %c0_26, %c0_27] : memref<1x1x768xf32, #tpu.memory_space<vmem>>, vector<1x1x768xf32>
    %41 = vector.shape_cast %40 : vector<1x1x768xf32> to vector<1x768xf32>
    %42 = vector.broadcast %41 : vector<1x768xf32> to vector<9x768xf32>
    %43 = arith.addf %39, %42 : vector<9x768xf32>
    %44 = vector.extract_strided_slice %43 {offsets = [0, 0], sizes = [9, 256], strides = [1, 1]} : vector<9x768xf32> to vector<9x256xf32>
    %45 = vector.extract_strided_slice %43 {offsets = [0, 256], sizes = [9, 256], strides = [1, 1]} : vector<9x768xf32> to vector<9x256xf32>
    %46 = vector.extract_strided_slice %43 {offsets = [0, 512], sizes = [9, 256], strides = [1, 1]} : vector<9x768xf32> to vector<9x256xf32>
    %47 = arith.truncf %44 : vector<9x256xf32> to vector<9x256xbf16>
    %48 = arith.truncf %45 : vector<9x256xf32> to vector<9x256xbf16>
    %cst_28 = arith.constant dense<0.000000e+00> : vector<9x9xf32>
    %49 = tpu.matmul %47, %48, %cst_28 {dimension_numbers = #tpu.dot_dimension_numbers<[1], [1], [0], [0], [0, 0, 1, 0], [], []>} : vector<9x256xbf16>, vector<9x256xbf16>, vector<9x9xf32> -> vector<9x9xf32>
    %cst_29 = arith.constant 6.250000e-02 : f32
    %50 = vector.broadcast %cst_29 : f32 to vector<9x9xf32>
    %51 = arith.mulf %49, %50 : vector<9x9xf32>
    %cst_30 = arith.constant dense<0xFF800000> : vector<9xf32>
    %52 = vector.multi_reduction <maximumf>, %51, %cst_30 [1] : vector<9x9xf32> to vector<9xf32>
    %53 = vector.shape_cast %52 : vector<9xf32> to vector<9x1xf32>
    %54 = vector.broadcast %53 : vector<9x1xf32> to vector<9x9xf32>
    %55 = arith.subf %51, %54 : vector<9x9xf32>
    %56 = math.exp %55 : vector<9x9xf32>
    %cst_31 = arith.constant dense<0.000000e+00> : vector<9xf32>
    %57 = vector.multi_reduction <add>, %56, %cst_31 [1] : vector<9x9xf32> to vector<9xf32>
    %58 = vector.shape_cast %57 : vector<9xf32> to vector<9x1xf32>
    %59 = tpu.reciprocal %58 {approx = true} : vector<9x1xf32> -> vector<9x1xf32>
    %60 = vector.broadcast %59 : vector<9x1xf32> to vector<9x9xf32>
    %61 = arith.mulf %56, %60 : vector<9x9xf32>
    %62 = arith.truncf %61 : vector<9x9xf32> to vector<9x9xbf16>
    %63 = arith.truncf %46 : vector<9x256xf32> to vector<9x256xbf16>
    %cst_32 = arith.constant dense<0.000000e+00> : vector<9x256xf32>
    %64 = tpu.matmul %62, %63, %cst_32 {dimension_numbers = #tpu.dot_dimension_numbers<[1], [0], [0], [1], [0, 0, 1, 1], [], []>} : vector<9x9xbf16>, vector<9x256xbf16>, vector<9x256xf32> -> vector<9x256xf32>
    %c0_33 = arith.constant 0 : index
    %c0_34 = arith.constant 0 : index
    %c0_35 = arith.constant 0 : index
    %65 = vector.load %arg10[%c0_33, %c0_34, %c0_35] : memref<1x256x256xbf16, #tpu.memory_space<vmem>>, vector<1x256x256xbf16>
    %66 = vector.shape_cast %65 : vector<1x256x256xbf16> to vector<256x256xbf16>
    %67 = arith.truncf %64 : vector<9x256xf32> to vector<9x256xbf16>
    %cst_36 = arith.constant dense<0.000000e+00> : vector<9x256xf32>
    %68 = tpu.matmul %67, %66, %cst_36 {dimension_numbers = #tpu.dot_dimension_numbers<[1], [0], [0], [1], [0, 0, 1, 1], [], []>} : vector<9x256xbf16>, vector<256x256xbf16>, vector<9x256xf32> -> vector<9x256xf32>
    %c0_37 = arith.constant 0 : index
    %c0_38 = arith.constant 0 : index
    %c0_39 = arith.constant 0 : index
    %69 = vector.load %arg11[%c0_37, %c0_38, %c0_39] : memref<1x1x256xf32, #tpu.memory_space<vmem>>, vector<1x1x256xf32>
    %70 = vector.shape_cast %69 : vector<1x1x256xf32> to vector<1x256xf32>
    %71 = vector.broadcast %70 : vector<1x256xf32> to vector<9x256xf32>
    %72 = arith.addf %68, %71 : vector<9x256xf32>
    %73 = arith.addf %11, %72 : vector<9x256xf32>
    %c0_40 = arith.constant 0 : index
    %c0_41 = arith.constant 0 : index
    %c0_42 = arith.constant 0 : index
    %74 = vector.load %arg12[%c0_40, %c0_41, %c0_42] : memref<1x1x256xf32, #tpu.memory_space<vmem>>, vector<1x1x256xf32>
    %75 = vector.shape_cast %74 : vector<1x1x256xf32> to vector<1x256xf32>
    %c0_43 = arith.constant 0 : index
    %c0_44 = arith.constant 0 : index
    %c0_45 = arith.constant 0 : index
    %76 = vector.load %arg13[%c0_43, %c0_44, %c0_45] : memref<1x1x256xf32, #tpu.memory_space<vmem>>, vector<1x1x256xf32>
    %77 = vector.shape_cast %76 : vector<1x1x256xf32> to vector<1x256xf32>
    %cst_46 = arith.constant dense<0.000000e+00> : vector<9xf32>
    %78 = vector.multi_reduction <add>, %73, %cst_46 [1] : vector<9x256xf32> to vector<9xf32>
    %79 = vector.shape_cast %78 : vector<9xf32> to vector<9x1xf32>
    %cst_47 = arith.constant 2.560000e+02 : f32
    %80 = vector.broadcast %cst_47 : f32 to vector<9x1xf32>
    %81 = arith.divf %79, %80 : vector<9x1xf32>
    %82 = vector.broadcast %81 : vector<9x1xf32> to vector<9x256xf32>
    %83 = arith.subf %73, %82 : vector<9x256xf32>
    %84 = arith.mulf %83, %83 : vector<9x256xf32>
    %cst_48 = arith.constant dense<0.000000e+00> : vector<9xf32>
    %85 = vector.multi_reduction <add>, %84, %cst_48 [1] : vector<9x256xf32> to vector<9xf32>
    %86 = vector.shape_cast %85 : vector<9xf32> to vector<9x1xf32>
    %cst_49 = arith.constant 2.550000e+02 : f32
    %87 = vector.broadcast %cst_49 : f32 to vector<9x1xf32>
    %88 = arith.divf %86, %87 : vector<9x1xf32>
    %89 = math.sqrt %88 : vector<9x1xf32>
    %90 = vector.broadcast %75 : vector<1x256xf32> to vector<9x256xf32>
    %91 = arith.mulf %90, %83 : vector<9x256xf32>
    %cst_50 = arith.constant 9.99999997E-7 : f32
    %92 = vector.broadcast %cst_50 : f32 to vector<9x1xf32>
    %93 = arith.addf %89, %92 : vector<9x1xf32>
    %94 = vector.broadcast %93 : vector<9x1xf32> to vector<9x256xf32>
    %95 = arith.divf %91, %94 : vector<9x256xf32>
    %96 = vector.broadcast %77 : vector<1x256xf32> to vector<9x256xf32>
    %97 = arith.addf %95, %96 : vector<9x256xf32>
    %c0_51 = arith.constant 0 : index
    %c0_52 = arith.constant 0 : index
    %c0_53 = arith.constant 0 : index
    %98 = vector.load %arg14[%c0_51, %c0_52, %c0_53] : memref<1x256x1024xbf16, #tpu.memory_space<vmem>>, vector<1x256x1024xbf16>
    %99 = vector.shape_cast %98 : vector<1x256x1024xbf16> to vector<256x1024xbf16>
    %100 = arith.truncf %97 : vector<9x256xf32> to vector<9x256xbf16>
    %cst_54 = arith.constant dense<0.000000e+00> : vector<9x1024xf32>
    %101 = tpu.matmul %100, %99, %cst_54 {dimension_numbers = #tpu.dot_dimension_numbers<[1], [0], [0], [1], [0, 0, 1, 1], [], []>} : vector<9x256xbf16>, vector<256x1024xbf16>, vector<9x1024xf32> -> vector<9x1024xf32>
    %c0_55 = arith.constant 0 : index
    %c0_56 = arith.constant 0 : index
    %c0_57 = arith.constant 0 : index
    %102 = vector.load %arg15[%c0_55, %c0_56, %c0_57] : memref<1x1x1024xf32, #tpu.memory_space<vmem>>, vector<1x1x1024xf32>
    %103 = vector.shape_cast %102 : vector<1x1x1024xf32> to vector<1x1024xf32>
    %104 = vector.broadcast %103 : vector<1x1024xf32> to vector<9x1024xf32>
    %105 = arith.addf %101, %104 : vector<9x1024xf32>
    %cst_58 = arith.constant 5.000000e-01 : f32
    %106 = vector.broadcast %cst_58 : f32 to vector<9x1024xf32>
    %107 = arith.mulf %106, %105 : vector<9x1024xf32>
    %cst_59 = arith.constant 4.471500e-02 : f32
    %108 = vector.broadcast %cst_59 : f32 to vector<9x1024xf32>
    %109 = arith.mulf %108, %105 : vector<9x1024xf32>
    %110 = arith.mulf %109, %105 : vector<9x1024xf32>
    %111 = arith.mulf %110, %105 : vector<9x1024xf32>
    %112 = arith.addf %105, %111 : vector<9x1024xf32>
    %cst_60 = arith.constant 0.797884583 : f32
    %113 = vector.broadcast %cst_60 : f32 to vector<9x1024xf32>
    %114 = arith.mulf %113, %112 : vector<9x1024xf32>
    %115 = math.tanh %114 : vector<9x1024xf32>
    %cst_61 = arith.constant 1.000000e+00 : f32
    %116 = vector.broadcast %cst_61 : f32 to vector<9x1024xf32>
    %117 = arith.addf %116, %115 : vector<9x1024xf32>
    %118 = arith.mulf %107, %117 : vector<9x1024xf32>
    %c0_62 = arith.constant 0 : index
    %c0_63 = arith.constant 0 : index
    %c0_64 = arith.constant 0 : index
    %119 = vector.load %arg16[%c0_62, %c0_63, %c0_64] : memref<1x1024x256xbf16, #tpu.memory_space<vmem>>, vector<1x1024x256xbf16>
    %120 = vector.shape_cast %119 : vector<1x1024x256xbf16> to vector<1024x256xbf16>
    %121 = arith.truncf %118 : vector<9x1024xf32> to vector<9x1024xbf16>
    %cst_65 = arith.constant dense<0.000000e+00> : vector<9x256xf32>
    %122 = tpu.matmul %121, %120, %cst_65 {dimension_numbers = #tpu.dot_dimension_numbers<[1], [0], [0], [1], [0, 0, 1, 1], [], []>} : vector<9x1024xbf16>, vector<1024x256xbf16>, vector<9x256xf32> -> vector<9x256xf32>
    %c0_66 = arith.constant 0 : index
    %c0_67 = arith.constant 0 : index
    %c0_68 = arith.constant 0 : index
    %123 = vector.load %arg17[%c0_66, %c0_67, %c0_68] : memref<1x1x256xf32, #tpu.memory_space<vmem>>, vector<1x1x256xf32>
    %124 = vector.shape_cast %123 : vector<1x1x256xf32> to vector<1x256xf32>
    %125 = vector.broadcast %124 : vector<1x256xf32> to vector<9x256xf32>
    %126 = arith.addf %122, %125 : vector<9x256xf32>
    %127 = arith.addf %73, %126 : vector<9x256xf32>
    %128 = vector.extract_strided_slice %127 {offsets = [0, 0], sizes = [1, 256], strides = [1, 1]} : vector<9x256xf32> to vector<1x256xf32>
    %129 = vector.extract_strided_slice %127 {offsets = [1, 0], sizes = [8, 256], strides = [1, 1]} : vector<9x256xf32> to vector<8x256xf32>
    %c0_69 = arith.constant 0 : index
    %c0_70 = arith.constant 0 : index
    %130 = vector.load %arg20[%c0_69, %c0_70] : memref<256x1024xbf16, #tpu.memory_space<vmem>>, vector<256x1024xbf16>
    %131 = arith.truncf %129 : vector<8x256xf32> to vector<8x256xbf16>
    %cst_71 = arith.constant dense<0.000000e+00> : vector<8x1024xf32>
    %132 = tpu.matmul %131, %130, %cst_71 {dimension_numbers = #tpu.dot_dimension_numbers<[1], [0], [0], [1], [0, 0, 1, 1], [], []>} : vector<8x256xbf16>, vector<256x1024xbf16>, vector<8x1024xf32> -> vector<8x1024xf32>
    %c0_72 = arith.constant 0 : index
    %c0_73 = arith.constant 0 : index
    %133 = vector.load %arg21[%c0_72, %c0_73] : memref<1x1024xf32, #tpu.memory_space<vmem>>, vector<1x1024xf32>
    %134 = vector.broadcast %133 : vector<1x1024xf32> to vector<8x1024xf32>
    %135 = arith.addf %132, %134 : vector<8x1024xf32>
    %c0_74 = arith.constant 0 : index
    %c0_75 = arith.constant 0 : index
    %c0_76 = arith.constant 0 : index
    %136 = vector.load %arg23[%c0_74, %c0_75, %c0_76] : memref<1x8x1024xf32, #tpu.memory_space<vmem>>, vector<1x8x1024xf32>
    %137 = vector.shape_cast %136 : vector<1x8x1024xf32> to vector<8x1024xf32>
    %138 = vector.shape_cast %135 : vector<8x1024xf32> to vector<1x8x1024xf32>
    tpu.vector_store %arg23[%c0_74, %c0_75, %c0_76], %138 {strides = array<i32>} : memref<1x8x1024xf32, #tpu.memory_space<vmem>>, vector<1x8x1024xf32>,
    %c0_77 = arith.constant 0 : index
    %c0_78 = arith.constant 0 : index
    %139 = vector.load %arg18[%c0_77, %c0_78] : memref<256x128xbf16, #tpu.memory_space<vmem>>, vector<256x128xbf16>
    %140 = arith.truncf %128 : vector<1x256xf32> to vector<1x256xbf16>
    %cst_79 = arith.constant dense<0.000000e+00> : vector<1x128xf32>
    %141 = tpu.matmul %140, %139, %cst_79 {dimension_numbers = #tpu.dot_dimension_numbers<[1], [0], [0], [1], [0, 0, 1, 1], [], []>} : vector<1x256xbf16>, vector<256x128xbf16>, vector<1x128xf32> -> vector<1x128xf32>
    %c0_80 = arith.constant 0 : index
    %c0_81 = arith.constant 0 : index
    %142 = vector.load %arg19[%c0_80, %c0_81] : memref<1x128xf32, #tpu.memory_space<vmem>>, vector<1x128xf32>
    %143 = arith.addf %141, %142 : vector<1x128xf32>
    %c0_82 = arith.constant 0 : index
    %c0_83 = arith.constant 0 : index
    %c0_84 = arith.constant 0 : index
    %144 = vector.load %arg22[%c0_82, %c0_83, %c0_84] : memref<1x1x128xf32, #tpu.memory_space<vmem>>, vector<1x1x128xf32>
    %145 = vector.shape_cast %144 : vector<1x1x128xf32> to vector<1x128xf32>
    %146 = vector.shape_cast %143 : vector<1x128xf32> to vector<1x1x128xf32>
    tpu.vector_store %arg22[%c0_82, %c0_83, %c0_84], %146 {strides = array<i32>} : memref<1x1x128xf32, #tpu.memory_space<vmem>>, vector<1x1x128xf32>,
    return
  }
  func.func @transform_0(%arg0: i32) -> (i32, i32, i32) {
    %c0_i32 = arith.constant 0 : i32
    %c0_i32_0 = arith.constant 0 : i32
    %c0_i32_1 = arith.constant 0 : i32
    return %arg0, %c0_i32, %c0_i32_0 : i32, i32, i32
  }
  func.func @transform_1(%arg0: i32) -> (i32, i32) {
    %c0_i32 = arith.constant 0 : i32
    %c0_i32_0 = arith.constant 0 : i32
    %c0_i32_1 = arith.constant 0 : i32
    return %c0_i32, %c0_i32_0 : i32, i32
  }
  func.func @transform_2(%arg0: i32) -> (i32, i32) {
    %c0_i32 = arith.constant 0 : i32
    %c0_i32_0 = arith.constant 0 : i32
    %c0_i32_1 = arith.constant 0 : i32
    return %c0_i32, %c0_i32_0 : i32, i32
  }
  func.func @transform_3(%arg0: i32) -> (i32, i32) {
    %c0_i32 = arith.constant 0 : i32
    %c0_i32_0 = arith.constant 0 : i32
    %c0_i32_1 = arith.constant 0 : i32
    return %c0_i32, %c0_i32_0 : i32, i32
  }
  func.func @transform_4(%arg0: i32) -> (i32, i32) {
    %c0_i32 = arith.constant 0 : i32
    %c0_i32_0 = arith.constant 0 : i32
    %c0_i32_1 = arith.constant 0 : i32
    return %c0_i32, %c0_i32_0 : i32, i32
  }
  func.func @transform_5(%arg0: i32) -> (i32, i32, i32) {
    %c0_i32 = arith.constant 0 : i32
    %c0_i32_0 = arith.constant 0 : i32
    %c0_i32_1 = arith.constant 0 : i32
    %c0_i32_2 = arith.constant 0 : i32
    return %c0_i32, %c0_i32_0, %c0_i32_1 : i32, i32, i32
  }
  func.func @transform_6(%arg0: i32) -> (i32, i32, i32) {
    %c0_i32 = arith.constant 0 : i32
    %c0_i32_0 = arith.constant 0 : i32
    %c0_i32_1 = arith.constant 0 : i32
    %c0_i32_2 = arith.constant 0 : i32
    return %c0_i32, %c0_i32_0, %c0_i32_1 : i32, i32, i32
  }
  func.func @transform_7(%arg0: i32) -> (i32, i32, i32) {
    %c0_i32 = arith.constant 0 : i32
    %c0_i32_0 = arith.constant 0 : i32
    %c0_i32_1 = arith.constant 0 : i32
    %c0_i32_2 = arith.constant 0 : i32
    return %c0_i32, %c0_i32_0, %c0_i32_1 : i32, i32, i32
  }
  func.func @transform_8(%arg0: i32) -> (i32, i32, i32) {
    %c0_i32 = arith.constant 0 : i32
    %c0_i32_0 = arith.constant 0 : i32
    %c0_i32_1 = arith.constant 0 : i32
    %c0_i32_2 = arith.constant 0 : i32
    return %c0_i32, %c0_i32_0, %c0_i32_1 : i32, i32, i32
  }
  func.func @transform_9(%arg0: i32) -> (i32, i32, i32) {
    %c0_i32 = arith.constant 0 : i32
    %c0_i32_0 = arith.constant 0 : i32
    %c0_i32_1 = arith.constant 0 : i32
    %c0_i32_2 = arith.constant 0 : i32
    return %c0_i32, %c0_i32_0, %c0_i32_1 : i32, i32, i32
  }
  func.func @transform_10(%arg0: i32) -> (i32, i32, i32) {
    %c0_i32 = arith.constant 0 : i32
    %c0_i32_0 = arith.constant 0 : i32
    %c0_i32_1 = arith.constant 0 : i32
    %c0_i32_2 = arith.constant 0 : i32
    return %c0_i32, %c0_i32_0, %c0_i32_1 : i32, i32, i32
  }
  func.func @transform_11(%arg0: i32) -> (i32, i32, i32) {
    %c0_i32 = arith.constant 0 : i32
    %c0_i32_0 = arith.constant 0 : i32
    %c0_i32_1 = arith.constant 0 : i32
    %c0_i32_2 = arith.constant 0 : i32
    return %c0_i32, %c0_i32_0, %c0_i32_1 : i32, i32, i32
  }
  func.func @transform_12(%arg0: i32) -> (i32, i32, i32) {
    %c0_i32 = arith.constant 0 : i32
    %c0_i32_0 = arith.constant 0 : i32
    %c0_i32_1 = arith.constant 0 : i32
    %c0_i32_2 = arith.constant 0 : i32
    return %c0_i32, %c0_i32_0, %c0_i32_1 : i32, i32, i32
  }
  func.func @transform_13(%arg0: i32) -> (i32, i32, i32) {
    %c0_i32 = arith.constant 0 : i32
    %c0_i32_0 = arith.constant 0 : i32
    %c0_i32_1 = arith.constant 0 : i32
    %c0_i32_2 = arith.constant 0 : i32
    return %c0_i32, %c0_i32_0, %c0_i32_1 : i32, i32, i32
  }
  func.func @transform_14(%arg0: i32) -> (i32, i32, i32) {
    %c0_i32 = arith.constant 0 : i32
    %c0_i32_0 = arith.constant 0 : i32
    %c0_i32_1 = arith.constant 0 : i32
    %c0_i32_2 = arith.constant 0 : i32
    return %c0_i32, %c0_i32_0, %c0_i32_1 : i32, i32, i32
  }
  func.func @transform_15(%arg0: i32) -> (i32, i32, i32) {
    %c0_i32 = arith.constant 0 : i32
    %c0_i32_0 = arith.constant 0 : i32
    %c0_i32_1 = arith.constant 0 : i32
    %c0_i32_2 = arith.constant 0 : i32
    return %c0_i32, %c0_i32_0, %c0_i32_1 : i32, i32, i32
  }
  func.func @transform_16(%arg0: i32) -> (i32, i32, i32) {
    %c0_i32 = arith.constant 0 : i32
    %c0_i32_0 = arith.constant 0 : i32
    %c0_i32_1 = arith.constant 0 : i32
    %c0_i32_2 = arith.constant 0 : i32
    return %c0_i32, %c0_i32_0, %c0_i32_1 : i32, i32, i32
  }
  func.func @transform_17(%arg0: i32) -> (i32, i32) {
    %c0_i32 = arith.constant 0 : i32
    %c0_i32_0 = arith.constant 0 : i32
    %c0_i32_1 = arith.constant 0 : i32
    return %c0_i32, %c0_i32_0 : i32, i32
  }
  func.func @transform_18(%arg0: i32) -> (i32, i32) {
    %c0_i32 = arith.constant 0 : i32
    %c0_i32_0 = arith.constant 0 : i32
    %c0_i32_1 = arith.constant 0 : i32
    return %c0_i32, %c0_i32_0 : i32, i32
  }
  func.func @transform_19(%arg0: i32) -> (i32, i32) {
    %c0_i32 = arith.constant 0 : i32
    %c0_i32_0 = arith.constant 0 : i32
    %c0_i32_1 = arith.constant 0 : i32
    return %c0_i32, %c0_i32_0 : i32, i32
  }
  func.func @transform_20(%arg0: i32) -> (i32, i32) {
    %c0_i32 = arith.constant 0 : i32
    %c0_i32_0 = arith.constant 0 : i32
    %c0_i32_1 = arith.constant 0 : i32
    return %c0_i32, %c0_i32_0 : i32, i32
  }
  func.func @transform_21(%arg0: i32) -> (i32, i32, i32) {
    %c0_i32 = arith.constant 0 : i32
    %c0_i32_0 = arith.constant 0 : i32
    %c0_i32_1 = arith.constant 0 : i32
    return %arg0, %c0_i32, %c0_i32_0 : i32, i32, i32
  }
  func.func @transform_22(%arg0: i32) -> (i32, i32, i32) {
    %c0_i32 = arith.constant 0 : i32
    %c0_i32_0 = arith.constant 0 : i32
    %c0_i32_1 = arith.constant 0 : i32
    return %arg0, %c0_i32, %c0_i32_0 : i32, i32, i32
  }
}

</mosaic_0001>

<llo_original>
// kernel: pose_raw2_bert7_forward.1
$region0: #{pose_raw2_bert7_forward.1}
  #allocation0 [shape = 'u32[]', space=smem, size = 0x4, offset = 0x4, fixed_abs, tag = 'smem constant byte address 0x4 - core index']
  #allocation1 [shape = 'u32[144,128]{1,0:T(1,128)}', space=vmem, size = 0x12000, scoped, tag = 'internal scratch']
  %s0 = inlined_call_operand.hbm [shape: f32[2,8,1024], index: 0, kind: input, shape index: {}]
  %s1 = inlined_call_operand.hbm [shape: bf16[1024,256], index: 1, kind: input, shape index: {}]
  %s2 = inlined_call_operand.vmem [shape: f32[1,256], index: 2, kind: input, shape index: {}]
  %s3 = inlined_call_operand.vmem [shape: f32[1,256], index: 3, kind: input, shape index: {}]
  %s4 = inlined_call_operand.vmem [shape: f32[9,256], index: 4, kind: input, shape index: {}]
  %s5 = inlined_call_operand.hbm [shape: f32[1,1,256], index: 5, kind: input, shape index: {}]
  %s6 = inlined_call_operand.hbm [shape: f32[1,1,256], index: 6, kind: input, shape index: {}]
  %s7 = inlined_call_operand.hbm [shape: bf16[1,256,768], index: 7, kind: input, shape index: {}]
  %s8 = inlined_call_operand.hbm [shape: f32[1,1,768], index: 8, kind: input, shape index: {}]
  %s9 = inlined_call_operand.hbm [shape: bf16[1,256,256], index: 9, kind: input, shape index: {}]
  %s10 = inlined_call_operand.hbm [shape: f32[1,1,256], index: 10, kind: input, shape index: {}]
  %s11 = inlined_call_operand.hbm [shape: f32[1,1,256], index: 11, kind: input, shape index: {}]
  %s12 = inlined_call_operand.hbm [shape: f32[1,1,256], index: 12, kind: input, shape index: {}]
  %s13 = inlined_call_operand.hbm [shape: bf16[1,256,1024], index: 13, kind: input, shape index: {}]
  %s14 = inlined_call_operand.hbm [shape: f32[1,1,1024], index: 14, kind: input, shape index: {}]
  %s15 = inlined_call_operand.hbm [shape: bf16[1,1024,256], index: 15, kind: input, shape index: {}]
  %s16 = inlined_call_operand.hbm [shape: f32[1,1,256], index: 16, kind: input, shape index: {}]
  %s17 = inlined_call_operand.hbm [shape: bf16[256,128], index: 17, kind: input, shape index: {}]
  %s18 = inlined_call_operand.vmem [shape: f32[1,128], index: 18, kind: input, shape index: {}]
  %s19 = inlined_call_operand.hbm [shape: bf16[256,1024], index: 19, kind: input, shape index: {}]
  %s20 = inlined_call_operand.vmem [shape: f32[1,1024], index: 20, kind: input, shape index: {}]
  %s21 = inlined_call_operand.hbm [shape: f32[2,1,128], index: 21, kind: output, shape index: {0}]
  %s22 = inlined_call_operand.hbm [shape: f32[2,8,1024], index: 22, kind: output, shape index: {1}]
  %23 = xla_tuple %s21, %s22
  %s24 = sld [smem:[#allocation0]]
  $region189: #{pose_raw2_bert7_forward.1} parent=0
    _
  %s26 = ssub.s32 1, %s24
  %s27 = scalar_select 0, %s26, %s24
  $region1: #{pose_raw2_bert7_forward.1} parent=0
    #allocation2 [shape = 'u8[65536]{0}', space=vmem, size = 0x10000, scoped, tag = 'input window, operand 0']
    #allocation3 [shape = 's32[2]{0}', space=sflag, size = 0x8, scoped, tag = 'scoped memory for pose_raw2_bert7_forward.1']
    #allocation4 [shape = 's32[2]{0}', space=sflag, size = 0x8, scoped, tag = 'scoped memory for pose_raw2_bert7_forward.1']
    #allocation5 [shape = 'u8[524288]{0}', space=vmem, size = 0x80000, scoped, tag = 'input window, operand 1, single buffered']
    #allocation6 [shape = 's32[1]{0}', space=sflag, size = 0x4, scoped, tag = 'scoped memory for pose_raw2_bert7_forward.1']
    #allocation7 [shape = 'u8[1024]{0}', space=vmem, size = 0x400, scoped, tag = 'input window, operand 5, single buffered']
    #allocation8 [shape = 'u8[1024]{0}', space=vmem, size = 0x400, scoped, tag = 'input window, operand 6, single buffered']
    #allocation9 [shape = 's32[1]{0}', space=sflag, size = 0x4, scoped, tag = 'scoped memory for pose_raw2_bert7_forward.1']
    #allocation10 [shape = 'u8[393216]{0}', space=vmem, size = 0x60000, scoped, tag = 'input window, operand 7, single buffered']
    #allocation11 [shape = 'u8[3072]{0}', space=vmem, size = 0xc00, scoped, tag = 'input window, operand 8, single buffered']
    #allocation12 [shape = 's32[1]{0}', space=sflag, size = 0x4, scoped, tag = 'scoped memory for pose_raw2_bert7_forward.1']
    #allocation13 [shape = 'u8[131072]{0}', space=vmem, size = 0x20000, scoped, tag = 'input window, operand 9, single buffered']
    #allocation14 [shape = 'u8[1024]{0}', space=vmem, size = 0x400, scoped, tag = 'input window, operand 10, single buffered']
    #allocation15 [shape = 's32[1]{0}', space=sflag, size = 0x4, scoped, tag = 'scoped memory for pose_raw2_bert7_forward.1']
    #allocation16 [shape = 'u8[1024]{0}', space=vmem, size = 0x400, scoped, tag = 'input window, operand 11, single buffered']
    #allocation17 [shape = 'u8[1024]{0}', space=vmem, size = 0x400, scoped, tag = 'input window, operand 12, single buffered']
    #allocation18 [shape = 's32[1]{0}', space=sflag, size = 0x4, scoped, tag = 'scoped memory for pose_raw2_bert7_forward.1']
    #allocation19 [shape = 'u8[524288]{0}', space=vmem, size = 0x80000, scoped, tag = 'input window, operand 13, single buffered']
    #allocation20 [shape = 'u8[4096]{0}', space=vmem, size = 0x1000, scoped, tag = 'input window, operand 14, single buffered']
    #allocation21 [shape = 's32[1]{0}', space=sflag, size = 0x4, scoped, tag = 'scoped memory for pose_raw2_bert7_forward.1']
    #allocation22 [shape = 'u8[524288]{0}', space=vmem, size = 0x80000, scoped, tag = 'input window, operand 15, single buffered']
    #allocation23 [shape = 'u8[1024]{0}', space=vmem, size = 0x400, scoped, tag = 'input window, operand 16, single buffered']
    #allocation24 [shape = 's32[1]{0}', space=sflag, size = 0x4, scoped, tag = 'scoped memory for pose_raw2_bert7_forward.1']
    #allocation25 [shape = 'u8[65536]{0}', space=vmem, size = 0x10000, scoped, tag = 'input window, operand 17, single buffered']
    #allocation26 [shape = 'u8[524288]{0}', space=vmem, size = 0x80000, scoped, tag = 'input window, operand 19, single buffered']
    #allocation27 [shape = 's32[1]{0}', space=sflag, size = 0x4, scoped, tag = 'scoped memory for pose_raw2_bert7_forward.1']
    #allocation28 [shape = 'u8[1024]{0}', space=vmem, size = 0x400, scoped, tag = 'output window, operand 0']
    #allocation29 [shape = 'u8[65536]{0}', space=vmem, size = 0x10000, scoped, tag = 'output window, operand 1']
    #allocation30 [shape = 's32[2]{0}', space=sflag, size = 0x8, scoped, tag = 'scoped memory for pose_raw2_bert7_forward.1']
    %28 = vsyncpa [#allocation3], 0
    %s29 = scalar_lea.sflag [#allocation3], 1
    %30 = vsyncpa %s29, 0
    %31 = vsyncpa [#allocation6], 0
    %32 = vsyncpa [#allocation9], 0
    %33 = vsyncpa [#allocation12], 0
    %34 = vsyncpa [#allocation15], 0
    %35 = vsyncpa [#allocation18], 0
    %36 = vsyncpa [#allocation21], 0
    %37 = vsyncpa [#allocation24], 0
    %38 = vsyncpa [#allocation27], 0
    %39 = vsyncpa [#allocation4], 0
    %s40 = scalar_lea.sflag [#allocation4], 1
    %41 = vsyncpa %s40, 0
    %42 = vsyncpa [#allocation30], 0
    %s43 = scalar_lea.sflag [#allocation30], 1
    %44 = vsyncpa %s43, 0
    loop: start=0, step=1, limit=4
    $region2: #{pose_raw2_bert7_forward.1} parent=1 // loop_pre_header
      _
    $region3: #{pose_raw2_bert7_forward.1} parent=1 // loop_header
      %s46 = sphi 0, %s50
      %p47 = scmp.ge.s32.totalorder %s46, 4
      %s56 = sphi 0, %s58
      %s59 = sphi 0, %s56
      %s60 = sphi 0, %s59
      %s76 = sphi 0, %s60
      %s80 = sphi 0, %s80
      %s82 = sphi 0, %s80
      %s83 = sphi 0, %s82
      %s97 = sphi 0, %s83
      %s101 = sphi 0, %s101
      %s103 = sphi 0, %s101
      %s104 = sphi 0, %s103
      %s118 = sphi 0, %s104
      %s122 = sphi 0, %s122
      %s124 = sphi 0, %s122
      %s125 = sphi 0, %s124
      %s139 = sphi 0, %s125
      %s143 = sphi 0, %s143
      %s145 = sphi 0, %s143
      %s146 = sphi 0, %s145
      %s160 = sphi 0, %s146
      %s164 = sphi 0, %s164
      %s166 = sphi 0, %s164
      %s167 = sphi 0, %s166
      %s181 = sphi 0, %s167
      %s185 = sphi 0, %s185
      %s187 = sphi 0, %s185
      %s188 = sphi 0, %s187
      %s202 = sphi 0, %s188
      %s206 = sphi 0, %s206
      %s208 = sphi 0, %s206
      %s209 = sphi 0, %s208
      %s223 = sphi 0, %s209
      %s227 = sphi 0, %s227
      %s229 = sphi 0, %s227
      %s230 = sphi 0, %s229
      %s244 = sphi 0, %s230
      %s248 = sphi 0, %s248
      %s250 = sphi 0, %s248
      %s251 = sphi 0, %s250
      %s265 = sphi 0, %s251
      %s269 = sphi 0, %s269
      %s271 = sphi 0, %s269
      %s272 = sphi 0, %s271
      %s286 = sphi 0, %s272
      %s290 = sphi 0, %s290
      %s292 = sphi 0, %s290
      %s293 = sphi 0, %s292
      %s307 = sphi 0, %s293
      %s311 = sphi 0, %s311
      %s313 = sphi 0, %s311
      %s314 = sphi 0, %s313
      %s328 = sphi 0, %s314
      %s332 = sphi 0, %s332
      %s334 = sphi 0, %s332
      %s335 = sphi 0, %s334
      %s349 = sphi 0, %s335
      %s353 = sphi 0, %s353
      %s355 = sphi 0, %s353
      %s356 = sphi 0, %s355
      %s370 = sphi 0, %s356
      %s374 = sphi 0, %s374
      %s376 = sphi 0, %s374
      %s377 = sphi 0, %s376
      %s391 = sphi 0, %s377
      %s395 = sphi 0, %s395
      %s397 = sphi 0, %s395
      %s398 = sphi 0, %s397
      %s412 = sphi 0, %s398
      %s416 = sphi 0, %s416
      %s418 = sphi 0, %s416
      %s419 = sphi 0, %s418
      %s433 = sphi 0, %s419
      %s437 = sphi 0, %s437
      %s439 = sphi 0, %s437
      %s440 = sphi 0, %s439
      %s454 = sphi 0, %s440
      %s458 = sphi 0, %s458
      %s460 = sphi 0, %s458
      %s461 = sphi 0, %s460
      %s475 = sphi 0, %s461
      %s479 = sphi 0, %s479
      %s481 = sphi 0, %s479
      %s482 = sphi 0, %s481
      %s496 = sphi 0, %s482
      %s502 = sphi 0, %s504
      %s505 = sphi 0, %s502
      %s506 = sphi 0, %s505
      %s522 = sphi 0, %s506
      %s528 = sphi 0, %s530
      %s531 = sphi 0, %s528
      %s532 = sphi 0, %s531
      %s548 = sphi 0, %s532
    $region4: #{pose_raw2_bert7_forward.1} parent=1 // loop_header_branch
      %49 = sbr.rel (%p47) target = $region8
    $region5: #{pose_raw2_bert7_forward.1} parent=1 // loop_body
      %s51 = ssub.s32 %s46, 1
      %s52 = ssub.s32 %s46, 2
      %s53 = sadd.s32 %s46, 1
      %s54 = ssub.s32 %s46, %s53
      %p55 = scmp.eq.s32.totalorder %s54, 0
      %s57 = sadd.s32 %s56, 1
      %s58 = scalar_select %p55, %s56, %s57
      %p61 = pneg %p55
      %p62 = scmp.eq.s32.totalorder %s46, 1
      %p63 = por %p61, %p62
      %p64 = scmp.ne.s32.totalorder %s56, %s59
      %p65 = scmp.eq.s32.totalorder %s46, 0
      %p66 = por %p64, %p65
      %p67 = scmp.ne.s32.totalorder %s56, %s59
      %p68 = scmp.eq.s32.totalorder %s51, 1
      %p69 = por %p67, %p68
      %p70 = scmp.ne.s32.totalorder %s59, %s60
      %p71 = scmp.eq.s32.totalorder %s51, 0
      %p72 = por %p70, %p71
      %p73 = scmp.ne.s32.totalorder %s59, %s60
      %p74 = scmp.eq.s32.totalorder %s52, 1
      %p75 = por %p73, %p74
      %p77 = scmp.ne.s32.totalorder %s60, %s76
      %p78 = scmp.eq.s32.totalorder %s52, 0
      %p79 = por %p77, %p78
      %s81 = sadd.s32 %s80, 1
      %p84 = scmp.eq.s32.totalorder %s46, 1
      %p85 = scmp.ne.s32.totalorder %s80, %s82
      %p86 = scmp.eq.s32.totalorder %s46, 0
      %p87 = por %p85, %p86
      %p88 = scmp.ne.s32.totalorder %s80, %s82
      %p89 = scmp.eq.s32.totalorder %s51, 1
      %p90 = por %p88, %p89
      %p91 = scmp.ne.s32.totalorder %s82, %s83
      %p92 = scmp.eq.s32.totalorder %s51, 0
      %p93 = por %p91, %p92
      %p94 = scmp.ne.s32.totalorder %s82, %s83
      %p95 = scmp.eq.s32.totalorder %s52, 1
      %p96 = por %p94, %p95
      %p98 = scmp.ne.s32.totalorder %s83, %s97
      %p99 = scmp.eq.s32.totalorder %s52, 0
      %p100 = por %p98, %p99
      %s102 = sadd.s32 %s101, 1
      %p105 = scmp.eq.s32.totalorder %s46, 1
      %p106 = scmp.ne.s32.totalorder %s101, %s103
      %p107 = scmp.eq.s32.totalorder %s46, 0
      %p108 = por %p106, %p107
      %p109 = scmp.ne.s32.totalorder %s101, %s103
      %p110 = scmp.eq.s32.totalorder %s51, 1
      %p111 = por %p109, %p110
      %p112 = scmp.ne.s32.totalorder %s103, %s104
      %p113 = scmp.eq.s32.totalorder %s51, 0
      %p114 = por %p112, %p113
      %p115 = scmp.ne.s32.totalorder %s103, %s104
      %p116 = scmp.eq.s32.totalorder %s52, 1
      %p117 = por %p115, %p116
      %p119 = scmp.ne.s32.totalorder %s104, %s118
      %p120 = scmp.eq.s32.totalorder %s52, 0
      %p121 = por %p119, %p120
      %s123 = sadd.s32 %s122, 1
      %p126 = scmp.eq.s32.totalorder %s46, 1
      %p127 = scmp.ne.s32.totalorder %s122, %s124
      %p128 = scmp.eq.s32.totalorder %s46, 0
      %p129 = por %p127, %p128
      %p130 = scmp.ne.s32.totalorder %s122, %s124
      %p131 = scmp.eq.s32.totalorder %s51, 1
      %p132 = por %p130, %p131
      %p133 = scmp.ne.s32.totalorder %s124, %s125
      %p134 = scmp.eq.s32.totalorder %s51, 0
      %p135 = por %p133, %p134
      %p136 = scmp.ne.s32.totalorder %s124, %s125
      %p137 = scmp.eq.s32.totalorder %s52, 1
      %p138 = por %p136, %p137
      %p140 = scmp.ne.s32.totalorder %s125, %s139
      %p141 = scmp.eq.s32.totalorder %s52, 0
      %p142 = por %p140, %p141
      %s144 = sadd.s32 %s143, 1
      %p147 = scmp.eq.s32.totalorder %s46, 1
      %p148 = scmp.ne.s32.totalorder %s143, %s145
      %p149 = scmp.eq.s32.totalorder %s46, 0
      %p150 = por %p148, %p149
      %p151 = scmp.ne.s32.totalorder %s143, %s145
      %p152 = scmp.eq.s32.totalorder %s51, 1
      %p153 = por %p151, %p152
      %p154 = scmp.ne.s32.totalorder %s145, %s146
      %p155 = scmp.eq.s32.totalorder %s51, 0
      %p156 = por %p154, %p155
      %p157 = scmp.ne.s32.totalorder %s145, %s146
      %p158 = scmp.eq.s32.totalorder %s52, 1
      %p159 = por %p157, %p158
      %p161 = scmp.ne.s32.totalorder %s146, %s160
      %p162 = scmp.eq.s32.totalorder %s52, 0
      %p163 = por %p161, %p162
      %s165 = sadd.s32 %s164, 1
      %p168 = scmp.eq.s32.totalorder %s46, 1
      %p169 = scmp.ne.s32.totalorder %s164, %s166
      %p170 = scmp.eq.s32.totalorder %s46, 0
      %p171 = por %p169, %p170
      %p172 = scmp.ne.s32.totalorder %s164, %s166
      %p173 = scmp.eq.s32.totalorder %s51, 1
      %p174 = por %p172, %p173
      %p175 = scmp.ne.s32.totalorder %s166, %s167
      %p176 = scmp.eq.s32.totalorder %s51, 0
      %p177 = por %p175, %p176
      %p178 = scmp.ne.s32.totalorder %s166, %s167
      %p179 = scmp.eq.s32.totalorder %s52, 1
      %p180 = por %p178, %p179
      %p182 = scmp.ne.s32.totalorder %s167, %s181
      %p183 = scmp.eq.s32.totalorder %s52, 0
      %p184 = por %p182, %p183
      %s186 = sadd.s32 %s185, 1
      %p189 = scmp.eq.s32.totalorder %s46, 1
      %p190 = scmp.ne.s32.totalorder %s185, %s187
      %p191 = scmp.eq.s32.totalorder %s46, 0
      %p192 = por %p190, %p191
      %p193 = scmp.ne.s32.totalorder %s185, %s187
      %p194 = scmp.eq.s32.totalorder %s51, 1
      %p195 = por %p193, %p194
      %p196 = scmp.ne.s32.totalorder %s187, %s188
      %p197 = scmp.eq.s32.totalorder %s51, 0
      %p198 = por %p196, %p197
      %p199 = scmp.ne.s32.totalorder %s187, %s188
      %p200 = scmp.eq.s32.totalorder %s52, 1
      %p201 = por %p199, %p200
      %p203 = scmp.ne.s32.totalorder %s188, %s202
      %p204 = scmp.eq.s32.totalorder %s52, 0
      %p205 = por %p203, %p204
      %s207 = sadd.s32 %s206, 1
      %p210 = scmp.eq.s32.totalorder %s46, 1
      %p211 = scmp.ne.s32.totalorder %s206, %s208
      %p212 = scmp.eq.s32.totalorder %s46, 0
      %p213 = por %p211, %p212
      %p214 = scmp.ne.s32.totalorder %s206, %s208
      %p215 = scmp.eq.s32.totalorder %s51, 1
      %p216 = por %p214, %p215
      %p217 = scmp.ne.s32.totalorder %s208, %s209
      %p218 = scmp.eq.s32.totalorder %s51, 0
      %p219 = por %p217, %p218
      %p220 = scmp.ne.s32.totalorder %s208, %s209
      %p221 = scmp.eq.s32.totalorder %s52, 1
      %p222 = por %p220, %p221
      %p224 = scmp.ne.s32.totalorder %s209, %s223
      %p225 = scmp.eq.s32.totalorder %s52, 0
      %p226 = por %p224, %p225
      %s228 = sadd.s32 %s227, 1
      %p231 = scmp.eq.s32.totalorder %s46, 1
      %p232 = scmp.ne.s32.totalorder %s227, %s229
      %p233 = scmp.eq.s32.totalorder %s46, 0
      %p234 = por %p232, %p233
      %p235 = scmp.ne.s32.totalorder %s227, %s229
      %p236 = scmp.eq.s32.totalorder %s51, 1
      %p237 = por %p235, %p236
      %p238 = scmp.ne.s32.totalorder %s229, %s230
      %p239 = scmp.eq.s32.totalorder %s51, 0
      %p240 = por %p238, %p239
      %p241 = scmp.ne.s32.totalorder %s229, %s230
      %p242 = scmp.eq.s32.totalorder %s52, 1
      %p243 = por %p241, %p242
      %p245 = scmp.ne.s32.totalorder %s230, %s244
      %p246 = scmp.eq.s32.totalorder %s52, 0
      %p247 = por %p245, %p246
      %s249 = sadd.s32 %s248, 1
      %p252 = scmp.eq.s32.totalorder %s46, 1
      %p253 = scmp.ne.s32.totalorder %s248, %s250
      %p254 = scmp.eq.s32.totalorder %s46, 0
      %p255 = por %p253, %p254
      %p256 = scmp.ne.s32.totalorder %s248, %s250
      %p257 = scmp.eq.s32.totalorder %s51, 1
      %p258 = por %p256, %p257
      %p259 = scmp.ne.s32.totalorder %s250, %s251
      %p260 = scmp.eq.s32.totalorder %s51, 0
      %p261 = por %p259, %p260
      %p262 = scmp.ne.s32.totalorder %s250, %s251
      %p263 = scmp.eq.s32.totalorder %s52, 1
      %p264 = por %p262, %p263
      %p266 = scmp.ne.s32.totalorder %s251, %s265
      %p267 = scmp.eq.s32.totalorder %s52, 0
      %p268 = por %p266, %p267
      %s270 = sadd.s32 %s269, 1
      %p273 = scmp.eq.s32.totalorder %s46, 1
      %p274 = scmp.ne.s32.totalorder %s269, %s271
      %p275 = scmp.eq.s32.totalorder %s46, 0
      %p276 = por %p274, %p275
      %p277 = scmp.ne.s32.totalorder %s269, %s271
      %p278 = scmp.eq.s32.totalorder %s51, 1
      %p279 = por %p277, %p278
      %p280 = scmp.ne.s32.totalorder %s271, %s272
      %p281 = scmp.eq.s32.totalorder %s51, 0
      %p282 = por %p280, %p281
      %p283 = scmp.ne.s32.totalorder %s271, %s272
      %p284 = scmp.eq.s32.totalorder %s52, 1
      %p285 = por %p283, %p284
      %p287 = scmp.ne.s32.totalorder %s272, %s286
      %p288 = scmp.eq.s32.totalorder %s52, 0
      %p289 = por %p287, %p288
      %s291 = sadd.s32 %s290, 1
      %p294 = scmp.eq.s32.totalorder %s46, 1
      %p295 = scmp.ne.s32.totalorder %s290, %s292
      %p296 = scmp.eq.s32.totalorder %s46, 0
      %p297 = por %p295, %p296
      %p298 = scmp.ne.s32.totalorder %s290, %s292
      %p299 = scmp.eq.s32.totalorder %s51, 1
      %p300 = por %p298, %p299
      %p301 = scmp.ne.s32.totalorder %s292, %s293
      %p302 = scmp.eq.s32.totalorder %s51, 0
      %p303 = por %p301, %p302
      %p304 = scmp.ne.s32.totalorder %s292, %s293
      %p305 = scmp.eq.s32.totalorder %s52, 1
      %p306 = por %p304, %p305
      %p308 = scmp.ne.s32.totalorder %s293, %s307
      %p309 = scmp.eq.s32.totalorder %s52, 0
      %p310 = por %p308, %p309
      %s312 = sadd.s32 %s311, 1
      %p315 = scmp.eq.s32.totalorder %s46, 1
      %p316 = scmp.ne.s32.totalorder %s311, %s313
      %p317 = scmp.eq.s32.totalorder %s46, 0
      %p318 = por %p316, %p317
      %p319 = scmp.ne.s32.totalorder %s311, %s313
      %p320 = scmp.eq.s32.totalorder %s51, 1
      %p321 = por %p319, %p320
      %p322 = scmp.ne.s32.totalorder %s313, %s314
      %p323 = scmp.eq.s32.totalorder %s51, 0
      %p324 = por %p322, %p323
      %p325 = scmp.ne.s32.totalorder %s313, %s314
      %p326 = scmp.eq.s32.totalorder %s52, 1
      %p327 = por %p325, %p326
      %p329 = scmp.ne.s32.totalorder %s314, %s328
      %p330 = scmp.eq.s32.totalorder %s52, 0
      %p331 = por %p329, %p330
      %s333 = sadd.s32 %s332, 1
      %p336 = scmp.eq.s32.totalorder %s46, 1
      %p337 = scmp.ne.s32.totalorder %s332, %s334
      %p338 = scmp.eq.s32.totalorder %s46, 0
      %p339 = por %p337, %p338
      %p340 = scmp.ne.s32.totalorder %s332, %s334
      %p341 = scmp.eq.s32.totalorder %s51, 1
      %p342 = por %p340, %p341
      %p343 = scmp.ne.s32.totalorder %s334, %s335
      %p344 = scmp.eq.s32.totalorder %s51, 0
      %p345 = por %p343, %p344
      %p346 = scmp.ne.s32.totalorder %s334, %s335
      %p347 = scmp.eq.s32.totalorder %s52, 1
      %p348 = por %p346, %p347
      %p350 = scmp.ne.s32.totalorder %s335, %s349
      %p351 = scmp.eq.s32.totalorder %s52, 0
      %p352 = por %p350, %p351
      %s354 = sadd.s32 %s353, 1
      %p357 = scmp.eq.s32.totalorder %s46, 1
      %p358 = scmp.ne.s32.totalorder %s353, %s355
      %p359 = scmp.eq.s32.totalorder %s46, 0
      %p360 = por %p358, %p359
      %p361 = scmp.ne.s32.totalorder %s353, %s355
      %p362 = scmp.eq.s32.totalorder %s51, 1
      %p363 = por %p361, %p362
      %p364 = scmp.ne.s32.totalorder %s355, %s356
      %p365 = scmp.eq.s32.totalorder %s51, 0
      %p366 = por %p364, %p365
      %p367 = scmp.ne.s32.totalorder %s355, %s356
      %p368 = scmp.eq.s32.totalorder %s52, 1
      %p369 = por %p367, %p368
      %p371 = scmp.ne.s32.totalorder %s356, %s370
      %p372 = scmp.eq.s32.totalorder %s52, 0
      %p373 = por %p371, %p372
      %s375 = sadd.s32 %s374, 1
      %p378 = scmp.eq.s32.totalorder %s46, 1
      %p379 = scmp.ne.s32.totalorder %s374, %s376
      %p380 = scmp.eq.s32.totalorder %s46, 0
      %p381 = por %p379, %p380
      %p382 = scmp.ne.s32.totalorder %s374, %s376
      %p383 = scmp.eq.s32.totalorder %s51, 1
      %p384 = por %p382, %p383
      %p385 = scmp.ne.s32.totalorder %s376, %s377
      %p386 = scmp.eq.s32.totalorder %s51, 0
      %p387 = por %p385, %p386
      %p388 = scmp.ne.s32.totalorder %s376, %s377
      %p389 = scmp.eq.s32.totalorder %s52, 1
      %p390 = por %p388, %p389
      %p392 = scmp.ne.s32.totalorder %s377, %s391
      %p393 = scmp.eq.s32.totalorder %s52, 0
      %p394 = por %p392, %p393
      %s396 = sadd.s32 %s395, 1
      %p399 = scmp.eq.s32.totalorder %s46, 1
      %p400 = scmp.ne.s32.totalorder %s395, %s397
      %p401 = scmp.eq.s32.totalorder %s46, 0
      %p402 = por %p400, %p401
      %p403 = scmp.ne.s32.totalorder %s395, %s397
      %p404 = scmp.eq.s32.totalorder %s51, 1
      %p405 = por %p403, %p404
      %p406 = scmp.ne.s32.totalorder %s397, %s398
      %p407 = scmp.eq.s32.totalorder %s51, 0
      %p408 = por %p406, %p407
      %p409 = scmp.ne.s32.totalorder %s397, %s398
      %p410 = scmp.eq.s32.totalorder %s52, 1
      %p411 = por %p409, %p410
      %p413 = scmp.ne.s32.totalorder %s398, %s412
      %p414 = scmp.eq.s32.totalorder %s52, 0
      %p415 = por %p413, %p414
      %s417 = sadd.s32 %s416, 1
      %p420 = scmp.eq.s32.totalorder %s46, 1
      %p421 = scmp.ne.s32.totalorder %s416, %s418
      %p422 = scmp.eq.s32.totalorder %s46, 0
      %p423 = por %p421, %p422
      %p424 = scmp.ne.s32.totalorder %s416, %s418
      %p425 = scmp.eq.s32.totalorder %s51, 1
      %p426 = por %p424, %p425
      %p427 = scmp.ne.s32.totalorder %s418, %s419
      %p428 = scmp.eq.s32.totalorder %s51, 0
      %p429 = por %p427, %p428
      %p430 = scmp.ne.s32.totalorder %s418, %s419
      %p431 = scmp.eq.s32.totalorder %s52, 1
      %p432 = por %p430, %p431
      %p434 = scmp.ne.s32.totalorder %s419, %s433
      %p435 = scmp.eq.s32.totalorder %s52, 0
      %p436 = por %p434, %p435
      %s438 = sadd.s32 %s437, 1
      %p441 = scmp.eq.s32.totalorder %s46, 1
      %p442 = scmp.ne.s32.totalorder %s437, %s439
      %p443 = scmp.eq.s32.totalorder %s46, 0
      %p444 = por %p442, %p443
      %p445 = scmp.ne.s32.totalorder %s437, %s439
      %p446 = scmp.eq.s32.totalorder %s51, 1
      %p447 = por %p445, %p446
      %p448 = scmp.ne.s32.totalorder %s439, %s440
      %p449 = scmp.eq.s32.totalorder %s51, 0
      %p450 = por %p448, %p449
      %p451 = scmp.ne.s32.totalorder %s439, %s440
      %p452 = scmp.eq.s32.totalorder %s52, 1
      %p453 = por %p451, %p452
      %p455 = scmp.ne.s32.totalorder %s440, %s454
      %p456 = scmp.eq.s32.totalorder %s52, 0
      %p457 = por %p455, %p456
      %s459 = sadd.s32 %s458, 1
      %p462 = scmp.eq.s32.totalorder %s46, 1
      %p463 = scmp.ne.s32.totalorder %s458, %s460
      %p464 = scmp.eq.s32.totalorder %s46, 0
      %p465 = por %p463, %p464
      %p466 = scmp.ne.s32.totalorder %s458, %s460
      %p467 = scmp.eq.s32.totalorder %s51, 1
      %p468 = por %p466, %p467
      %p469 = scmp.ne.s32.totalorder %s460, %s461
      %p470 = scmp.eq.s32.totalorder %s51, 0
      %p471 = por %p469, %p470
      %p472 = scmp.ne.s32.totalorder %s460, %s461
      %p473 = scmp.eq.s32.totalorder %s52, 1
      %p474 = por %p472, %p473
      %p476 = scmp.ne.s32.totalorder %s461, %s475
      %p477 = scmp.eq.s32.totalorder %s52, 0
      %p478 = por %p476, %p477
      %s480 = sadd.s32 %s479, 1
      %p483 = scmp.eq.s32.totalorder %s46, 1
      %p484 = scmp.ne.s32.totalorder %s479, %s481
      %p485 = scmp.eq.s32.totalorder %s46, 0
      %p486 = por %p484, %p485
      %p487 = scmp.ne.s32.totalorder %s479, %s481
      %p488 = scmp.eq.s32.totalorder %s51, 1
      %p489 = por %p487, %p488
      %p490 = scmp.ne.s32.totalorder %s481, %s482
      %p491 = scmp.eq.s32.totalorder %s51, 0
      %p492 = por %p490, %p491
      %p493 = scmp.ne.s32.totalorder %s481, %s482
      %p494 = scmp.eq.s32.totalorder %s52, 1
      %p495 = por %p493, %p494
      %p497 = scmp.ne.s32.totalorder %s482, %s496
      %p498 = scmp.eq.s32.totalorder %s52, 0
      %p499 = por %p497, %p498
      %s500 = ssub.s32 %s46, %s53
      %p501 = scmp.eq.s32.totalorder %s500, 0
      %s503 = sadd.s32 %s502, 1
      %s504 = scalar_select %p501, %s502, %s503
      %p507 = pneg %p501
      %p508 = scmp.eq.s32.totalorder %s46, 1
      %p509 = por %p507, %p508
      %p510 = scmp.ne.s32.totalorder %s502, %s505
      %p511 = scmp.eq.s32.totalorder %s46, 0
      %p512 = por %p510, %p511
      %p513 = scmp.ne.s32.totalorder %s502, %s505
      %p514 = scmp.eq.s32.totalorder %s51, 1
      %p515 = por %p513, %p514
      %p516 = scmp.ne.s32.totalorder %s505, %s506
      %p517 = scmp.eq.s32.totalorder %s51, 0
      %p518 = por %p516, %p517
      %p519 = scmp.ne.s32.totalorder %s505, %s506
      %p520 = scmp.eq.s32.totalorder %s52, 1
      %p521 = por %p519, %p520
      %p523 = scmp.ne.s32.totalorder %s506, %s522
      %p524 = scmp.eq.s32.totalorder %s52, 0
      %p525 = por %p523, %p524
      %s526 = ssub.s32 %s46, %s53
      %p527 = scmp.eq.s32.totalorder %s526, 0
      %s529 = sadd.s32 %s528, 1
      %s530 = scalar_select %p527, %s528, %s529
      %p533 = pneg %p527
      %p534 = scmp.eq.s32.totalorder %s46, 1
      %p535 = por %p533, %p534
      %p536 = scmp.ne.s32.totalorder %s528, %s531
      %p537 = scmp.eq.s32.totalorder %s46, 0
      %p538 = por %p536, %p537
      %p539 = scmp.ne.s32.totalorder %s528, %s531
      %p540 = scmp.eq.s32.totalorder %s51, 1
      %p541 = por %p539, %p540
      %p542 = scmp.ne.s32.totalorder %s531, %s532
      %p543 = scmp.eq.s32.totalorder %s51, 0
      %p544 = por %p542, %p543
      %p545 = scmp.ne.s32.totalorder %s531, %s532
      %p546 = scmp.eq.s32.totalorder %s52, 1
      %p547 = por %p545, %p546
      %p549 = scmp.ne.s32.totalorder %s532, %s548
      %p550 = scmp.eq.s32.totalorder %s52, 0
      %p551 = por %p549, %p550
      %p552 = scmp.le.s32.totalorder 1, %s46
      %p553 = scmp.lt.s32.totalorder %s46, 3
      %p554 = pnand %p552, %p553
      %p555 = pneg %p554
      // Predicated region
      $region9: #{pose_raw2_bert7_forward.1} parent=5 // pred_check
        _
      $region10: #{pose_raw2_bert7_forward.1} parent=5 // pred_check_branch
        %557 = sbr.rel (%p554) target = $region12
      $region11: #{pose_raw2_bert7_forward.1} parent=5 // pred_region
        %s558 = ssub.s32 %s46, 1
        // Predicated region
        $region13: #{pose_raw2_bert7_forward.1} parent=11 // pred_check
          %p559 = pneg %p93
        $region14: #{pose_raw2_bert7_forward.1} parent=11 // pred_check_branch
          %561 = sbr.rel (%p559) target = $region16
        $region15: #{pose_raw2_bert7_forward.1} parent=11 // pred_region
          %s563 = ssub.s32 16384, 16384
          %564 = vsyncadd [#allocation6], %s563
          %s565 = sshll.u32 [#allocation5], 4
          %s566 = int_to_ptr.vmem [resolvable:$true] %s565
          %571 = dma.hbm_to_vmem [thread:$0]  %s1, 16384, %s566, [#allocation6], 128, 128, 8
        $region16: #{pose_raw2_bert7_forward.1} parent=11 // pred_fallthru
          _
        // Predicated region
        $region17: #{pose_raw2_bert7_forward.1} parent=11 // pred_check
          %p572 = pneg %p114
        $region18: #{pose_raw2_bert7_forward.1} parent=11 // pred_check_branch
          %574 = sbr.rel (%p572) target = $region20
        $region19: #{pose_raw2_bert7_forward.1} parent=11 // pred_region
          _
        $region20: #{pose_raw2_bert7_forward.1} parent=11 // pred_fallthru
          _
        // Predicated region
        $region21: #{pose_raw2_bert7_forward.1} parent=11 // pred_check
          %p575 = pneg %p135
        $region22: #{pose_raw2_bert7_forward.1} parent=11 // pred_check_branch
          %577 = sbr.rel (%p575) target = $region24
        $region23: #{pose_raw2_bert7_forward.1} parent=11 // pred_region
          _
        $region24: #{pose_raw2_bert7_forward.1} parent=11 // pred_fallthru
          _
        // Predicated region
        $region25: #{pose_raw2_bert7_forward.1} parent=11 // pred_check
          %p578 = pneg %p156
        $region26: #{pose_raw2_bert7_forward.1} parent=11 // pred_check_branch
          %580 = sbr.rel (%p578) target = $region28
        $region27: #{pose_raw2_bert7_forward.1} parent=11 // pred_region
          _
        $region28: #{pose_raw2_bert7_forward.1} parent=11 // pred_fallthru
          _
        // Predicated region
        $region29: #{pose_raw2_bert7_forward.1} parent=11 // pred_check
          %p581 = pneg %p177
        $region30: #{pose_raw2_bert7_forward.1} parent=11 // pred_check_branch
          %583 = sbr.rel (%p581) target = $region32
        $region31: #{pose_raw2_bert7_forward.1} parent=11 // pred_region
          %s585 = ssub.s32 32, 32
          %586 = vsyncadd [#allocation6], %s585
          %s588 = sshll.u32 [#allocation7], 4
          %s589 = int_to_ptr.vmem [resolvable:$true] %s588
          %591 = dma.hbm_to_vmem [thread:$0]  %s5, 32, %s589, [#allocation6]
        $region32: #{pose_raw2_bert7_forward.1} parent=11 // pred_fallthru
          _
        // Predicated region
        $region33: #{pose_raw2_bert7_forward.1} parent=11 // pred_check
          %p592 = pneg %p198
        $region34: #{pose_raw2_bert7_forward.1} parent=11 // pred_check_branch
          %594 = sbr.rel (%p592) target = $region36
        $region35: #{pose_raw2_bert7_forward.1} parent=11 // pred_region
          %s596 = ssub.s32 32, 32
          %597 = vsyncadd [#allocation9], %s596
          %s599 = sshll.u32 [#allocation8], 4
          %s600 = int_to_ptr.vmem [resolvable:$true] %s599
          %602 = dma.hbm_to_vmem [thread:$0]  %s6, 32, %s600, [#allocation9]
        $region36: #{pose_raw2_bert7_forward.1} parent=11 // pred_fallthru
          _
        // Predicated region
        $region37: #{pose_raw2_bert7_forward.1} parent=11 // pred_check
          %p603 = pneg %p219
        $region38: #{pose_raw2_bert7_forward.1} parent=11 // pred_check_branch
          %605 = sbr.rel (%p603) target = $region40
        $region39: #{pose_raw2_bert7_forward.1} parent=11 // pred_region
          %s607 = ssub.s32 12288, 12288
          %608 = vsyncadd [#allocation9], %s607
          %s609 = sshll.u32 [#allocation10], 4
          %s610 = int_to_ptr.vmem [resolvable:$true] %s609
          %615 = dma.hbm_to_vmem [thread:$0]  %s7, 12288, %s610, [#allocation9], 384, 384, 24
        $region40: #{pose_raw2_bert7_forward.1} parent=11 // pred_fallthru
          _
        // Predicated region
        $region41: #{pose_raw2_bert7_forward.1} parent=11 // pred_check
          %p616 = pneg %p240
        $region42: #{pose_raw2_bert7_forward.1} parent=11 // pred_check_branch
          %618 = sbr.rel (%p616) target = $region44
        $region43: #{pose_raw2_bert7_forward.1} parent=11 // pred_region
          %s620 = ssub.s32 96, 96
          %621 = vsyncadd [#allocation12], %s620
          %s623 = sshll.u32 [#allocation11], 4
          %s624 = int_to_ptr.vmem [resolvable:$true] %s623
          %626 = dma.hbm_to_vmem [thread:$0]  %s8, 96, %s624, [#allocation12]
        $region44: #{pose_raw2_bert7_forward.1} parent=11 // pred_fallthru
          _
        // Predicated region
        $region45: #{pose_raw2_bert7_forward.1} parent=11 // pred_check
          %p627 = pneg %p261
        $region46: #{pose_raw2_bert7_forward.1} parent=11 // pred_check_branch
          %629 = sbr.rel (%p627) target = $region48
        $region47: #{pose_raw2_bert7_forward.1} parent=11 // pred_region
          %s631 = ssub.s32 4096, 4096
          %632 = vsyncadd [#allocation12], %s631
          %s633 = sshll.u32 [#allocation13], 4
          %s634 = int_to_ptr.vmem [resolvable:$true] %s633
          %639 = dma.hbm_to_vmem [thread:$0]  %s9, 4096, %s634, [#allocation12], 128, 128, 8
        $region48: #{pose_raw2_bert7_forward.1} parent=11 // pred_fallthru
          _
        // Predicated region
        $region49: #{pose_raw2_bert7_forward.1} parent=11 // pred_check
          %p640 = pneg %p282
        $region50: #{pose_raw2_bert7_forward.1} parent=11 // pred_check_branch
          %642 = sbr.rel (%p640) target = $region52
        $region51: #{pose_raw2_bert7_forward.1} parent=11 // pred_region
          %s644 = ssub.s32 32, 32
          %645 = vsyncadd [#allocation15], %s644
          %s647 = sshll.u32 [#allocation14], 4
          %s648 = int_to_ptr.vmem [resolvable:$true] %s647
          %650 = dma.hbm_to_vmem [thread:$0]  %s10, 32, %s648, [#allocation15]
        $region52: #{pose_raw2_bert7_forward.1} parent=11 // pred_fallthru
          _
        // Predicated region
        $region53: #{pose_raw2_bert7_forward.1} parent=11 // pred_check
          %p651 = pneg %p303
        $region54: #{pose_raw2_bert7_forward.1} parent=11 // pred_check_branch
          %653 = sbr.rel (%p651) target = $region56
        $region55: #{pose_raw2_bert7_forward.1} parent=11 // pred_region
          %s655 = ssub.s32 32, 32
          %656 = vsyncadd [#allocation15], %s655
          %s658 = sshll.u32 [#allocation16], 4
          %s659 = int_to_ptr.vmem [resolvable:$true] %s658
          %661 = dma.hbm_to_vmem [thread:$0]  %s11, 32, %s659, [#allocation15]
        $region56: #{pose_raw2_bert7_forward.1} parent=11 // pred_fallthru
          _
        // Predicated region
        $region57: #{pose_raw2_bert7_forward.1} parent=11 // pred_check
          %p662 = pneg %p324
        $region58: #{pose_raw2_bert7_forward.1} parent=11 // pred_check_branch
          %664 = sbr.rel (%p662) target = $region60
        $region59: #{pose_raw2_bert7_forward.1} parent=11 // pred_region
          %s666 = ssub.s32 32, 32
          %667 = vsyncadd [#allocation18], %s666
          %s669 = sshll.u32 [#allocation17], 4
          %s670 = int_to_ptr.vmem [resolvable:$true] %s669
          %672 = dma.hbm_to_vmem [thread:$0]  %s12, 32, %s670, [#allocation18]
        $region60: #{pose_raw2_bert7_forward.1} parent=11 // pred_fallthru
          _
        // Predicated region
        $region61: #{pose_raw2_bert7_forward.1} parent=11 // pred_check
          %p673 = pneg %p345
        $region62: #{pose_raw2_bert7_forward.1} parent=11 // pred_check_branch
          %675 = sbr.rel (%p673) target = $region64
        $region63: #{pose_raw2_bert7_forward.1} parent=11 // pred_region
          %s677 = ssub.s32 16384, 16384
          %678 = vsyncadd [#allocation18], %s677
          %s679 = sshll.u32 [#allocation19], 4
          %s680 = int_to_ptr.vmem [resolvable:$true] %s679
          %685 = dma.hbm_to_vmem [thread:$0]  %s13, 16384, %s680, [#allocation18], 512, 512, 32
        $region64: #{pose_raw2_bert7_forward.1} parent=11 // pred_fallthru
          _
        // Predicated region
        $region65: #{pose_raw2_bert7_forward.1} parent=11 // pred_check
          %p686 = pneg %p366
        $region66: #{pose_raw2_bert7_forward.1} parent=11 // pred_check_branch
          %688 = sbr.rel (%p686) target = $region68
        $region67: #{pose_raw2_bert7_forward.1} parent=11 // pred_region
          %s690 = ssub.s32 128, 128
          %691 = vsyncadd [#allocation21], %s690
          %s693 = sshll.u32 [#allocation20], 4
          %s694 = int_to_ptr.vmem [resolvable:$true] %s693
          %696 = dma.hbm_to_vmem [thread:$0]  %s14, 128, %s694, [#allocation21]
        $region68: #{pose_raw2_bert7_forward.1} parent=11 // pred_fallthru
          _
        // Predicated region
        $region69: #{pose_raw2_bert7_forward.1} parent=11 // pred_check
          %p697 = pneg %p387
        $region70: #{pose_raw2_bert7_forward.1} parent=11 // pred_check_branch
          %699 = sbr.rel (%p697) target = $region72
        $region71: #{pose_raw2_bert7_forward.1} parent=11 // pred_region
          %s701 = ssub.s32 16384, 16384
          %702 = vsyncadd [#allocation21], %s701
          %s703 = sshll.u32 [#allocation22], 4
          %s704 = int_to_ptr.vmem [resolvable:$true] %s703
          %709 = dma.hbm_to_vmem [thread:$0]  %s15, 16384, %s704, [#allocation21], 128, 128, 8
        $region72: #{pose_raw2_bert7_forward.1} parent=11 // pred_fallthru
          _
        // Predicated region
        $region73: #{pose_raw2_bert7_forward.1} parent=11 // pred_check
          %p710 = pneg %p408
        $region74: #{pose_raw2_bert7_forward.1} parent=11 // pred_check_branch
          %712 = sbr.rel (%p710) target = $region76
        $region75: #{pose_raw2_bert7_forward.1} parent=11 // pred_region
          %s714 = ssub.s32 32, 32
          %715 = vsyncadd [#allocation24], %s714
          %s717 = sshll.u32 [#allocation23], 4
          %s718 = int_to_ptr.vmem [resolvable:$true] %s717
          %720 = dma.hbm_to_vmem [thread:$0]  %s16, 32, %s718, [#allocation24]
        $region76: #{pose_raw2_bert7_forward.1} parent=11 // pred_fallthru
          _
        // Predicated region
        $region77: #{pose_raw2_bert7_forward.1} parent=11 // pred_check
          %p721 = pneg %p429
        $region78: #{pose_raw2_bert7_forward.1} parent=11 // pred_check_branch
          %723 = sbr.rel (%p721) target = $region80
        $region79: #{pose_raw2_bert7_forward.1} parent=11 // pred_region
          %s725 = ssub.s32 2048, 2048
          %726 = vsyncadd [#allocation24], %s725
          %s727 = sshll.u32 [#allocation25], 4
          %s728 = int_to_ptr.vmem [resolvable:$true] %s727
          %733 = dma.hbm_to_vmem [thread:$0]  %s17, 2048, %s728, [#allocation24], 64, 64, 4
        $region80: #{pose_raw2_bert7_forward.1} parent=11 // pred_fallthru
          _
        // Predicated region
        $region81: #{pose_raw2_bert7_forward.1} parent=11 // pred_check
          %p734 = pneg %p450
        $region82: #{pose_raw2_bert7_forward.1} parent=11 // pred_check_branch
          %736 = sbr.rel (%p734) target = $region84
        $region83: #{pose_raw2_bert7_forward.1} parent=11 // pred_region
          _
        $region84: #{pose_raw2_bert7_forward.1} parent=11 // pred_fallthru
          _
        // Predicated region
        $region85: #{pose_raw2_bert7_forward.1} parent=11 // pred_check
          %p737 = pneg %p471
        $region86: #{pose_raw2_bert7_forward.1} parent=11 // pred_check_branch
          %739 = sbr.rel (%p737) target = $region88
        $region87: #{pose_raw2_bert7_forward.1} parent=11 // pred_region
          %s741 = ssub.s32 16384, 16384
          %742 = vsyncadd [#allocation27], %s741
          %s743 = sshll.u32 [#allocation26], 4
          %s744 = int_to_ptr.vmem [resolvable:$true] %s743
          %749 = dma.hbm_to_vmem [thread:$0]  %s19, 16384, %s744, [#allocation27], 512, 512, 32
        $region88: #{pose_raw2_bert7_forward.1} parent=11 // pred_fallthru
          _
        // Predicated region
        $region89: #{pose_raw2_bert7_forward.1} parent=11 // pred_check
          %p750 = pneg %p492
        $region90: #{pose_raw2_bert7_forward.1} parent=11 // pred_check_branch
          %752 = sbr.rel (%p750) target = $region92
        $region91: #{pose_raw2_bert7_forward.1} parent=11 // pred_region
          _
        $region92: #{pose_raw2_bert7_forward.1} parent=11 // pred_fallthru
          _
      $region12: #{pose_raw2_bert7_forward.1} parent=5 // pred_fallthru
        _
      %p753 = scmp.lt.s32.totalorder %s46, 2
      // Predicated region
      $region93: #{pose_raw2_bert7_forward.1} parent=5 // pred_check
        %p754 = pneg %p753
      $region94: #{pose_raw2_bert7_forward.1} parent=5 // pred_check_branch
        %756 = sbr.rel (%p754) target = $region96
      $region95: #{pose_raw2_bert7_forward.1} parent=5 // pred_region
        // Predicated region
        $region97: #{pose_raw2_bert7_forward.1} parent=95 // pred_check
          %p757 = pneg %p66
        $region98: #{pose_raw2_bert7_forward.1} parent=95 // pred_check_branch
          %759 = sbr.rel (%p757) target = $region100
        $region99: #{pose_raw2_bert7_forward.1} parent=95 // pred_region
          %s760 = sand.u32 %s56, 1
          %s761 = scalar_lea.sflag [#allocation3], %s760
          %s762 = sand.u32 %s56, 1
          %s763 = smul.addr %s762, 64
          %s764 = scalar_lea.vmem [#allocation2], %s763
          %s766 = ssub.s32 1024, 1024
          %767 = vsyncadd %s761, %s766
          %s768 = smul.addr %s46, 8
          %s769 = smul.addr %s768, 128
          %s770 = scalar_lea.hbm %s0, %s769
          %s772 = sshll.u32 %s764, 4
          %s773 = int_to_ptr.vmem [resolvable:$true] %s772
          %775 = dma.hbm_to_vmem [thread:$0]  %s770, 1024, %s773, %s761
        $region100: #{pose_raw2_bert7_forward.1} parent=95 // pred_fallthru
          _
      $region96: #{pose_raw2_bert7_forward.1} parent=5 // pred_fallthru
        _
      %p776 = scmp.le.s32.totalorder 1, %s46
      %p777 = scmp.lt.s32.totalorder %s46, 3
      %p778 = pnand %p776, %p777
      %p779 = pneg %p778
      // Predicated region
      $region101: #{pose_raw2_bert7_forward.1} parent=5 // pred_check
        _
      $region102: #{pose_raw2_bert7_forward.1} parent=5 // pred_check_branch
        %781 = sbr.rel (%p778) target = $region104
      $region103: #{pose_raw2_bert7_forward.1} parent=5 // pred_region
        %s782 = ssub.s32 %s46, 1
        %s783 = sand.u32 %s59, 1
        %s784 = scalar_lea.sflag [#allocation3], %s783
        %s785 = sand.u32 %s59, 1
        %s786 = smul.addr %s785, 64
        %s787 = scalar_lea.vmem [#allocation2], %s786
        // Predicated region
        $region105: #{pose_raw2_bert7_forward.1} parent=103 // pred_check
          %p788 = pneg %p72
        $region106: #{pose_raw2_bert7_forward.1} parent=103 // pred_check_branch
          %790 = sbr.rel (%p788) target = $region108
        $region107: #{pose_raw2_bert7_forward.1} parent=103 // pred_region
          %791 = dma.done %s784, 1024
        $region108: #{pose_raw2_bert7_forward.1} parent=103 // pred_fallthru
          _
        // Predicated region
        $region109: #{pose_raw2_bert7_forward.1} parent=103 // pred_check
          %p792 = pneg %p93
        $region110: #{pose_raw2_bert7_forward.1} parent=103 // pred_check_branch
          %794 = sbr.rel (%p792) target = $region112
        $region111: #{pose_raw2_bert7_forward.1} parent=103 // pred_region
          %795 = dma.done [#allocation6], 16384
        $region112: #{pose_raw2_bert7_forward.1} parent=103 // pred_fallthru
          _
        // Predicated region
        $region113: #{pose_raw2_bert7_forward.1} parent=103 // pred_check
          %p796 = pneg %p177
        $region114: #{pose_raw2_bert7_forward.1} parent=103 // pred_check_branch
          %798 = sbr.rel (%p796) target = $region116
        $region115: #{pose_raw2_bert7_forward.1} parent=103 // pred_region
          %799 = dma.done [#allocation6], 32
        $region116: #{pose_raw2_bert7_forward.1} parent=103 // pred_fallthru
          _
        // Predicated region
        $region117: #{pose_raw2_bert7_forward.1} parent=103 // pred_check
          %p800 = pneg %p198
        $region118: #{pose_raw2_bert7_forward.1} parent=103 // pred_check_branch
          %802 = sbr.rel (%p800) target = $region120
        $region119: #{pose_raw2_bert7_forward.1} parent=103 // pred_region
          %803 = dma.done [#allocation9], 32
        $region120: #{pose_raw2_bert7_forward.1} parent=103 // pred_fallthru
          _
        // Predicated region
        $region121: #{pose_raw2_bert7_forward.1} parent=103 // pred_check
          %p804 = pneg %p219
        $region122: #{pose_raw2_bert7_forward.1} parent=103 // pred_check_branch
          %806 = sbr.rel (%p804) target = $region124
        $region123: #{pose_raw2_bert7_forward.1} parent=103 // pred_region
          %807 = dma.done [#allocation9], 12288
        $region124: #{pose_raw2_bert7_forward.1} parent=103 // pred_fallthru
          _
        // Predicated region
        $region125: #{pose_raw2_bert7_forward.1} parent=103 // pred_check
          %p808 = pneg %p240
        $region126: #{pose_raw2_bert7_forward.1} parent=103 // pred_check_branch
          %810 = sbr.rel (%p808) target = $region128
        $region127: #{pose_raw2_bert7_forward.1} parent=103 // pred_region
          %811 = dma.done [#allocation12], 96
        $region128: #{pose_raw2_bert7_forward.1} parent=103 // pred_fallthru
          _
        // Predicated region
        $region129: #{pose_raw2_bert7_forward.1} parent=103 // pred_check
          %p812 = pneg %p261
        $region130: #{pose_raw2_bert7_forward.1} parent=103 // pred_check_branch
          %814 = sbr.rel (%p812) target = $region132
        $region131: #{pose_raw2_bert7_forward.1} parent=103 // pred_region
          %815 = dma.done [#allocation12], 4096
        $region132: #{pose_raw2_bert7_forward.1} parent=103 // pred_fallthru
          _
        // Predicated region
        $region133: #{pose_raw2_bert7_forward.1} parent=103 // pred_check
          %p816 = pneg %p282
        $region134: #{pose_raw2_bert7_forward.1} parent=103 // pred_check_branch
          %818 = sbr.rel (%p816) target = $region136
        $region135: #{pose_raw2_bert7_forward.1} parent=103 // pred_region
          %819 = dma.done [#allocation15], 32
        $region136: #{pose_raw2_bert7_forward.1} parent=103 // pred_fallthru
          _
        // Predicated region
        $region137: #{pose_raw2_bert7_forward.1} parent=103 // pred_check
          %p820 = pneg %p303
        $region138: #{pose_raw2_bert7_forward.1} parent=103 // pred_check_branch
          %822 = sbr.rel (%p820) target = $region140
        $region139: #{pose_raw2_bert7_forward.1} parent=103 // pred_region
          %823 = dma.done [#allocation15], 32
        $region140: #{pose_raw2_bert7_forward.1} parent=103 // pred_fallthru
          _
        // Predicated region
        $region141: #{pose_raw2_bert7_forward.1} parent=103 // pred_check
          %p824 = pneg %p324
        $region142: #{pose_raw2_bert7_forward.1} parent=103 // pred_check_branch
          %826 = sbr.rel (%p824) target = $region144
        $region143: #{pose_raw2_bert7_forward.1} parent=103 // pred_region
          %827 = dma.done [#allocation18], 32
        $region144: #{pose_raw2_bert7_forward.1} parent=103 // pred_fallthru
          _
        // Predicated region
        $region145: #{pose_raw2_bert7_forward.1} parent=103 // pred_check
          %p828 = pneg %p345
        $region146: #{pose_raw2_bert7_forward.1} parent=103 // pred_check_branch
          %830 = sbr.rel (%p828) target = $region148
        $region147: #{pose_raw2_bert7_forward.1} parent=103 // pred_region
          %831 = dma.done [#allocation18], 16384
        $region148: #{pose_raw2_bert7_forward.1} parent=103 // pred_fallthru
          _
        // Predicated region
        $region149: #{pose_raw2_bert7_forward.1} parent=103 // pred_check
          %p832 = pneg %p366
        $region150: #{pose_raw2_bert7_forward.1} parent=103 // pred_check_branch
          %834 = sbr.rel (%p832) target = $region152
        $region151: #{pose_raw2_bert7_forward.1} parent=103 // pred_region
          %835 = dma.done [#allocation21], 128
        $region152: #{pose_raw2_bert7_forward.1} parent=103 // pred_fallthru
          _
        // Predicated region
        $region153: #{pose_raw2_bert7_forward.1} parent=103 // pred_check
          %p836 = pneg %p387
        $region154: #{pose_raw2_bert7_forward.1} parent=103 // pred_check_branch
          %838 = sbr.rel (%p836) target = $region156
        $region155: #{pose_raw2_bert7_forward.1} parent=103 // pred_region
          %839 = dma.done [#allocation21], 16384
        $region156: #{pose_raw2_bert7_forward.1} parent=103 // pred_fallthru
          _
        // Predicated region
        $region157: #{pose_raw2_bert7_forward.1} parent=103 // pred_check
          %p840 = pneg %p408
        $region158: #{pose_raw2_bert7_forward.1} parent=103 // pred_check_branch
          %842 = sbr.rel (%p840) target = $region160
        $region159: #{pose_raw2_bert7_forward.1} parent=103 // pred_region
          %843 = dma.done [#allocation24], 32
        $region160: #{pose_raw2_bert7_forward.1} parent=103 // pred_fallthru
          _
        // Predicated region
        $region161: #{pose_raw2_bert7_forward.1} parent=103 // pred_check
          %p844 = pneg %p429
        $region162: #{pose_raw2_bert7_forward.1} parent=103 // pred_check_branch
          %846 = sbr.rel (%p844) target = $region164
        $region163: #{pose_raw2_bert7_forward.1} parent=103 // pred_region
          %847 = dma.done [#allocation24], 2048
        $region164: #{pose_raw2_bert7_forward.1} parent=103 // pred_fallthru
          _
        // Predicated region
        $region165: #{pose_raw2_bert7_forward.1} parent=103 // pred_check
          %p848 = pneg %p471
        $region166: #{pose_raw2_bert7_forward.1} parent=103 // pred_check_branch
          %850 = sbr.rel (%p848) target = $region168
        $region167: #{pose_raw2_bert7_forward.1} parent=103 // pred_region
          %851 = dma.done [#allocation27], 16384
        $region168: #{pose_raw2_bert7_forward.1} parent=103 // pred_fallthru
          _
        %s852 = sand.u32 %s59, 1
        %s853 = scalar_lea.sflag [#allocation3], %s852
        %s854 = sand.u32 %s59, 1
        %s855 = smul.addr %s854, 64
        %s856 = scalar_lea.vmem [#allocation2], %s855
        %p857 = pneg %p72
        %p858 = pneg %p69
        %p859 = pneg %p93
        %p860 = pneg %p90
        %p861 = pneg %p114
        %p862 = pneg %p111
        %p863 = pneg %p135
        %p864 = pneg %p132
        %p865 = pneg %p156
        %p866 = pneg %p153
        %p867 = pneg %p177
        %p868 = pneg %p174
        %p869 = pneg %p198
        %p870 = pneg %p195
        %p871 = pneg %p219
        %p872 = pneg %p216
        %p873 = pneg %p240
        %p874 = pneg %p237
        %p875 = pneg %p261
        %p876 = pneg %p258
        %p877 = pneg %p282
        %p878 = pneg %p279
        %p879 = pneg %p303
        %p880 = pneg %p300
        %p881 = pneg %p324
        %p882 = pneg %p321
        %p883 = pneg %p345
        %p884 = pneg %p342
        %p885 = pneg %p366
        %p886 = pneg %p363
        %p887 = pneg %p387
        %p888 = pneg %p384
        %p889 = pneg %p408
        %p890 = pneg %p405
        %p891 = pneg %p429
        %p892 = pneg %p426
        %p893 = pneg %p450
        %p894 = pneg %p447
        %p895 = pneg %p471
        %p896 = pneg %p468
        %p897 = pneg %p492
        %p898 = pneg %p489
        %p899 = pneg %p518
        %p900 = pneg %p515
        %s901 = sand.u32 %s505, 1
        %s902 = scalar_lea.sflag [#allocation4], %s901
        %s903 = sand.u32 %s505, 1
        %s904 = scalar_lea.vmem [#allocation28], %s903
        %p905 = pneg %p544
        %p906 = pneg %p541
        %s907 = sand.u32 %s531, 1
        %s908 = scalar_lea.sflag [#allocation30], %s907
        %s909 = sand.u32 %s531, 1
        %s910 = smul.addr %s909, 64
        %s911 = scalar_lea.vmem [#allocation29], %s910
        %v913 = vld [vmem:[%s787] sm:$0xff]
        %v914 = vld [vmem:[%s787 + $0x8] sm:$0xff]
        %v915 = vld [vmem:[%s787 + $0x10] sm:$0xff]
        %v916 = vld [vmem:[%s787 + $0x18] sm:$0xff]
        %v917 = vld [vmem:[%s787 + $0x20] sm:$0xff]
        %v918 = vld [vmem:[%s787 + $0x28] sm:$0xff]
        %v919 = vld [vmem:[%s787 + $0x30] sm:$0xff]
        %v920 = vld [vmem:[%s787 + $0x38] sm:$0xff]
        %v921 = vld [vmem:[#allocation5] sm:$0xff]
        %v922 = vld [vmem:[#allocation5 + $0x8] sm:$0xff]
        %v923 = vld [vmem:[#allocation5 + $0x10] sm:$0xff]
        %v924 = vld [vmem:[#allocation5 + $0x18] sm:$0xff]
        %v925 = vld [vmem:[#allocation5 + $0x20] sm:$0xff]
        %v926 = vld [vmem:[#allocation5 + $0x28] sm:$0xff]
        %v927 = vld [vmem:[#allocation5 + $0x30] sm:$0xff]
        %v928 = vld [vmem:[#allocation5 + $0x38] sm:$0xff]
        %v929 = vld [vmem:[#allocation5 + $0x40] sm:$0xff]
        %v930 = vld [vmem:[#allocation5 + $0x48] sm:$0xff]
        %v931 = vld [vmem:[#allocation5 + $0x50] sm:$0xff]
        %v932 = vld [vmem:[#allocation5 + $0x58] sm:$0xff]
        %v933 = vld [vmem:[#allocation5 + $0x60] sm:$0xff]
        %v934 = vld [vmem:[#allocation5 + $0x68] sm:$0xff]
        %v935 = vld [vmem:[#allocation5 + $0x70] sm:$0xff]
        %v936 = vld [vmem:[#allocation5 + $0x78] sm:$0xff]
        %v937 = vld [vmem:[#allocation5 + $0x80] sm:$0xff]
        %v938 = vld [vmem:[#allocation5 + $0x88] sm:$0xff]
        %v939 = vld [vmem:[#allocation5 + $0x90] sm:$0xff]
        %v940 = vld [vmem:[#allocation5 + $0x98] sm:$0xff]
        %v941 = vld [vmem:[#allocation5 + $0xa0] sm:$0xff]
        %v942 = vld [vmem:[#allocation5 + $0xa8] sm:$0xff]
        %v943 = vld [vmem:[#allocation5 + $0xb0] sm:$0xff]
        %v944 = vld [vmem:[#allocation5 + $0xb8] sm:$0xff]
        %v945 = vld [vmem:[#allocation5 + $0xc0] sm:$0xff]
        %v946 = vld [vmem:[#allocation5 + $0xc8] sm:$0xff]
        %v947 = vld [vmem:[#allocation5 + $0xd0] sm:$0xff]
        %v948 = vld [vmem:[#allocation5 + $0xd8] sm:$0xff]
        %v949 = vld [vmem:[#allocation5 + $0xe0] sm:$0xff]
        %v950 = vld [vmem:[#allocation5 + $0xe8] sm:$0xff]
        %v951 = vld [vmem:[#allocation5 + $0xf0] sm:$0xff]
        %v952 = vld [vmem:[#allocation5 + $0xf8] sm:$0xff]
        %v953 = vld [vmem:[#allocation5 + $0x100] sm:$0xff]
        %v954 = vld [vmem:[#allocation5 + $0x108] sm:$0xff]
        %v955 = vld [vmem:[#allocation5 + $0x110] sm:$0xff]
        %v956 = vld [vmem:[#allocation5 + $0x118] sm:$0xff]
        %v957 = vld [vmem:[#allocation5 + $0x120] sm:$0xff]
        %v958 = vld [vmem:[#allocation5 + $0x128] sm:$0xff]
        %v959 = vld [vmem:[#allocation5 + $0x130] sm:$0xff]
        %v960 = vld [vmem:[#allocation5 + $0x138] sm:$0xff]
        %v961 = vld [vmem:[#allocation5 + $0x140] sm:$0xff]
        %v962 = vld [vmem:[#allocation5 + $0x148] sm:$0xff]
        %v963 = vld [vmem:[#allocation5 + $0x150] sm:$0xff]
        %v964 = vld [vmem:[#allocation5 + $0x158] sm:$0xff]
        %v965 = vld [vmem:[#allocation5 + $0x160] sm:$0xff]
        %v966 = vld [vmem:[#allocation5 + $0x168] sm:$0xff]
        %v967 = vld [vmem:[#allocation5 + $0x170] sm:$0xff]
        %v968 = vld [vmem:[#allocation5 + $0x178] sm:$0xff]
        %v969 = vld [vmem:[#allocation5 + $0x180] sm:$0xff]
        %v970 = vld [vmem:[#allocation5 + $0x188] sm:$0xff]
        %v971 = vld [vmem:[#allocation5 + $0x190] sm:$0xff]
        %v972 = vld [vmem:[#allocation5 + $0x198] sm:$0xff]
        %v973 = vld [vmem:[#allocation5 + $0x1a0] sm:$0xff]
        %v974 = vld [vmem:[#allocation5 + $0x1a8] sm:$0xff]
        %v975 = vld [vmem:[#allocation5 + $0x1b0] sm:$0xff]
        %v976 = vld [vmem:[#allocation5 + $0x1b8] sm:$0xff]
        %v977 = vld [vmem:[#allocation5 + $0x1c0] sm:$0xff]
        %v978 = vld [vmem:[#allocation5 + $0x1c8] sm:$0xff]
        %v979 = vld [vmem:[#allocation5 + $0x1d0] sm:$0xff]
        %v980 = vld [vmem:[#allocation5 + $0x1d8] sm:$0xff]
        %v981 = vld [vmem:[#allocation5 + $0x1e0] sm:$0xff]
        %v982 = vld [vmem:[#allocation5 + $0x1e8] sm:$0xff]
        %v983 = vld [vmem:[#allocation5 + $0x1f0] sm:$0xff]
        %v984 = vld [vmem:[#allocation5 + $0x1f8] sm:$0xff]
        %v985 = vld [vmem:[#allocation5 + $0x200] sm:$0xff]
        %v986 = vld [vmem:[#allocation5 + $0x208] sm:$0xff]
        %v987 = vld [vmem:[#allocation5 + $0x210] sm:$0xff]
        %v988 = vld [vmem:[#allocation5 + $0x218] sm:$0xff]
        %v989 = vld [vmem:[#allocation5 + $0x220] sm:$0xff]
        %v990 = vld [vmem:[#allocation5 + $0x228] sm:$0xff]
        %v991 = vld [vmem:[#allocation5 + $0x230] sm:$0xff]
        %v992 = vld [vmem:[#allocation5 + $0x238] sm:$0xff]
        %v993 = vld [vmem:[#allocation5 + $0x240] sm:$0xff]
        %v994 = vld [vmem:[#allocation5 + $0x248] sm:$0xff]
        %v995 = vld [vmem:[#allocation5 + $0x250] sm:$0xff]
        %v996 = vld [vmem:[#allocation5 + $0x258] sm:$0xff]
        %v997 = vld [vmem:[#allocation5 + $0x260] sm:$0xff]
        %v998 = vld [vmem:[#allocation5 + $0x268] sm:$0xff]
        %v999 = vld [vmem:[#allocation5 + $0x270] sm:$0xff]
        %v1000 = vld [vmem:[#allocation5 + $0x278] sm:$0xff]
        %v1001 = vld [vmem:[#allocation5 + $0x280] sm:$0xff]
        %v1002 = vld [vmem:[#allocation5 + $0x288] sm:$0xff]
        %v1003 = vld [vmem:[#allocation5 + $0x290] sm:$0xff]
        %v1004 = vld [vmem:[#allocation5 + $0x298] sm:$0xff]
        %v1005 = vld [vmem:[#allocation5 + $0x2a0] sm:$0xff]
        %v1006 = vld [vmem:[#allocation5 + $0x2a8] sm:$0xff]
        %v1007 = vld [vmem:[#allocation5 + $0x2b0] sm:$0xff]
        %v1008 = vld [vmem:[#allocation5 + $0x2b8] sm:$0xff]
        %v1009 = vld [vmem:[#allocation5 + $0x2c0] sm:$0xff]
        %v1010 = vld [vmem:[#allocation5 + $0x2c8] sm:$0xff]
        %v1011 = vld [vmem:[#allocation5 + $0x2d0] sm:$0xff]
        %v1012 = vld [vmem:[#allocation5 + $0x2d8] sm:$0xff]
        %v1013 = vld [vmem:[#allocation5 + $0x2e0] sm:$0xff]
        %v1014 = vld [vmem:[#allocation5 + $0x2e8] sm:$0xff]
        %v1015 = vld [vmem:[#allocation5 + $0x2f0] sm:$0xff]
        %v1016 = vld [vmem:[#allocation5 + $0x2f8] sm:$0xff]
        %v1017 = vld [vmem:[#allocation5 + $0x300] sm:$0xff]
        %v1018 = vld [vmem:[#allocation5 + $0x308] sm:$0xff]
        %v1019 = vld [vmem:[#allocation5 + $0x310] sm:$0xff]
        %v1020 = vld [vmem:[#allocation5 + $0x318] sm:$0xff]
        %v1021 = vld [vmem:[#allocation5 + $0x320] sm:$0xff]
        %v1022 = vld [vmem:[#allocation5 + $0x328] sm:$0xff]
        %v1023 = vld [vmem:[#allocation5 + $0x330] sm:$0xff]
        %v1024 = vld [vmem:[#allocation5 + $0x338] sm:$0xff]
        %v1025 = vld [vmem:[#allocation5 + $0x340] sm:$0xff]
        %v1026 = vld [vmem:[#allocation5 + $0x348] sm:$0xff]
        %v1027 = vld [vmem:[#allocation5 + $0x350] sm:$0xff]
        %v1028 = vld [vmem:[#allocation5 + $0x358] sm:$0xff]
        %v1029 = vld [vmem:[#allocation5 + $0x360] sm:$0xff]
        %v1030 = vld [vmem:[#allocation5 + $0x368] sm:$0xff]
        %v1031 = vld [vmem:[#allocation5 + $0x370] sm:$0xff]
        %v1032 = vld [vmem:[#allocation5 + $0x378] sm:$0xff]
        %v1033 = vld [vmem:[#allocation5 + $0x380] sm:$0xff]
        %v1034 = vld [vmem:[#allocation5 + $0x388] sm:$0xff]
        %v1035 = vld [vmem:[#allocation5 + $0x390] sm:$0xff]
        %v1036 = vld [vmem:[#allocation5 + $0x398] sm:$0xff]
        %v1037 = vld [vmem:[#allocation5 + $0x3a0] sm:$0xff]
        %v1038 = vld [vmem:[#allocation5 + $0x3a8] sm:$0xff]
        %v1039 = vld [vmem:[#allocation5 + $0x3b0] sm:$0xff]
        %v1040 = vld [vmem:[#allocation5 + $0x3b8] sm:$0xff]
        %v1041 = vld [vmem:[#allocation5 + $0x3c0] sm:$0xff]
        %v1042 = vld [vmem:[#allocation5 + $0x3c8] sm:$0xff]
        %v1043 = vld [vmem:[#allocation5 + $0x3d0] sm:$0xff]
        %v1044 = vld [vmem:[#allocation5 + $0x3d8] sm:$0xff]
        %v1045 = vld [vmem:[#allocation5 + $0x3e0] sm:$0xff]
        %v1046 = vld [vmem:[#allocation5 + $0x3e8] sm:$0xff]
        %v1047 = vld [vmem:[#allocation5 + $0x3f0] sm:$0xff]
        %v1048 = vld [vmem:[#allocation5 + $0x3f8] sm:$0xff]
        %v1049 = vpack.c.bf16 %v913, %v913
        %v1050 = vpack.c.bf16 %v914, %v914
        %v1051 = vpack.c.bf16 %v915, %v915
        %v1052 = vpack.c.bf16 %v916, %v916
        %v1053 = vpack.c.bf16 %v917, %v917
        %v1054 = vpack.c.bf16 %v918, %v918
        %v1055 = vpack.c.bf16 %v919, %v919
        %v1056 = vpack.c.bf16 %v920, %v920
        %v1057 = vld [vmem:[%s2] sm:$0x3]
        %v1059 = vlaneseq
        %v1060 = vshrl.u32 %v1059, 7
        %v1061 = vsub.s32 0, %v1060
        %v1062 = vrot.slane %v1057, %v1061
        %v1063 = vlaneseq
        %v1064 = vshrl.u32 %v1063, 7
        %v1065 = vsub.s32 1, %v1064
        %v1066 = vrot.slane %v1057, %v1065
        %v1197 = vunpack.c.l.b16 %v921
        %v1198 = vunpack.c.h.b16 %v921
        %v1199 = vunpack.c.l.b16 %v922
        %v1200 = vunpack.c.h.b16 %v922
        %v1201 = vunpack.c.l.b16 %v923
        %v1202 = vunpack.c.h.b16 %v923
        %v1203 = vunpack.c.l.b16 %v924
        %v1204 = vunpack.c.h.b16 %v924
        %v1205 = vunpack.c.l.b16 %v925
        %v1206 = vunpack.c.h.b16 %v925
        %v1207 = vunpack.c.l.b16 %v926
        %v1208 = vunpack.c.h.b16 %v926
        %v1209 = vunpack.c.l.b16 %v927
        %v1210 = vunpack.c.h.b16 %v927
        %v1211 = vunpack.c.l.b16 %v928
        %v1212 = vunpack.c.h.b16 %v928
        %v1213 = vunpack.c.l.b16 %v929
        %v1214 = vunpack.c.h.b16 %v929
        %v1215 = vunpack.c.l.b16 %v930
        %v1216 = vunpack.c.h.b16 %v930
        %v1217 = vunpack.c.l.b16 %v931
        %v1218 = vunpack.c.h.b16 %v931
        %v1219 = vunpack.c.l.b16 %v932
        %v1220 = vunpack.c.h.b16 %v932
        %v1221 = vunpack.c.l.b16 %v933
        %v1222 = vunpack.c.h.b16 %v933
        %v1223 = vunpack.c.l.b16 %v934
        %v1224 = vunpack.c.h.b16 %v934
        %v1225 = vunpack.c.l.b16 %v935
        %v1226 = vunpack.c.h.b16 %v935
        %v1227 = vunpack.c.l.b16 %v936
        %v1228 = vunpack.c.h.b16 %v936
        %v1229 = vunpack.c.l.b16 %v937
        %v1230 = vunpack.c.h.b16 %v937
        %v1231 = vunpack.c.l.b16 %v938
        %v1232 = vunpack.c.h.b16 %v938
        %v1233 = vunpack.c.l.b16 %v939
        %v1234 = vunpack.c.h.b16 %v939
        %v1235 = vunpack.c.l.b16 %v940
        %v1236 = vunpack.c.h.b16 %v940
        %v1237 = vunpack.c.l.b16 %v941
        %v1238 = vunpack.c.h.b16 %v941
        %v1239 = vunpack.c.l.b16 %v942
        %v1240 = vunpack.c.h.b16 %v942
        %v1241 = vunpack.c.l.b16 %v943
        %v1242 = vunpack.c.h.b16 %v943
        %v1243 = vunpack.c.l.b16 %v944
        %v1244 = vunpack.c.h.b16 %v944
        %v1245 = vunpack.c.l.b16 %v945
        %v1246 = vunpack.c.h.b16 %v945
        %v1247 = vunpack.c.l.b16 %v946
        %v1248 = vunpack.c.h.b16 %v946
        %v1249 = vunpack.c.l.b16 %v947
        %v1250 = vunpack.c.h.b16 %v947
        %v1251 = vunpack.c.l.b16 %v948
        %v1252 = vunpack.c.h.b16 %v948
        %v1253 = vunpack.c.l.b16 %v949
        %v1254 = vunpack.c.h.b16 %v949
        %v1255 = vunpack.c.l.b16 %v950
        %v1256 = vunpack.c.h.b16 %v950
        %v1257 = vunpack.c.l.b16 %v951
        %v1258 = vunpack.c.h.b16 %v951
        %v1259 = vunpack.c.l.b16 %v952
        %v1260 = vunpack.c.h.b16 %v952
        %v1261 = vunpack.c.l.b16 %v953
        %v1262 = vunpack.c.h.b16 %v953
        %v1263 = vunpack.c.l.b16 %v954
        %v1264 = vunpack.c.h.b16 %v954
        %v1265 = vunpack.c.l.b16 %v955
        %v1266 = vunpack.c.h.b16 %v955
        %v1267 = vunpack.c.l.b16 %v956
        %v1268 = vunpack.c.h.b16 %v956
        %v1269 = vunpack.c.l.b16 %v957
        %v1270 = vunpack.c.h.b16 %v957
        %v1271 = vunpack.c.l.b16 %v958
        %v1272 = vunpack.c.h.b16 %v958
        %v1273 = vunpack.c.l.b16 %v959
        %v1274 = vunpack.c.h.b16 %v959
        %v1275 = vunpack.c.l.b16 %v960
        %v1276 = vunpack.c.h.b16 %v960
        %v1277 = vunpack.c.l.b16 %v961
        %v1278 = vunpack.c.h.b16 %v961
        %v1279 = vunpack.c.l.b16 %v962
        %v1280 = vunpack.c.h.b16 %v962
        %v1281 = vunpack.c.l.b16 %v963
        %v1282 = vunpack.c.h.b16 %v963
        %v1283 = vunpack.c.l.b16 %v964
        %v1284 = vunpack.c.h.b16 %v964
        %v1285 = vunpack.c.l.b16 %v965
        %v1286 = vunpack.c.h.b16 %v965
        %v1287 = vunpack.c.l.b16 %v966
        %v1288 = vunpack.c.h.b16 %v966
        %v1289 = vunpack.c.l.b16 %v967
        %v1290 = vunpack.c.h.b16 %v967
        %v1291 = vunpack.c.l.b16 %v968
        %v1292 = vunpack.c.h.b16 %v968
        %v1293 = vunpack.c.l.b16 %v969
        %v1294 = vunpack.c.h.b16 %v969
        %v1295 = vunpack.c.l.b16 %v970
        %v1296 = vunpack.c.h.b16 %v970
        %v1297 = vunpack.c.l.b16 %v971
        %v1298 = vunpack.c.h.b16 %v971
        %v1299 = vunpack.c.l.b16 %v972
        %v1300 = vunpack.c.h.b16 %v972
        %v1301 = vunpack.c.l.b16 %v973
        %v1302 = vunpack.c.h.b16 %v973
        %v1303 = vunpack.c.l.b16 %v974
        %v1304 = vunpack.c.h.b16 %v974
        %v1305 = vunpack.c.l.b16 %v975
        %v1306 = vunpack.c.h.b16 %v975
        %v1307 = vunpack.c.l.b16 %v976
        %v1308 = vunpack.c.h.b16 %v976
        %v1309 = vunpack.c.l.b16 %v977
        %v1310 = vunpack.c.h.b16 %v977
        %v1311 = vunpack.c.l.b16 %v978
        %v1312 = vunpack.c.h.b16 %v978
        %v1313 = vunpack.c.l.b16 %v979
        %v1314 = vunpack.c.h.b16 %v979
        %v1315 = vunpack.c.l.b16 %v980
        %v1316 = vunpack.c.h.b16 %v980
        %v1317 = vunpack.c.l.b16 %v981
        %v1318 = vunpack.c.h.b16 %v981
        %v1319 = vunpack.c.l.b16 %v982
        %v1320 = vunpack.c.h.b16 %v982
        %v1321 = vunpack.c.l.b16 %v983
        %v1322 = vunpack.c.h.b16 %v983
        %v1323 = vunpack.c.l.b16 %v984
        %v1324 = vunpack.c.h.b16 %v984
        %v1325 = vunpack.c.l.b16 %v985
        %v1326 = vunpack.c.h.b16 %v985
        %v1327 = vunpack.c.l.b16 %v986
        %v1328 = vunpack.c.h.b16 %v986
        %v1329 = vunpack.c.l.b16 %v987
        %v1330 = vunpack.c.h.b16 %v987
        %v1331 = vunpack.c.l.b16 %v988
        %v1332 = vunpack.c.h.b16 %v988
        %v1333 = vunpack.c.l.b16 %v989
        %v1334 = vunpack.c.h.b16 %v989
        %v1335 = vunpack.c.l.b16 %v990
        %v1336 = vunpack.c.h.b16 %v990
        %v1337 = vunpack.c.l.b16 %v991
        %v1338 = vunpack.c.h.b16 %v991
        %v1339 = vunpack.c.l.b16 %v992
        %v1340 = vunpack.c.h.b16 %v992
        %v1341 = vunpack.c.l.b16 %v993
        %v1342 = vunpack.c.h.b16 %v993
        %v1343 = vunpack.c.l.b16 %v994
        %v1344 = vunpack.c.h.b16 %v994
        %v1345 = vunpack.c.l.b16 %v995
        %v1346 = vunpack.c.h.b16 %v995
        %v1347 = vunpack.c.l.b16 %v996
        %v1348 = vunpack.c.h.b16 %v996
        %v1349 = vunpack.c.l.b16 %v997
        %v1350 = vunpack.c.h.b16 %v997
        %v1351 = vunpack.c.l.b16 %v998
        %v1352 = vunpack.c.h.b16 %v998
        %v1353 = vunpack.c.l.b16 %v999
        %v1354 = vunpack.c.h.b16 %v999
        %v1355 = vunpack.c.l.b16 %v1000
        %v1356 = vunpack.c.h.b16 %v1000
        %v1357 = vunpack.c.l.b16 %v1001
        %v1358 = vunpack.c.h.b16 %v1001
        %v1359 = vunpack.c.l.b16 %v1002
        %v1360 = vunpack.c.h.b16 %v1002
        %v1361 = vunpack.c.l.b16 %v1003
        %v1362 = vunpack.c.h.b16 %v1003
        %v1363 = vunpack.c.l.b16 %v1004
        %v1364 = vunpack.c.h.b16 %v1004
        %v1365 = vunpack.c.l.b16 %v1005
        %v1366 = vunpack.c.h.b16 %v1005
        %v1367 = vunpack.c.l.b16 %v1006
        %v1368 = vunpack.c.h.b16 %v1006
        %v1369 = vunpack.c.l.b16 %v1007
        %v1370 = vunpack.c.h.b16 %v1007
        %v1371 = vunpack.c.l.b16 %v1008
        %v1372 = vunpack.c.h.b16 %v1008
        %v1373 = vunpack.c.l.b16 %v1009
        %v1374 = vunpack.c.h.b16 %v1009
        %v1375 = vunpack.c.l.b16 %v1010
        %v1376 = vunpack.c.h.b16 %v1010
        %v1377 = vunpack.c.l.b16 %v1011
        %v1378 = vunpack.c.h.b16 %v1011
        %v1379 = vunpack.c.l.b16 %v1012
        %v1380 = vunpack.c.h.b16 %v1012
        %v1381 = vunpack.c.l.b16 %v1013
        %v1382 = vunpack.c.h.b16 %v1013
        %v1383 = vunpack.c.l.b16 %v1014
        %v1384 = vunpack.c.h.b16 %v1014
        %v1385 = vunpack.c.l.b16 %v1015
        %v1386 = vunpack.c.h.b16 %v1015
        %v1387 = vunpack.c.l.b16 %v1016
        %v1388 = vunpack.c.h.b16 %v1016
        %v1389 = vunpack.c.l.b16 %v1017
        %v1390 = vunpack.c.h.b16 %v1017
        %v1391 = vunpack.c.l.b16 %v1018
        %v1392 = vunpack.c.h.b16 %v1018
        %v1393 = vunpack.c.l.b16 %v1019
        %v1394 = vunpack.c.h.b16 %v1019
        %v1395 = vunpack.c.l.b16 %v1020
        %v1396 = vunpack.c.h.b16 %v1020
        %v1397 = vunpack.c.l.b16 %v1021
        %v1398 = vunpack.c.h.b16 %v1021
        %v1399 = vunpack.c.l.b16 %v1022
        %v1400 = vunpack.c.h.b16 %v1022
        %v1401 = vunpack.c.l.b16 %v1023
        %v1402 = vunpack.c.h.b16 %v1023
        %v1403 = vunpack.c.l.b16 %v1024
        %v1404 = vunpack.c.h.b16 %v1024
        %v1405 = vunpack.c.l.b16 %v1025
        %v1406 = vunpack.c.h.b16 %v1025
        %v1407 = vunpack.c.l.b16 %v1026
        %v1408 = vunpack.c.h.b16 %v1026
        %v1409 = vunpack.c.l.b16 %v1027
        %v1410 = vunpack.c.h.b16 %v1027
        %v1411 = vunpack.c.l.b16 %v1028
        %v1412 = vunpack.c.h.b16 %v1028
        %v1413 = vunpack.c.l.b16 %v1029
        %v1414 = vunpack.c.h.b16 %v1029
        %v1415 = vunpack.c.l.b16 %v1030
        %v1416 = vunpack.c.h.b16 %v1030
        %v1417 = vunpack.c.l.b16 %v1031
        %v1418 = vunpack.c.h.b16 %v1031
        %v1419 = vunpack.c.l.b16 %v1032
        %v1420 = vunpack.c.h.b16 %v1032
        %v1421 = vunpack.c.l.b16 %v1033
        %v1422 = vunpack.c.h.b16 %v1033
        %v1423 = vunpack.c.l.b16 %v1034
        %v1424 = vunpack.c.h.b16 %v1034
        %v1425 = vunpack.c.l.b16 %v1035
        %v1426 = vunpack.c.h.b16 %v1035
        %v1427 = vunpack.c.l.b16 %v1036
        %v1428 = vunpack.c.h.b16 %v1036
        %v1429 = vunpack.c.l.b16 %v1037
        %v1430 = vunpack.c.h.b16 %v1037
        %v1431 = vunpack.c.l.b16 %v1038
        %v1432 = vunpack.c.h.b16 %v1038
        %v1433 = vunpack.c.l.b16 %v1039
        %v1434 = vunpack.c.h.b16 %v1039
        %v1435 = vunpack.c.l.b16 %v1040
        %v1436 = vunpack.c.h.b16 %v1040
        %v1437 = vunpack.c.l.b16 %v1041
        %v1438 = vunpack.c.h.b16 %v1041
        %v1439 = vunpack.c.l.b16 %v1042
        %v1440 = vunpack.c.h.b16 %v1042
        %v1441 = vunpack.c.l.b16 %v1043
        %v1442 = vunpack.c.h.b16 %v1043
        %v1443 = vunpack.c.l.b16 %v1044
        %v1444 = vunpack.c.h.b16 %v1044
        %v1445 = vunpack.c.l.b16 %v1045
        %v1446 = vunpack.c.h.b16 %v1045
        %v1447 = vunpack.c.l.b16 %v1046
        %v1448 = vunpack.c.h.b16 %v1046
        %v1449 = vunpack.c.l.b16 %v1047
        %v1450 = vunpack.c.h.b16 %v1047
        %v1451 = vunpack.c.l.b16 %v1048
        %v1452 = vunpack.c.h.b16 %v1048
        %v1453 = vpack.c.b16 %v1199, %v1197
        %v1454 = vpack.c.b16 %v1200, %v1198
        %v1455 = vpack.c.b16 %v1203, %v1201
        %v1456 = vpack.c.b16 %v1204, %v1202
        %v1457 = vpack.c.b16 %v1207, %v1205
        %v1458 = vpack.c.b16 %v1208, %v1206
        %v1459 = vpack.c.b16 %v1211, %v1209
        %v1460 = vpack.c.b16 %v1212, %v1210
        %v1461 = vpack.c.b16 %v1215, %v1213
        %v1462 = vpack.c.b16 %v1216, %v1214
        %v1463 = vpack.c.b16 %v1219, %v1217
        %v1464 = vpack.c.b16 %v1220, %v1218
        %v1465 = vpack.c.b16 %v1223, %v1221
        %v1466 = vpack.c.b16 %v1224, %v1222
        %v1467 = vpack.c.b16 %v1227, %v1225
        %v1468 = vpack.c.b16 %v1228, %v1226
        %v1469 = vpack.c.b16 %v1231, %v1229
        %v1470 = vpack.c.b16 %v1232, %v1230
        %v1471 = vpack.c.b16 %v1235, %v1233
        %v1472 = vpack.c.b16 %v1236, %v1234
        %v1473 = vpack.c.b16 %v1239, %v1237
        %v1474 = vpack.c.b16 %v1240, %v1238
        %v1475 = vpack.c.b16 %v1243, %v1241
        %v1476 = vpack.c.b16 %v1244, %v1242
        %v1477 = vpack.c.b16 %v1247, %v1245
        %v1478 = vpack.c.b16 %v1248, %v1246
        %v1479 = vpack.c.b16 %v1251, %v1249
        %v1480 = vpack.c.b16 %v1252, %v1250
        %v1481 = vpack.c.b16 %v1255, %v1253
        %v1482 = vpack.c.b16 %v1256, %v1254
        %v1483 = vpack.c.b16 %v1259, %v1257
        %v1484 = vpack.c.b16 %v1260, %v1258
        %v1485 = vpack.c.b16 %v1263, %v1261
        %v1486 = vpack.c.b16 %v1264, %v1262
        %v1487 = vpack.c.b16 %v1267, %v1265
        %v1488 = vpack.c.b16 %v1268, %v1266
        %v1489 = vpack.c.b16 %v1271, %v1269
        %v1490 = vpack.c.b16 %v1272, %v1270
        %v1491 = vpack.c.b16 %v1275, %v1273
        %v1492 = vpack.c.b16 %v1276, %v1274
        %v1493 = vpack.c.b16 %v1279, %v1277
        %v1494 = vpack.c.b16 %v1280, %v1278
        %v1495 = vpack.c.b16 %v1283, %v1281
        %v1496 = vpack.c.b16 %v1284, %v1282
        %v1497 = vpack.c.b16 %v1287, %v1285
        %v1498 = vpack.c.b16 %v1288, %v1286
        %v1499 = vpack.c.b16 %v1291, %v1289
        %v1500 = vpack.c.b16 %v1292, %v1290
        %v1501 = vpack.c.b16 %v1295, %v1293
        %v1502 = vpack.c.b16 %v1296, %v1294
        %v1503 = vpack.c.b16 %v1299, %v1297
        %v1504 = vpack.c.b16 %v1300, %v1298
        %v1505 = vpack.c.b16 %v1303, %v1301
        %v1506 = vpack.c.b16 %v1304, %v1302
        %v1507 = vpack.c.b16 %v1307, %v1305
        %v1508 = vpack.c.b16 %v1308, %v1306
        %v1509 = vpack.c.b16 %v1311, %v1309
        %v1510 = vpack.c.b16 %v1312, %v1310
        %v1511 = vpack.c.b16 %v1315, %v1313
        %v1512 = vpack.c.b16 %v1316, %v1314
        %v1513 = vpack.c.b16 %v1319, %v1317
        %v1514 = vpack.c.b16 %v1320, %v1318
        %v1515 = vpack.c.b16 %v1323, %v1321
        %v1516 = vpack.c.b16 %v1324, %v1322
        %v1517 = vpack.c.b16 %v1327, %v1325
        %v1518 = vpack.c.b16 %v1328, %v1326
        %v1519 = vpack.c.b16 %v1331, %v1329
        %v1520 = vpack.c.b16 %v1332, %v1330
        %v1521 = vpack.c.b16 %v1335, %v1333
        %v1522 = vpack.c.b16 %v1336, %v1334
        %v1523 = vpack.c.b16 %v1339, %v1337
        %v1524 = vpack.c.b16 %v1340, %v1338
        %v1525 = vpack.c.b16 %v1343, %v1341
        %v1526 = vpack.c.b16 %v1344, %v1342
        %v1527 = vpack.c.b16 %v1347, %v1345
        %v1528 = vpack.c.b16 %v1348, %v1346
        %v1529 = vpack.c.b16 %v1351, %v1349
        %v1530 = vpack.c.b16 %v1352, %v1350
        %v1531 = vpack.c.b16 %v1355, %v1353
        %v1532 = vpack.c.b16 %v1356, %v1354
        %v1533 = vpack.c.b16 %v1359, %v1357
        %v1534 = vpack.c.b16 %v1360, %v1358
        %v1535 = vpack.c.b16 %v1363, %v1361
        %v1536 = vpack.c.b16 %v1364, %v1362
        %v1537 = vpack.c.b16 %v1367, %v1365
        %v1538 = vpack.c.b16 %v1368, %v1366
        %v1539 = vpack.c.b16 %v1371, %v1369
        %v1540 = vpack.c.b16 %v1372, %v1370
        %v1541 = vpack.c.b16 %v1375, %v1373
        %v1542 = vpack.c.b16 %v1376, %v1374
        %v1543 = vpack.c.b16 %v1379, %v1377
        %v1544 = vpack.c.b16 %v1380, %v1378
        %v1545 = vpack.c.b16 %v1383, %v1381
        %v1546 = vpack.c.b16 %v1384, %v1382
        %v1547 = vpack.c.b16 %v1387, %v1385
        %v1548 = vpack.c.b16 %v1388, %v1386
        %v1549 = vpack.c.b16 %v1391, %v1389
        %v1550 = vpack.c.b16 %v1392, %v1390
        %v1551 = vpack.c.b16 %v1395, %v1393
        %v1552 = vpack.c.b16 %v1396, %v1394
        %v1553 = vpack.c.b16 %v1399, %v1397
        %v1554 = vpack.c.b16 %v1400, %v1398
        %v1555 = vpack.c.b16 %v1403, %v1401
        %v1556 = vpack.c.b16 %v1404, %v1402
        %v1557 = vpack.c.b16 %v1407, %v1405
        %v1558 = vpack.c.b16 %v1408, %v1406
        %v1559 = vpack.c.b16 %v1411, %v1409
        %v1560 = vpack.c.b16 %v1412, %v1410
        %v1561 = vpack.c.b16 %v1415, %v1413
        %v1562 = vpack.c.b16 %v1416, %v1414
        %v1563 = vpack.c.b16 %v1419, %v1417
        %v1564 = vpack.c.b16 %v1420, %v1418
        %v1565 = vpack.c.b16 %v1423, %v1421
        %v1566 = vpack.c.b16 %v1424, %v1422
        %v1567 = vpack.c.b16 %v1427, %v1425
        %v1568 = vpack.c.b16 %v1428, %v1426
        %v1569 = vpack.c.b16 %v1431, %v1429
        %v1570 = vpack.c.b16 %v1432, %v1430
        %v1571 = vpack.c.b16 %v1435, %v1433
        %v1572 = vpack.c.b16 %v1436, %v1434
        %v1573 = vpack.c.b16 %v1439, %v1437
        %v1574 = vpack.c.b16 %v1440, %v1438
        %v1575 = vpack.c.b16 %v1443, %v1441
        %v1576 = vpack.c.b16 %v1444, %v1442
        %v1577 = vpack.c.b16 %v1447, %v1445
        %v1578 = vpack.c.b16 %v1448, %v1446
        %v1579 = vpack.c.b16 %v1451, %v1449
        %v1580 = vpack.c.b16 %v1452, %v1450
        %1709 = vmatprep.subr.bf16.mxu0 %v1454
        %1710 = vmatpush1.bf16.msra.mxu0 %v1453
        %1711 = vmatprep.subr.bf16.mxu0 %v1456
        %1712 = vmatpush1.bf16.msra.mxu0 %v1455
        %1713 = vmatprep.subr.bf16.mxu0 %v1458
        %1714 = vmatpush1.bf16.msra.mxu0 %v1457
        %1715 = vmatprep.subr.bf16.mxu0 %v1460
        %1716 = vmatpush1.bf16.msra.mxu0 %v1459
        %1717 = vmatprep.subr.bf16.mxu0 %v1462
        %1718 = vmatpush1.bf16.msra.mxu0 %v1461
        %1719 = vmatprep.subr.bf16.mxu0 %v1464
        %1720 = vmatpush1.bf16.msra.mxu0 %v1463
        %1721 = vmatprep.subr.bf16.mxu0 %v1466
        %1722 = vmatpush1.bf16.msra.mxu0 %v1465
        %1723 = vmatprep.subr.bf16.mxu0 %v1468
        %1724 = vmatpush1.bf16.msra.mxu0 %v1467
        %1725 = vmatprep.subr.bf16.mxu0 %v1470
        %1726 = vmatpush1.bf16.msra.mxu0 %v1469
        %1727 = vmatprep.subr.bf16.mxu0 %v1472
        %1728 = vmatpush1.bf16.msra.mxu0 %v1471
        %1729 = vmatprep.subr.bf16.mxu0 %v1474
        %1730 = vmatpush1.bf16.msra.mxu0 %v1473
        %1731 = vmatprep.subr.bf16.mxu0 %v1476
        %1732 = vmatpush1.bf16.msra.mxu0 %v1475
        %1733 = vmatprep.subr.bf16.mxu0 %v1478
        %1734 = vmatpush1.bf16.msra.mxu0 %v1477
        %1735 = vmatprep.subr.bf16.mxu0 %v1480
        %1736 = vmatpush1.bf16.msra.mxu0 %v1479
        %1737 = vmatprep.subr.bf16.mxu0 %v1482
        %1738 = vmatpush1.bf16.msra.mxu0 %v1481
        %1739 = vmatprep.subr.bf16.mxu0 %v1484
        %1740 = vmatpush1.bf16.msra.mxu0 %v1483
        %1741 = vmatprep.mubr.bf16.mxu0 %v1050
        %1742 = vmatmul.mubr.bf16.gmra.mrb[0].mxu0 %v1049
        %v1743 = vpop.f32.mrb[0].mxu0
        %v1744 = vadd.f32 %v1062, %v1743
        %v1745 = vpop.f32.mrb[0].mxu0
        %v1746 = vadd.f32 %v1066, %v1745
        %v1747 = vpop.f32.mrb[0].mxu0
        %v1748 = vpop.f32.mrb[0].mxu0
        %1749 = vdwg.mxu0
        %1750 = vmatprep.subr.bf16.mxu0 %v1486
        %1751 = vmatpush1.bf16.msra.mxu0 %v1485
        %1752 = vmatprep.subr.bf16.mxu0 %v1488
        %1753 = vmatpush1.bf16.msra.mxu0 %v1487
        %1754 = vmatprep.subr.bf16.mxu0 %v1490
        %1755 = vmatpush1.bf16.msra.mxu0 %v1489
        %1756 = vmatprep.subr.bf16.mxu0 %v1492
        %1757 = vmatpush1.bf16.msra.mxu0 %v1491
        %1758 = vmatprep.subr.bf16.mxu0 %v1494
        %1759 = vmatpush1.bf16.msra.mxu0 %v1493
        %1760 = vmatprep.subr.bf16.mxu0 %v1496
        %1761 = vmatpush1.bf16.msra.mxu0 %v1495
        %1762 = vmatprep.subr.bf16.mxu0 %v1498
        %1763 = vmatpush1.bf16.msra.mxu0 %v1497
        %1764 = vmatprep.subr.bf16.mxu0 %v1500
        %1765 = vmatpush1.bf16.msra.mxu0 %v1499
        %1766 = vmatprep.subr.bf16.mxu0 %v1502
        %1767 = vmatpush1.bf16.msra.mxu0 %v1501
        %1768 = vmatprep.subr.bf16.mxu0 %v1504
        %1769 = vmatpush1.bf16.msra.mxu0 %v1503
        %1770 = vmatprep.subr.bf16.mxu0 %v1506
        %1771 = vmatpush1.bf16.msra.mxu0 %v1505
        %1772 = vmatprep.subr.bf16.mxu0 %v1508
        %1773 = vmatpush1.bf16.msra.mxu0 %v1507
        %1774 = vmatprep.subr.bf16.mxu0 %v1510
        %1775 = vmatpush1.bf16.msra.mxu0 %v1509
        %1776 = vmatprep.subr.bf16.mxu0 %v1512
        %1777 = vmatpush1.bf16.msra.mxu0 %v1511
        %1778 = vmatprep.subr.bf16.mxu0 %v1514
        %1779 = vmatpush1.bf16.msra.mxu0 %v1513
        %1780 = vmatprep.subr.bf16.mxu0 %v1516
        %1781 = vmatpush1.bf16.msra.mxu0 %v1515
        %1782 = vmatprep.mubr.bf16.mxu0 %v1052
        %1783 = vmatmul.mubr.bf16.gmra.mrb[0].mxu0 %v1051
        %v1784 = vpop.f32.mrb[0].mxu0
        %v1785 = vadd.f32 %v1744, %v1784
        %v1786 = vpop.f32.mrb[0].mxu0
        %v1787 = vadd.f32 %v1746, %v1786
        %v1788 = vpop.f32.mrb[0].mxu0
        %v1789 = vpop.f32.mrb[0].mxu0
        %1790 = vdwg.mxu0
        %1791 = vmatprep.subr.bf16.mxu0 %v1518
        %1792 = vmatpush1.bf16.msra.mxu0 %v1517
        %1793 = vmatprep.subr.bf16.mxu0 %v1520
        %1794 = vmatpush1.bf16.msra.mxu0 %v1519
        %1795 = vmatprep.subr.bf16.mxu0 %v1522
        %1796 = vmatpush1.bf16.msra.mxu0 %v1521
        %1797 = vmatprep.subr.bf16.mxu0 %v1524
        %1798 = vmatpush1.bf16.msra.mxu0 %v1523
        %1799 = vmatprep.subr.bf16.mxu0 %v1526
        %1800 = vmatpush1.bf16.msra.mxu0 %v1525
        %1801 = vmatprep.subr.bf16.mxu0 %v1528
        %1802 = vmatpush1.bf16.msra.mxu0 %v1527
        %1803 = vmatprep.subr.bf16.mxu0 %v1530
        %1804 = vmatpush1.bf16.msra.mxu0 %v1529
        %1805 = vmatprep.subr.bf16.mxu0 %v1532
        %1806 = vmatpush1.bf16.msra.mxu0 %v1531
        %1807 = vmatprep.subr.bf16.mxu0 %v1534
        %1808 = vmatpush1.bf16.msra.mxu0 %v1533
        %1809 = vmatprep.subr.bf16.mxu0 %v1536
        %1810 = vmatpush1.bf16.msra.mxu0 %v1535
        %1811 = vmatprep.subr.bf16.mxu0 %v1538
        %1812 = vmatpush1.bf16.msra.mxu0 %v1537
        %1813 = vmatprep.subr.bf16.mxu0 %v1540
        %1814 = vmatpush1.bf16.msra.mxu0 %v1539
        %1815 = vmatprep.subr.bf16.mxu0 %v1542
        %1816 = vmatpush1.bf16.msra.mxu0 %v1541
        %1817 = vmatprep.subr.bf16.mxu0 %v1544
        %1818 = vmatpush1.bf16.msra.mxu0 %v1543
        %1819 = vmatprep.subr.bf16.mxu0 %v1546
        %1820 = vmatpush1.bf16.msra.mxu0 %v1545
        %1821 = vmatprep.subr.bf16.mxu0 %v1548
        %1822 = vmatpush1.bf16.msra.mxu0 %v1547
        %1823 = vmatprep.mubr.bf16.mxu0 %v1054
        %1824 = vmatmul.mubr.bf16.gmra.mrb[0].mxu0 %v1053
        %v1825 = vpop.f32.mrb[0].mxu0
        %v1826 = vadd.f32 %v1785, %v1825
        %v1827 = vpop.f32.mrb[0].mxu0
        %v1828 = vadd.f32 %v1787, %v1827
        %v1829 = vpop.f32.mrb[0].mxu0
        %v1830 = vpop.f32.mrb[0].mxu0
        %1831 = vdwg.mxu0
        %1832 = vmatprep.subr.bf16.mxu0 %v1550
        %1833 = vmatpush1.bf16.msra.mxu0 %v1549
        %1834 = vmatprep.subr.bf16.mxu0 %v1552
        %1835 = vmatpush1.bf16.msra.mxu0 %v1551
        %1836 = vmatprep.subr.bf16.mxu0 %v1554
        %1837 = vmatpush1.bf16.msra.mxu0 %v1553
        %1838 = vmatprep.subr.bf16.mxu0 %v1556
        %1839 = vmatpush1.bf16.msra.mxu0 %v1555
        %1840 = vmatprep.subr.bf16.mxu0 %v1558
        %1841 = vmatpush1.bf16.msra.mxu0 %v1557
        %1842 = vmatprep.subr.bf16.mxu0 %v1560
        %1843 = vmatpush1.bf16.msra.mxu0 %v1559
        %1844 = vmatprep.subr.bf16.mxu0 %v1562
        %1845 = vmatpush1.bf16.msra.mxu0 %v1561
        %1846 = vmatprep.subr.bf16.mxu0 %v1564
        %1847 = vmatpush1.bf16.msra.mxu0 %v1563
        %1848 = vmatprep.subr.bf16.mxu0 %v1566
        %1849 = vmatpush1.bf16.msra.mxu0 %v1565
        %1850 = vmatprep.subr.bf16.mxu0 %v1568
        %1851 = vmatpush1.bf16.msra.mxu0 %v1567
        %1852 = vmatprep.subr.bf16.mxu0 %v1570
        %1853 = vmatpush1.bf16.msra.mxu0 %v1569
        %1854 = vmatprep.subr.bf16.mxu0 %v1572
        %1855 = vmatpush1.bf16.msra.mxu0 %v1571
        %1856 = vmatprep.subr.bf16.mxu0 %v1574
        %1857 = vmatpush1.bf16.msra.mxu0 %v1573
        %1858 = vmatprep.subr.bf16.mxu0 %v1576
        %1859 = vmatpush1.bf16.msra.mxu0 %v1575
        %1860 = vmatprep.subr.bf16.mxu0 %v1578
        %1861 = vmatpush1.bf16.msra.mxu0 %v1577
        %1862 = vmatprep.subr.bf16.mxu0 %v1580
        %1863 = vmatpush1.bf16.msra.mxu0 %v1579
        %1864 = vmatprep.mubr.bf16.mxu0 %v1056
        %1865 = vmatmul.mubr.bf16.gmra.mrb[0].mxu0 %v1055
        %v1866 = vpop.f32.mrb[0].mxu0
        %v1867 = vadd.f32 %v1826, %v1866
        %v1868 = vpop.f32.mrb[0].mxu0
        %v1869 = vadd.f32 %v1828, %v1868
        %v1870 = vpop.f32.mrb[0].mxu0
        %v1871 = vpop.f32.mrb[0].mxu0
        %1872 = vdwg.mxu0
        %v1873 = vld [vmem:[%s3] sm:$0x3]
        %v1875 = vlaneseq
        %v1876 = vshrl.u32 %v1875, 7
        %v1877 = vsub.s32 0, %v1876
        %v1878 = vrot.slane %v1873, %v1877
        %v1879 = vlaneseq
        %v1880 = vshrl.u32 %v1879, 7
        %v1881 = vsub.s32 1, %v1880
        %v1882 = vrot.slane %v1873, %v1881
        %v1887 = vrot.slane %v1867, 7
        %v1888 = vrot.slane %v1869, 7
        %vm1891 = vcmask 1040384
        %v1892 = vsel %vm1891, %v1878, %v1887
        %v1893 = vsel %vm1891, %v1882, %v1888
        %v1894 = vld [vmem:[%s4] sm:$0xff]
        %v1895 = vld [vmem:[%s4 + $0x8] sm:$0xff]
        %v1896 = vld [vmem:[%s4 + $0x10] sm:$0x1]
        %v1897 = vld [vmem:[%s4 + $0x18] sm:$0x1]
        %v1898 = vadd.f32 %v1892, %v1894
        %v1899 = vadd.f32 %v1893, %v1895
        %v1900 = vadd.f32 %v1887, %v1896
        %v1901 = vadd.f32 %v1888, %v1897
        %v1902 = vld [vmem:[#allocation7] sm:$0x3]
        %v1903 = vld [vmem:[#allocation8] sm:$0x3]
        %v1904 = vadd.f32 %v1898, %v1899
        %1905 = vadd.xlane.f32.xlu0 %v1904
        %v1906 = vpop.xlane.xlu0 %1905
        %v1907 = vsel %vm1891, %v1900, 0.0
        %v1908 = vsel %vm1891, %v1901, 0.0
        %v1909 = vadd.f32 %v1907, %v1908
        %1910 = vadd.xlane.f32.xlu0 %v1909
        %v1911 = vpop.xlane.xlu0 %1910
        %v1912 = vrcp.pop 256.0
        %v1913 = vmul.f32 %v1906, %v1912
        %v1914 = vmul.f32 %v1911, %v1912
        %v1915 = vsub.f32 %v1898, %v1913
        %v1916 = vsub.f32 %v1899, %v1913
        %v1917 = vsub.f32 %v1900, %v1914
        %v1918 = vsub.f32 %v1901, %v1914
        %v1919 = vmul.f32 %v1915, %v1915
        %v1920 = vmul.f32 %v1916, %v1916
        %v1921 = vmul.f32 %v1917, %v1917
        %v1922 = vmul.f32 %v1918, %v1918
        %v1923 = vadd.f32 %v1919, %v1920
        %1924 = vadd.xlane.f32.xlu0 %v1923
        %v1925 = vpop.xlane.xlu0 %1924
        %v1926 = vsel %vm1891, %v1921, 0.0
        %v1927 = vsel %vm1891, %v1922, 0.0
        %v1928 = vadd.f32 %v1926, %v1927
        %1929 = vadd.xlane.f32.xlu0 %v1928
        %v1930 = vpop.xlane.xlu0 %1929
        %v1931 = vrcp.pop 255.0
        %v1932 = vmul.f32 %v1925, %v1931
        %v1933 = vmul.f32 %v1930, %v1931
        %v1934 = vrsqrt.pop %v1932
        %v1935 = vmul.f32 %v1932, %v1934
        %vm1936 = vcmp.eq.f32.partialorder %v1932, inf
        %v1937 = vsel %vm1936, %v1932, %v1935
        %vm1938 = vcmp.eq.f32.partialorder %v1932, 0.0
        %v1939 = vand.u32 %v1932, 2147483648
        %v1940 = vsel %vm1938, %v1939, %v1937
        %v1941 = vrsqrt.pop %v1933
        %v1942 = vmul.f32 %v1933, %v1941
        %vm1943 = vcmp.eq.f32.partialorder %v1933, inf
        %v1944 = vsel %vm1943, %v1933, %v1942
        %vm1945 = vcmp.eq.f32.partialorder %v1933, 0.0
        %v1946 = vand.u32 %v1933, 2147483648
        %v1947 = vsel %vm1945, %v1946, %v1944
        %v1949 = vlaneseq
        %v1950 = vshrl.u32 %v1949, 7
        %v1951 = vsub.s32 0, %v1950
        %v1952 = vrot.slane %v1902, %v1951
        %v1953 = vlaneseq
        %v1954 = vshrl.u32 %v1953, 7
        %v1955 = vsub.s32 1, %v1954
        %v1956 = vrot.slane %v1902, %v1955
        %v1959 = vmul.f32 %v1952, %v1915
        %v1960 = vmul.f32 %v1956, %v1916
        %v1961 = vmul.f32 %v1952, %v1917
        %v1962 = vmul.f32 %v1956, %v1918
        %v1963 = vadd.f32 %v1940, 1e-06
        %v1964 = vadd.f32 %v1947, 1e-06
        %v1965 = vrcp.pop %v1963
        %v1966 = vmul.f32 %v1959, %v1965
        %v1967 = vmul.f32 %v1960, %v1965
        %v1968 = vrcp.pop %v1964
        %v1969 = vmul.f32 %v1961, %v1968
        %v1970 = vmul.f32 %v1962, %v1968
        %v1972 = vlaneseq
        %v1973 = vshrl.u32 %v1972, 7
        %v1974 = vsub.s32 0, %v1973
        %v1975 = vrot.slane %v1903, %v1974
        %v1976 = vlaneseq
        %v1977 = vshrl.u32 %v1976, 7
        %v1978 = vsub.s32 1, %v1977
        %v1979 = vrot.slane %v1903, %v1978
        %v1982 = vadd.f32 %v1966, %v1975
        %v1983 = vadd.f32 %v1967, %v1979
        %v1984 = vadd.f32 %v1969, %v1975
        %v1985 = vadd.f32 %v1970, %v1979
        %v1986 = vld [vmem:[#allocation10] sm:$0xff]
        %v1987 = vld [vmem:[#allocation10 + $0x8] sm:$0xff]
        %v1988 = vld [vmem:[#allocation10 + $0x10] sm:$0xff]
        %v1989 = vld [vmem:[#allocation10 + $0x18] sm:$0xff]
        %v1990 = vld [vmem:[#allocation10 + $0x20] sm:$0xff]
        %v1991 = vld [vmem:[#allocation10 + $0x28] sm:$0xff]
        %v1992 = vld [vmem:[#allocation10 + $0x30] sm:$0xff]
        %v1993 = vld [vmem:[#allocation10 + $0x38] sm:$0xff]
        %v1994 = vld [vmem:[#allocation10 + $0x40] sm:$0xff]
        %v1995 = vld [vmem:[#allocation10 + $0x48] sm:$0xff]
        %v1996 = vld [vmem:[#allocation10 + $0x50] sm:$0xff]
        %v1997 = vld [vmem:[#allocation10 + $0x58] sm:$0xff]
        %v1998 = vld [vmem:[#allocation10 + $0x60] sm:$0xff]
        %v1999 = vld [vmem:[#allocation10 + $0x68] sm:$0xff]
        %v2000 = vld [vmem:[#allocation10 + $0x70] sm:$0xff]
        %v2001 = vld [vmem:[#allocation10 + $0x78] sm:$0xff]
        %v2002 = vld [vmem:[#allocation10 + $0x80] sm:$0xff]
        %v2003 = vld [vmem:[#allocation10 + $0x88] sm:$0xff]
        %v2004 = vld [vmem:[#allocation10 + $0x90] sm:$0xff]
        %v2005 = vld [vmem:[#allocation10 + $0x98] sm:$0xff]
        %v2006 = vld [vmem:[#allocation10 + $0xa0] sm:$0xff]
        %v2007 = vld [vmem:[#allocation10 + $0xa8] sm:$0xff]
        %v2008 = vld [vmem:[#allocation10 + $0xb0] sm:$0xff]
        %v2009 = vld [vmem:[#allocation10 + $0xb8] sm:$0xff]
        %v2010 = vld [vmem:[#allocation10 + $0xc0] sm:$0xff]
        %v2011 = vld [vmem:[#allocation10 + $0xc8] sm:$0xff]
        %v2012 = vld [vmem:[#allocation10 + $0xd0] sm:$0xff]
        %v2013 = vld [vmem:[#allocation10 + $0xd8] sm:$0xff]
        %v2014 = vld [vmem:[#allocation10 + $0xe0] sm:$0xff]
        %v2015 = vld [vmem:[#allocation10 + $0xe8] sm:$0xff]
        %v2016 = vld [vmem:[#allocation10 + $0xf0] sm:$0xff]
        %v2017 = vld [vmem:[#allocation10 + $0xf8] sm:$0xff]
        %v2018 = vld [vmem:[#allocation10 + $0x100] sm:$0xff]
        %v2019 = vld [vmem:[#allocation10 + $0x108] sm:$0xff]
        %v2020 = vld [vmem:[#allocation10 + $0x110] sm:$0xff]
        %v2021 = vld [vmem:[#allocation10 + $0x118] sm:$0xff]
        %v2022 = vld [vmem:[#allocation10 + $0x120] sm:$0xff]
        %v2023 = vld [vmem:[#allocation10 + $0x128] sm:$0xff]
        %v2024 = vld [vmem:[#allocation10 + $0x130] sm:$0xff]
        %v2025 = vld [vmem:[#allocation10 + $0x138] sm:$0xff]
        %v2026 = vld [vmem:[#allocation10 + $0x140] sm:$0xff]
        %v2027 = vld [vmem:[#allocation10 + $0x148] sm:$0xff]
        %v2028 = vld [vmem:[#allocation10 + $0x150] sm:$0xff]
        %v2029 = vld [vmem:[#allocation10 + $0x158] sm:$0xff]
        %v2030 = vld [vmem:[#allocation10 + $0x160] sm:$0xff]
        %v2031 = vld [vmem:[#allocation10 + $0x168] sm:$0xff]
        %v2032 = vld [vmem:[#allocation10 + $0x170] sm:$0xff]
        %v2033 = vld [vmem:[#allocation10 + $0x178] sm:$0xff]
        %v2034 = vld [vmem:[#allocation10 + $0x180] sm:$0xff]
        %v2035 = vld [vmem:[#allocation10 + $0x188] sm:$0xff]
        %v2036 = vld [vmem:[#allocation10 + $0x190] sm:$0xff]
        %v2037 = vld [vmem:[#allocation10 + $0x198] sm:$0xff]
        %v2038 = vld [vmem:[#allocation10 + $0x1a0] sm:$0xff]
        %v2039 = vld [vmem:[#allocation10 + $0x1a8] sm:$0xff]
        %v2040 = vld [vmem:[#allocation10 + $0x1b0] sm:$0xff]
        %v2041 = vld [vmem:[#allocation10 + $0x1b8] sm:$0xff]
        %v2042 = vld [vmem:[#allocation10 + $0x1c0] sm:$0xff]
        %v2043 = vld [vmem:[#allocation10 + $0x1c8] sm:$0xff]
        %v2044 = vld [vmem:[#allocation10 + $0x1d0] sm:$0xff]
        %v2045 = vld [vmem:[#allocation10 + $0x1d8] sm:$0xff]
        %v2046 = vld [vmem:[#allocation10 + $0x1e0] sm:$0xff]
        %v2047 = vld [vmem:[#allocation10 + $0x1e8] sm:$0xff]
        %v2048 = vld [vmem:[#allocation10 + $0x1f0] sm:$0xff]
        %v2049 = vld [vmem:[#allocation10 + $0x1f8] sm:$0xff]
        %v2050 = vld [vmem:[#allocation10 + $0x200] sm:$0xff]
        %v2051 = vld [vmem:[#allocation10 + $0x208] sm:$0xff]
        %v2052 = vld [vmem:[#allocation10 + $0x210] sm:$0xff]
        %v2053 = vld [vmem:[#allocation10 + $0x218] sm:$0xff]
        %v2054 = vld [vmem:[#allocation10 + $0x220] sm:$0xff]
        %v2055 = vld [vmem:[#allocation10 + $0x228] sm:$0xff]
        %v2056 = vld [vmem:[#allocation10 + $0x230] sm:$0xff]
        %v2057 = vld [vmem:[#allocation10 + $0x238] sm:$0xff]
        %v2058 = vld [vmem:[#allocation10 + $0x240] sm:$0xff]
        %v2059 = vld [vmem:[#allocation10 + $0x248] sm:$0xff]
        %v2060 = vld [vmem:[#allocation10 + $0x250] sm:$0xff]
        %v2061 = vld [vmem:[#allocation10 + $0x258] sm:$0xff]
        %v2062 = vld [vmem:[#allocation10 + $0x260] sm:$0xff]
        %v2063 = vld [vmem:[#allocation10 + $0x268] sm:$0xff]
        %v2064 = vld [vmem:[#allocation10 + $0x270] sm:$0xff]
        %v2065 = vld [vmem:[#allocation10 + $0x278] sm:$0xff]
        %v2066 = vld [vmem:[#allocation10 + $0x280] sm:$0xff]
        %v2067 = vld [vmem:[#allocation10 + $0x288] sm:$0xff]
        %v2068 = vld [vmem:[#allocation10 + $0x290] sm:$0xff]
        %v2069 = vld [vmem:[#allocation10 + $0x298] sm:$0xff]
        %v2070 = vld [vmem:[#allocation10 + $0x2a0] sm:$0xff]
        %v2071 = vld [vmem:[#allocation10 + $0x2a8] sm:$0xff]
        %v2072 = vld [vmem:[#allocation10 + $0x2b0] sm:$0xff]
        %v2073 = vld [vmem:[#allocation10 + $0x2b8] sm:$0xff]
        %v2074 = vld [vmem:[#allocation10 + $0x2c0] sm:$0xff]
        %v2075 = vld [vmem:[#allocation10 + $0x2c8] sm:$0xff]
        %v2076 = vld [vmem:[#allocation10 + $0x2d0] sm:$0xff]
        %v2077 = vld [vmem:[#allocation10 + $0x2d8] sm:$0xff]
        %v2078 = vld [vmem:[#allocation10 + $0x2e0] sm:$0xff]
        %v2079 = vld [vmem:[#allocation10 + $0x2e8] sm:$0xff]
        %v2080 = vld [vmem:[#allocation10 + $0x2f0] sm:$0xff]
        %v2081 = vld [vmem:[#allocation10 + $0x2f8] sm:$0xff]
        %v2082 = vpack.c.bf16 %v1984, %v1982
        %v2083 = vpack.c.bf16 %v1985, %v1983
        %v2084 = vld [vmem:[#allocation11] sm:$0x3f]
        %v2086 = vlaneseq
        %v2087 = vshrl.u32 %v2086, 7
        %v2088 = vsub.s32 0, %v2087
        %v2089 = vrot.slane %v2084, %v2088
        %v2090 = vlaneseq
        %v2091 = vshrl.u32 %v2090, 7
        %v2092 = vsub.s32 1, %v2091
        %v2093 = vrot.slane %v2084, %v2092
        %v2094 = vlaneseq
        %v2095 = vshrl.u32 %v2094, 7
        %v2096 = vsub.s32 2, %v2095
        %v2097 = vrot.slane %v2084, %v2096
        %v2098 = vlaneseq
        %v2099 = vshrl.u32 %v2098, 7
        %v2100 = vsub.s32 3, %v2099
        %v2101 = vrot.slane %v2084, %v2100
        %v2102 = vlaneseq
        %v2103 = vshrl.u32 %v2102, 7
        %v2104 = vsub.s32 4, %v2103
        %v2105 = vrot.slane %v2084, %v2104
        %v2106 = vlaneseq
        %v2107 = vshrl.u32 %v2106, 7
        %v2108 = vsub.s32 5, %v2107
        %v2109 = vrot.slane %v2084, %v2108
        %v2212 = vunpack.c.l.b16 %v1986
        %v2213 = vunpack.c.h.b16 %v1986
        %v2214 = vunpack.c.l.b16 %v1987
        %v2215 = vunpack.c.h.b16 %v1987
        %v2216 = vunpack.c.l.b16 %v1988
        %v2217 = vunpack.c.h.b16 %v1988
        %v2218 = vunpack.c.l.b16 %v1989
        %v2219 = vunpack.c.h.b16 %v1989
        %v2220 = vunpack.c.l.b16 %v1990
        %v2221 = vunpack.c.h.b16 %v1990
        %v2222 = vunpack.c.l.b16 %v1991
        %v2223 = vunpack.c.h.b16 %v1991
        %v2224 = vunpack.c.l.b16 %v1992
        %v2225 = vunpack.c.h.b16 %v1992
        %v2226 = vunpack.c.l.b16 %v1993
        %v2227 = vunpack.c.h.b16 %v1993
        %v2228 = vunpack.c.l.b16 %v1994
        %v2229 = vunpack.c.h.b16 %v1994
        %v2230 = vunpack.c.l.b16 %v1995
        %v2231 = vunpack.c.h.b16 %v1995
        %v2232 = vunpack.c.l.b16 %v1996
        %v2233 = vunpack.c.h.b16 %v1996
        %v2234 = vunpack.c.l.b16 %v1997
        %v2235 = vunpack.c.h.b16 %v1997
        %v2236 = vunpack.c.l.b16 %v1998
        %v2237 = vunpack.c.h.b16 %v1998
        %v2238 = vunpack.c.l.b16 %v1999
        %v2239 = vunpack.c.h.b16 %v1999
        %v2240 = vunpack.c.l.b16 %v2000
        %v2241 = vunpack.c.h.b16 %v2000
        %v2242 = vunpack.c.l.b16 %v2001
        %v2243 = vunpack.c.h.b16 %v2001
        %v2244 = vunpack.c.l.b16 %v2002
        %v2245 = vunpack.c.h.b16 %v2002
        %v2246 = vunpack.c.l.b16 %v2003
        %v2247 = vunpack.c.h.b16 %v2003
        %v2248 = vunpack.c.l.b16 %v2004
        %v2249 = vunpack.c.h.b16 %v2004
        %v2250 = vunpack.c.l.b16 %v2005
        %v2251 = vunpack.c.h.b16 %v2005
        %v2252 = vunpack.c.l.b16 %v2006
        %v2253 = vunpack.c.h.b16 %v2006
        %v2254 = vunpack.c.l.b16 %v2007
        %v2255 = vunpack.c.h.b16 %v2007
        %v2256 = vunpack.c.l.b16 %v2008
        %v2257 = vunpack.c.h.b16 %v2008
        %v2258 = vunpack.c.l.b16 %v2009
        %v2259 = vunpack.c.h.b16 %v2009
        %v2260 = vunpack.c.l.b16 %v2010
        %v2261 = vunpack.c.h.b16 %v2010
        %v2262 = vunpack.c.l.b16 %v2011
        %v2263 = vunpack.c.h.b16 %v2011
        %v2264 = vunpack.c.l.b16 %v2012
        %v2265 = vunpack.c.h.b16 %v2012
        %v2266 = vunpack.c.l.b16 %v2013
        %v2267 = vunpack.c.h.b16 %v2013
        %v2268 = vunpack.c.l.b16 %v2014
        %v2269 = vunpack.c.h.b16 %v2014
        %v2270 = vunpack.c.l.b16 %v2015
        %v2271 = vunpack.c.h.b16 %v2015
        %v2272 = vunpack.c.l.b16 %v2016
        %v2273 = vunpack.c.h.b16 %v2016
        %v2274 = vunpack.c.l.b16 %v2017
        %v2275 = vunpack.c.h.b16 %v2017
        %v2276 = vunpack.c.l.b16 %v2018
        %v2277 = vunpack.c.h.b16 %v2018
        %v2278 = vunpack.c.l.b16 %v2019
        %v2279 = vunpack.c.h.b16 %v2019
        %v2280 = vunpack.c.l.b16 %v2020
        %v2281 = vunpack.c.h.b16 %v2020
        %v2282 = vunpack.c.l.b16 %v2021
        %v2283 = vunpack.c.h.b16 %v2021
        %v2284 = vunpack.c.l.b16 %v2022
        %v2285 = vunpack.c.h.b16 %v2022
        %v2286 = vunpack.c.l.b16 %v2023
        %v2287 = vunpack.c.h.b16 %v2023
        %v2288 = vunpack.c.l.b16 %v2024
        %v2289 = vunpack.c.h.b16 %v2024
        %v2290 = vunpack.c.l.b16 %v2025
        %v2291 = vunpack.c.h.b16 %v2025
        %v2292 = vunpack.c.l.b16 %v2026
        %v2293 = vunpack.c.h.b16 %v2026
        %v2294 = vunpack.c.l.b16 %v2027
        %v2295 = vunpack.c.h.b16 %v2027
        %v2296 = vunpack.c.l.b16 %v2028
        %v2297 = vunpack.c.h.b16 %v2028
        %v2298 = vunpack.c.l.b16 %v2029
        %v2299 = vunpack.c.h.b16 %v2029
        %v2300 = vunpack.c.l.b16 %v2030
        %v2301 = vunpack.c.h.b16 %v2030
        %v2302 = vunpack.c.l.b16 %v2031
        %v2303 = vunpack.c.h.b16 %v2031
        %v2304 = vunpack.c.l.b16 %v2032
        %v2305 = vunpack.c.h.b16 %v2032
        %v2306 = vunpack.c.l.b16 %v2033
        %v2307 = vunpack.c.h.b16 %v2033
        %v2308 = vunpack.c.l.b16 %v2034
        %v2309 = vunpack.c.h.b16 %v2034
        %v2310 = vunpack.c.l.b16 %v2035
        %v2311 = vunpack.c.h.b16 %v2035
        %v2312 = vunpack.c.l.b16 %v2036
        %v2313 = vunpack.c.h.b16 %v2036
        %v2314 = vunpack.c.l.b16 %v2037
        %v2315 = vunpack.c.h.b16 %v2037
        %v2316 = vunpack.c.l.b16 %v2038
        %v2317 = vunpack.c.h.b16 %v2038
        %v2318 = vunpack.c.l.b16 %v2039
        %v2319 = vunpack.c.h.b16 %v2039
        %v2320 = vunpack.c.l.b16 %v2040
        %v2321 = vunpack.c.h.b16 %v2040
        %v2322 = vunpack.c.l.b16 %v2041
        %v2323 = vunpack.c.h.b16 %v2041
        %v2324 = vunpack.c.l.b16 %v2042
        %v2325 = vunpack.c.h.b16 %v2042
        %v2326 = vunpack.c.l.b16 %v2043
        %v2327 = vunpack.c.h.b16 %v2043
        %v2328 = vunpack.c.l.b16 %v2044
        %v2329 = vunpack.c.h.b16 %v2044
        %v2330 = vunpack.c.l.b16 %v2045
        %v2331 = vunpack.c.h.b16 %v2045
        %v2332 = vunpack.c.l.b16 %v2046
        %v2333 = vunpack.c.h.b16 %v2046
        %v2334 = vunpack.c.l.b16 %v2047
        %v2335 = vunpack.c.h.b16 %v2047
        %v2336 = vunpack.c.l.b16 %v2048
        %v2337 = vunpack.c.h.b16 %v2048
        %v2338 = vunpack.c.l.b16 %v2049
        %v2339 = vunpack.c.h.b16 %v2049
        %v2340 = vunpack.c.l.b16 %v2050
        %v2341 = vunpack.c.h.b16 %v2050
        %v2342 = vunpack.c.l.b16 %v2051
        %v2343 = vunpack.c.h.b16 %v2051
        %v2344 = vunpack.c.l.b16 %v2052
        %v2345 = vunpack.c.h.b16 %v2052
        %v2346 = vunpack.c.l.b16 %v2053
        %v2347 = vunpack.c.h.b16 %v2053
        %v2348 = vunpack.c.l.b16 %v2054
        %v2349 = vunpack.c.h.b16 %v2054
        %v2350 = vunpack.c.l.b16 %v2055
        %v2351 = vunpack.c.h.b16 %v2055
        %v2352 = vunpack.c.l.b16 %v2056
        %v2353 = vunpack.c.h.b16 %v2056
        %v2354 = vunpack.c.l.b16 %v2057
        %v2355 = vunpack.c.h.b16 %v2057
        %v2356 = vunpack.c.l.b16 %v2058
        %v2357 = vunpack.c.h.b16 %v2058
        %v2358 = vunpack.c.l.b16 %v2059
        %v2359 = vunpack.c.h.b16 %v2059
        %v2360 = vunpack.c.l.b16 %v2060
        %v2361 = vunpack.c.h.b16 %v2060
        %v2362 = vunpack.c.l.b16 %v2061
        %v2363 = vunpack.c.h.b16 %v2061
        %v2364 = vunpack.c.l.b16 %v2062
        %v2365 = vunpack.c.h.b16 %v2062
        %v2366 = vunpack.c.l.b16 %v2063
        %v2367 = vunpack.c.h.b16 %v2063
        %v2368 = vunpack.c.l.b16 %v2064
        %v2369 = vunpack.c.h.b16 %v2064
        %v2370 = vunpack.c.l.b16 %v2065
        %v2371 = vunpack.c.h.b16 %v2065
        %v2372 = vunpack.c.l.b16 %v2066
        %v2373 = vunpack.c.h.b16 %v2066
        %v2374 = vunpack.c.l.b16 %v2067
        %v2375 = vunpack.c.h.b16 %v2067
        %v2376 = vunpack.c.l.b16 %v2068
        %v2377 = vunpack.c.h.b16 %v2068
        %v2378 = vunpack.c.l.b16 %v2069
        %v2379 = vunpack.c.h.b16 %v2069
        %v2380 = vunpack.c.l.b16 %v2070
        %v2381 = vunpack.c.h.b16 %v2070
        %v2382 = vunpack.c.l.b16 %v2071
        %v2383 = vunpack.c.h.b16 %v2071
        %v2384 = vunpack.c.l.b16 %v2072
        %v2385 = vunpack.c.h.b16 %v2072
        %v2386 = vunpack.c.l.b16 %v2073
        %v2387 = vunpack.c.h.b16 %v2073
        %v2388 = vunpack.c.l.b16 %v2074
        %v2389 = vunpack.c.h.b16 %v2074
        %v2390 = vunpack.c.l.b16 %v2075
        %v2391 = vunpack.c.h.b16 %v2075
        %v2392 = vunpack.c.l.b16 %v2076
        %v2393 = vunpack.c.h.b16 %v2076
        %v2394 = vunpack.c.l.b16 %v2077
        %v2395 = vunpack.c.h.b16 %v2077
        %v2396 = vunpack.c.l.b16 %v2078
        %v2397 = vunpack.c.h.b16 %v2078
        %v2398 = vunpack.c.l.b16 %v2079
        %v2399 = vunpack.c.h.b16 %v2079
        %v2400 = vunpack.c.l.b16 %v2080
        %v2401 = vunpack.c.h.b16 %v2080
        %v2402 = vunpack.c.l.b16 %v2081
        %v2403 = vunpack.c.h.b16 %v2081
        %v2404 = vpack.c.b16 %v2218, %v2212
        %v2405 = vpack.c.b16 %v2219, %v2213
        %v2406 = vpack.c.b16 %v2220, %v2214
        %v2407 = vpack.c.b16 %v2221, %v2215
        %v2408 = vpack.c.b16 %v2222, %v2216
        %v2409 = vpack.c.b16 %v2223, %v2217
        %v2410 = vpack.c.b16 %v2230, %v2224
        %v2411 = vpack.c.b16 %v2231, %v2225
        %v2412 = vpack.c.b16 %v2232, %v2226
        %v2413 = vpack.c.b16 %v2233, %v2227
        %v2414 = vpack.c.b16 %v2234, %v2228
        %v2415 = vpack.c.b16 %v2235, %v2229
        %v2416 = vpack.c.b16 %v2242, %v2236
        %v2417 = vpack.c.b16 %v2243, %v2237
        %v2418 = vpack.c.b16 %v2244, %v2238
        %v2419 = vpack.c.b16 %v2245, %v2239
        %v2420 = vpack.c.b16 %v2246, %v2240
        %v2421 = vpack.c.b16 %v2247, %v2241
        %v2422 = vpack.c.b16 %v2254, %v2248
        %v2423 = vpack.c.b16 %v2255, %v2249
        %v2424 = vpack.c.b16 %v2256, %v2250
        %v2425 = vpack.c.b16 %v2257, %v2251
        %v2426 = vpack.c.b16 %v2258, %v2252
        %v2427 = vpack.c.b16 %v2259, %v2253
        %v2428 = vpack.c.b16 %v2266, %v2260
        %v2429 = vpack.c.b16 %v2267, %v2261
        %v2430 = vpack.c.b16 %v2268, %v2262
        %v2431 = vpack.c.b16 %v2269, %v2263
        %v2432 = vpack.c.b16 %v2270, %v2264
        %v2433 = vpack.c.b16 %v2271, %v2265
        %v2434 = vpack.c.b16 %v2278, %v2272
        %v2435 = vpack.c.b16 %v2279, %v2273
        %v2436 = vpack.c.b16 %v2280, %v2274
        %v2437 = vpack.c.b16 %v2281, %v2275
        %v2438 = vpack.c.b16 %v2282, %v2276
        %v2439 = vpack.c.b16 %v2283, %v2277
        %v2440 = vpack.c.b16 %v2290, %v2284
        %v2441 = vpack.c.b16 %v2291, %v2285
        %v2442 = vpack.c.b16 %v2292, %v2286
        %v2443 = vpack.c.b16 %v2293, %v2287
        %v2444 = vpack.c.b16 %v2294, %v2288
        %v2445 = vpack.c.b16 %v2295, %v2289
        %v2446 = vpack.c.b16 %v2302, %v2296
        %v2447 = vpack.c.b16 %v2303, %v2297
        %v2448 = vpack.c.b16 %v2304, %v2298
        %v2449 = vpack.c.b16 %v2305, %v2299
        %v2450 = vpack.c.b16 %v2306, %v2300
        %v2451 = vpack.c.b16 %v2307, %v2301
        %v2452 = vpack.c.b16 %v2314, %v2308
        %v2453 = vpack.c.b16 %v2315, %v2309
        %v2454 = vpack.c.b16 %v2316, %v2310
        %v2455 = vpack.c.b16 %v2317, %v2311
        %v2456 = vpack.c.b16 %v2318, %v2312
        %v2457 = vpack.c.b16 %v2319, %v2313
        %v2458 = vpack.c.b16 %v2326, %v2320
        %v2459 = vpack.c.b16 %v2327, %v2321
        %v2460 = vpack.c.b16 %v2328, %v2322
        %v2461 = vpack.c.b16 %v2329, %v2323
        %v2462 = vpack.c.b16 %v2330, %v2324
        %v2463 = vpack.c.b16 %v2331, %v2325
        %v2464 = vpack.c.b16 %v2338, %v2332
        %v2465 = vpack.c.b16 %v2339, %v2333
        %v2466 = vpack.c.b16 %v2340, %v2334
        %v2467 = vpack.c.b16 %v2341, %v2335
        %v2468 = vpack.c.b16 %v2342, %v2336
        %v2469 = vpack.c.b16 %v2343, %v2337
        %v2470 = vpack.c.b16 %v2350, %v2344
        %v2471 = vpack.c.b16 %v2351, %v2345
        %v2472 = vpack.c.b16 %v2352, %v2346
        %v2473 = vpack.c.b16 %v2353, %v2347
        %v2474 = vpack.c.b16 %v2354, %v2348
        %v2475 = vpack.c.b16 %v2355, %v2349
        %v2476 = vpack.c.b16 %v2362, %v2356
        %v2477 = vpack.c.b16 %v2363, %v2357
        %v2478 = vpack.c.b16 %v2364, %v2358
        %v2479 = vpack.c.b16 %v2365, %v2359
        %v2480 = vpack.c.b16 %v2366, %v2360
        %v2481 = vpack.c.b16 %v2367, %v2361
        %v2482 = vpack.c.b16 %v2374, %v2368
        %v2483 = vpack.c.b16 %v2375, %v2369
        %v2484 = vpack.c.b16 %v2376, %v2370
        %v2485 = vpack.c.b16 %v2377, %v2371
        %v2486 = vpack.c.b16 %v2378, %v2372
        %v2487 = vpack.c.b16 %v2379, %v2373
        %v2488 = vpack.c.b16 %v2386, %v2380
        %v2489 = vpack.c.b16 %v2387, %v2381
        %v2490 = vpack.c.b16 %v2388, %v2382
        %v2491 = vpack.c.b16 %v2389, %v2383
        %v2492 = vpack.c.b16 %v2390, %v2384
        %v2493 = vpack.c.b16 %v2391, %v2385
        %v2494 = vpack.c.b16 %v2398, %v2392
        %v2495 = vpack.c.b16 %v2399, %v2393
        %v2496 = vpack.c.b16 %v2400, %v2394
        %v2497 = vpack.c.b16 %v2401, %v2395
        %v2498 = vpack.c.b16 %v2402, %v2396
        %v2499 = vpack.c.b16 %v2403, %v2397
        %2596 = vmatprep.subr.bf16.mxu0 %v2405
        %2597 = vmatpush1.bf16.msra.mxu0 %v2404
        %2598 = vmatprep.subr.bf16.mxu0 %v2411
        %2599 = vmatpush1.bf16.msra.mxu0 %v2410
        %2600 = vmatprep.subr.bf16.mxu0 %v2417
        %2601 = vmatpush1.bf16.msra.mxu0 %v2416
        %2602 = vmatprep.subr.bf16.mxu0 %v2423
        %2603 = vmatpush1.bf16.msra.mxu0 %v2422
        %2604 = vmatprep.subr.bf16.mxu0 %v2429
        %2605 = vmatpush1.bf16.msra.mxu0 %v2428
        %2606 = vmatprep.subr.bf16.mxu0 %v2435
        %2607 = vmatpush1.bf16.msra.mxu0 %v2434
        %2608 = vmatprep.subr.bf16.mxu0 %v2441
        %2609 = vmatpush1.bf16.msra.mxu0 %v2440
        %2610 = vmatprep.subr.bf16.mxu0 %v2447
        %2611 = vmatpush1.bf16.msra.mxu0 %v2446
        %2612 = vmatprep.subr.bf16.mxu0 %v2453
        %2613 = vmatpush1.bf16.msra.mxu0 %v2452
        %2614 = vmatprep.subr.bf16.mxu0 %v2459
        %2615 = vmatpush1.bf16.msra.mxu0 %v2458
        %2616 = vmatprep.subr.bf16.mxu0 %v2465
        %2617 = vmatpush1.bf16.msra.mxu0 %v2464
        %2618 = vmatprep.subr.bf16.mxu0 %v2471
        %2619 = vmatpush1.bf16.msra.mxu0 %v2470
        %2620 = vmatprep.subr.bf16.mxu0 %v2477
        %2621 = vmatpush1.bf16.msra.mxu0 %v2476
        %2622 = vmatprep.subr.bf16.mxu0 %v2483
        %2623 = vmatpush1.bf16.msra.mxu0 %v2482
        %2624 = vmatprep.subr.bf16.mxu0 %v2489
        %2625 = vmatpush1.bf16.msra.mxu0 %v2488
        %2626 = vmatprep.subr.bf16.mxu0 %v2495
        %2627 = vmatpush1.bf16.msra.mxu0 %v2494
        %2628 = vmatprep.mubr.bf16.mxu0 %v2083
        %2629 = vmatmul.mubr.bf16.gmra.mrb[0].mxu0 %v2082
        %v2630 = vpop.f32.mrb[0].mxu0
        %v2631 = vadd.f32 %v2089, %v2630
        %v2632 = vpop.f32.mrb[0].mxu0
        %v2633 = vadd.f32 %v2093, %v2632
        %v2634 = vpop.f32.mrb[0].mxu0
        %v2635 = vadd.f32 %v2089, %v2634
        %v2636 = vpop.f32.mrb[0].mxu0
        %v2637 = vadd.f32 %v2093, %v2636
        %2638 = vdwg.mxu0
        %2639 = vmatprep.subr.bf16.mxu0 %v2407
        %2640 = vmatpush1.bf16.msra.mxu0 %v2406
        %2641 = vmatprep.subr.bf16.mxu0 %v2413
        %2642 = vmatpush1.bf16.msra.mxu0 %v2412
        %2643 = vmatprep.subr.bf16.mxu0 %v2419
        %2644 = vmatpush1.bf16.msra.mxu0 %v2418
        %2645 = vmatprep.subr.bf16.mxu0 %v2425
        %2646 = vmatpush1.bf16.msra.mxu0 %v2424
        %2647 = vmatprep.subr.bf16.mxu0 %v2431
        %2648 = vmatpush1.bf16.msra.mxu0 %v2430
        %2649 = vmatprep.subr.bf16.mxu0 %v2437
        %2650 = vmatpush1.bf16.msra.mxu0 %v2436
        %2651 = vmatprep.subr.bf16.mxu0 %v2443
        %2652 = vmatpush1.bf16.msra.mxu0 %v2442
        %2653 = vmatprep.subr.bf16.mxu0 %v2449
        %2654 = vmatpush1.bf16.msra.mxu0 %v2448
        %2655 = vmatprep.subr.bf16.mxu0 %v2455
        %2656 = vmatpush1.bf16.msra.mxu0 %v2454
        %2657 = vmatprep.subr.bf16.mxu0 %v2461
        %2658 = vmatpush1.bf16.msra.mxu0 %v2460
        %2659 = vmatprep.subr.bf16.mxu0 %v2467
        %2660 = vmatpush1.bf16.msra.mxu0 %v2466
        %2661 = vmatprep.subr.bf16.mxu0 %v2473
        %2662 = vmatpush1.bf16.msra.mxu0 %v2472
        %2663 = vmatprep.subr.bf16.mxu0 %v2479
        %2664 = vmatpush1.bf16.msra.mxu0 %v2478
        %2665 = vmatprep.subr.bf16.mxu0 %v2485
        %2666 = vmatpush1.bf16.msra.mxu0 %v2484
        %2667 = vmatprep.subr.bf16.mxu0 %v2491
        %2668 = vmatpush1.bf16.msra.mxu0 %v2490
        %2669 = vmatprep.subr.bf16.mxu0 %v2497
        %2670 = vmatpush1.bf16.msra.mxu0 %v2496
        %2671 = vmatprep.mubr.bf16.mxu0 %v2083
        %2672 = vmatmul.mubr.bf16.gmra.mrb[0].mxu0 %v2082
        %v2673 = vpop.f32.mrb[0].mxu0
        %v2674 = vadd.f32 %v2097, %v2673
        %v2675 = vpop.f32.mrb[0].mxu0
        %v2676 = vadd.f32 %v2101, %v2675
        %v2677 = vpop.f32.mrb[0].mxu0
        %v2678 = vadd.f32 %v2097, %v2677
        %v2679 = vpop.f32.mrb[0].mxu0
        %v2680 = vadd.f32 %v2101, %v2679
        %2681 = vdwg.mxu0
        %2682 = vmatprep.subr.bf16.mxu0 %v2409
        %2683 = vmatpush1.bf16.msra.mxu0 %v2408
        %2684 = vmatprep.subr.bf16.mxu0 %v2415
        %2685 = vmatpush1.bf16.msra.mxu0 %v2414
        %2686 = vmatprep.subr.bf16.mxu0 %v2421
        %2687 = vmatpush1.bf16.msra.mxu0 %v2420
        %2688 = vmatprep.subr.bf16.mxu0 %v2427
        %2689 = vmatpush1.bf16.msra.mxu0 %v2426
        %2690 = vmatprep.subr.bf16.mxu0 %v2433
        %2691 = vmatpush1.bf16.msra.mxu0 %v2432
        %2692 = vmatprep.subr.bf16.mxu0 %v2439
        %2693 = vmatpush1.bf16.msra.mxu0 %v2438
        %2694 = vmatprep.subr.bf16.mxu0 %v2445
        %2695 = vmatpush1.bf16.msra.mxu0 %v2444
        %2696 = vmatprep.subr.bf16.mxu0 %v2451
        %2697 = vmatpush1.bf16.msra.mxu0 %v2450
        %2698 = vmatprep.subr.bf16.mxu0 %v2457
        %2699 = vmatpush1.bf16.msra.mxu0 %v2456
        %2700 = vmatprep.subr.bf16.mxu0 %v2463
        %2701 = vmatpush1.bf16.msra.mxu0 %v2462
        %2702 = vmatprep.subr.bf16.mxu0 %v2469
        %2703 = vmatpush1.bf16.msra.mxu0 %v2468
        %2704 = vmatprep.subr.bf16.mxu0 %v2475
        %2705 = vmatpush1.bf16.msra.mxu0 %v2474
        %2706 = vmatprep.subr.bf16.mxu0 %v2481
        %2707 = vmatpush1.bf16.msra.mxu0 %v2480
        %2708 = vmatprep.subr.bf16.mxu0 %v2487
        %2709 = vmatpush1.bf16.msra.mxu0 %v2486
        %2710 = vmatprep.subr.bf16.mxu0 %v2493
        %2711 = vmatpush1.bf16.msra.mxu0 %v2492
        %2712 = vmatprep.subr.bf16.mxu0 %v2499
        %2713 = vmatpush1.bf16.msra.mxu0 %v2498
        %2714 = vmatprep.mubr.bf16.mxu0 %v2083
        %2715 = vmatmul.mubr.bf16.gmra.mrb[0].mxu0 %v2082
        %v2716 = vpop.f32.mrb[0].mxu0
        %v2717 = vadd.f32 %v2105, %v2716
        %v2718 = vpop.f32.mrb[0].mxu0
        %v2719 = vadd.f32 %v2109, %v2718
        %v2720 = vpop.f32.mrb[0].mxu0
        %v2721 = vadd.f32 %v2105, %v2720
        %v2722 = vpop.f32.mrb[0].mxu0
        %v2723 = vadd.f32 %v2109, %v2722
        %2724 = vdwg.mxu0
        %v2725 = vpack.c.bf16 %v2635, %v2631
        %v2726 = vpack.c.bf16 %v2637, %v2633
        %v2727 = vpack.c.bf16 %v2678, %v2674
        %v2728 = vpack.c.bf16 %v2680, %v2676
        %2729 = vmatprep.subr.bf16.mxu0 %v2728
        %2730 = vmatpush1.bf16.xpose.msra.mxu0 %v2727
        %2731 = vmatprep.subr.bf16.mxu0 0
        %2732 = vmatpush1.bf16.xpose.msra.mxu0 0
        %2733 = vmatprep.subr.bf16.mxu0 0
        %2734 = vmatpush1.bf16.xpose.msra.mxu0 0
        %2735 = vmatprep.subr.bf16.mxu0 0
        %2736 = vmatpush1.bf16.xpose.msra.mxu0 0
        %2737 = vmatprep.subr.bf16.mxu0 0
        %2738 = vmatpush1.bf16.xpose.msra.mxu0 0
        %2739 = vmatprep.subr.bf16.mxu0 0
        %2740 = vmatpush1.bf16.xpose.msra.mxu0 0
        %2741 = vmatprep.subr.bf16.mxu0 0
        %2742 = vmatpush1.bf16.xpose.msra.mxu0 0
        %2743 = vmatprep.subr.bf16.mxu0 0
        %2744 = vmatpush1.bf16.xpose.msra.mxu0 0
        %2745 = vmatprep.subr.bf16.mxu0 0
        %2746 = vmatpush1.bf16.xpose.msra.mxu0 0
        %2747 = vmatprep.subr.bf16.mxu0 0
        %2748 = vmatpush1.bf16.xpose.msra.mxu0 0
        %2749 = vmatprep.subr.bf16.mxu0 0
        %2750 = vmatpush1.bf16.xpose.msra.mxu0 0
        %2751 = vmatprep.subr.bf16.mxu0 0
        %2752 = vmatpush1.bf16.xpose.msra.mxu0 0
        %2753 = vmatprep.subr.bf16.mxu0 0
        %2754 = vmatpush1.bf16.xpose.msra.mxu0 0
        %2755 = vmatprep.subr.bf16.mxu0 0
        %2756 = vmatpush1.bf16.xpose.msra.mxu0 0
        %2757 = vmatprep.subr.bf16.mxu0 0
        %2758 = vmatpush1.bf16.xpose.msra.mxu0 0
        %2759 = vmatprep.subr.bf16.mxu0 0
        %2760 = vmatpush1.bf16.xpose.msra.mxu0 0
        %2761 = vmatprep.mubr.bf16.mxu0 %v2726
        %2762 = vmatmul.mubr.bf16.gmra.mrb[0].mxu0 %v2725
        %v2763 = vpop.f32.mrb[0].mxu0
        %v2764 = vadd.f32 0.0, %v2763
        %v2765 = vpop.f32.mrb[0].mxu0
        %v2766 = vpop.f32.mrb[0].mxu0
        %v2767 = vadd.f32 0.0, %v2766
        %v2768 = vpop.f32.mrb[0].mxu0
        %2769 = vdwg.mxu0
        %v2770 = vmul.f32 %v2764, 0.0625
        %v2771 = vmul.f32 %v2767, 0.0625
        %vm2772 = vcmask 72704
        %v2773 = vsel %vm2772, %v2770, -inf
        %2774 = vmax.xlane.f32.xlu0 %v2773
        %v2775 = vpop.xlane.xlu0 %2774
        %vm2776 = vcmask 65536
        %v2777 = vsel %vm2776, %v2771, -inf
        %2778 = vmax.xlane.f32.xlu0 %v2777
        %v2779 = vpop.xlane.xlu0 %2778
        %v2780 = vsub.f32 %v2770, %v2775
        %v2781 = vsub.f32 %v2771, %v2779
        %v2782 = vmul.f32 %v2780, 1.442695
        %v2783 = vpow.pop %v2782
        %v2784 = vmul.f32 %v2781, 1.442695
        %v2785 = vpow.pop %v2784
        %v2786 = vsel %vm2772, %v2783, 0.0
        %2787 = vadd.xlane.f32.xlu0 %v2786
        %v2788 = vpop.xlane.xlu0 %2787
        %v2789 = vsel %vm2776, %v2785, 0.0
        %2790 = vadd.xlane.f32.xlu0 %v2789
        %v2791 = vpop.xlane.xlu0 %2790
        %v2792 = vrcp.pop %v2788
        %v2793 = vrcp.pop %v2791
        %v2794 = vmul.f32 %v2783, %v2792
        %v2795 = vmul.f32 %v2785, %v2793
        %v2796 = vpack.c.bf16 %v2795, %v2794
        %v2797 = vpack.c.bf16 %v2721, %v2717
        %v2798 = vpack.c.bf16 %v2723, %v2719
        %v2800 = vsel %vm2772, %v2796, 0
        %vm2802 = vcmask 1043456
        %vm2803 = vcmask 1044480
        %v2804 = vsel %vm2802, 4294967295, 65535
        %v2805 = vsel %vm2803, %v2804, 0
        %v2807 = vand.u32 %v2797, %v2805
        %v2810 = vand.u32 %v2798, %v2805
        %2812 = vmatprep.subr.bf16.mxu0 %v2810
        %2813 = vmatpush1.bf16.msra.mxu0 %v2807
        %2814 = vmatprep.subr.bf16.mxu0 0
        %2815 = vmatpush1.bf16.msra.mxu0 0
        %2816 = vmatprep.subr.bf16.mxu0 0
        %2817 = vmatpush1.bf16.msra.mxu0 0
        %2818 = vmatprep.subr.bf16.mxu0 0
        %2819 = vmatpush1.bf16.msra.mxu0 0
        %2820 = vmatprep.subr.bf16.mxu0 0
        %2821 = vmatpush1.bf16.msra.mxu0 0
        %2822 = vmatprep.subr.bf16.mxu0 0
        %2823 = vmatpush1.bf16.msra.mxu0 0
        %2824 = vmatprep.subr.bf16.mxu0 0
        %2825 = vmatpush1.bf16.msra.mxu0 0
        %2826 = vmatprep.subr.bf16.mxu0 0
        %2827 = vmatpush1.bf16.msra.mxu0 0
        %2828 = vmatprep.subr.bf16.mxu0 0
        %2829 = vmatpush1.bf16.msra.mxu0 0
        %2830 = vmatprep.subr.bf16.mxu0 0
        %2831 = vmatpush1.bf16.msra.mxu0 0
        %2832 = vmatprep.subr.bf16.mxu0 0
        %2833 = vmatpush1.bf16.msra.mxu0 0
        %2834 = vmatprep.subr.bf16.mxu0 0
        %2835 = vmatpush1.bf16.msra.mxu0 0
        %2836 = vmatprep.subr.bf16.mxu0 0
        %2837 = vmatpush1.bf16.msra.mxu0 0
        %2838 = vmatprep.subr.bf16.mxu0 0
        %2839 = vmatpush1.bf16.msra.mxu0 0
        %2840 = vmatprep.subr.bf16.mxu0 0
        %2841 = vmatpush1.bf16.msra.mxu0 0
        %2842 = vmatprep.subr.bf16.mxu0 0
        %2843 = vmatpush1.bf16.msra.mxu0 0
        %2844 = vmatprep.mubr.bf16.mxu0 0
        %2845 = vmatmul.mubr.bf16.gmra.mrb[0].mxu0 %v2800
        %v2846 = vpop.f32.mrb[0].mxu0
        %v2847 = vadd.f32 0.0, %v2846
        %v2848 = vpop.f32.mrb[0].mxu0
        %v2849 = vadd.f32 0.0, %v2848
        %v2850 = vpop.f32.mrb[0].mxu0
        %v2851 = vadd.f32 0.0, %v2850
        %v2852 = vpop.f32.mrb[0].mxu0
        %v2853 = vadd.f32 0.0, %v2852
        %2854 = vdwg.mxu0
        %v2855 = vld [vmem:[#allocation13] sm:$0xff]
        %v2856 = vld [vmem:[#allocation13 + $0x8] sm:$0xff]
        %v2857 = vld [vmem:[#allocation13 + $0x10] sm:$0xff]
        %v2858 = vld [vmem:[#allocation13 + $0x18] sm:$0xff]
        %v2859 = vld [vmem:[#allocation13 + $0x20] sm:$0xff]
        %v2860 = vld [vmem:[#allocation13 + $0x28] sm:$0xff]
        %v2861 = vld [vmem:[#allocation13 + $0x30] sm:$0xff]
        %v2862 = vld [vmem:[#allocation13 + $0x38] sm:$0xff]
        %v2863 = vld [vmem:[#allocation13 + $0x40] sm:$0xff]
        %v2864 = vld [vmem:[#allocation13 + $0x48] sm:$0xff]
        %v2865 = vld [vmem:[#allocation13 + $0x50] sm:$0xff]
        %v2866 = vld [vmem:[#allocation13 + $0x58] sm:$0xff]
        %v2867 = vld [vmem:[#allocation13 + $0x60] sm:$0xff]
        %v2868 = vld [vmem:[#allocation13 + $0x68] sm:$0xff]
        %v2869 = vld [vmem:[#allocation13 + $0x70] sm:$0xff]
        %v2870 = vld [vmem:[#allocation13 + $0x78] sm:$0xff]
        %v2871 = vld [vmem:[#allocation13 + $0x80] sm:$0xff]
        %v2872 = vld [vmem:[#allocation13 + $0x88] sm:$0xff]
        %v2873 = vld [vmem:[#allocation13 + $0x90] sm:$0xff]
        %v2874 = vld [vmem:[#allocation13 + $0x98] sm:$0xff]
        %v2875 = vld [vmem:[#allocation13 + $0xa0] sm:$0xff]
        %v2876 = vld [vmem:[#allocation13 + $0xa8] sm:$0xff]
        %v2877 = vld [vmem:[#allocation13 + $0xb0] sm:$0xff]
        %v2878 = vld [vmem:[#allocation13 + $0xb8] sm:$0xff]
        %v2879 = vld [vmem:[#allocation13 + $0xc0] sm:$0xff]
        %v2880 = vld [vmem:[#allocation13 + $0xc8] sm:$0xff]
        %v2881 = vld [vmem:[#allocation13 + $0xd0] sm:$0xff]
        %v2882 = vld [vmem:[#allocation13 + $0xd8] sm:$0xff]
        %v2883 = vld [vmem:[#allocation13 + $0xe0] sm:$0xff]
        %v2884 = vld [vmem:[#allocation13 + $0xe8] sm:$0xff]
        %v2885 = vld [vmem:[#allocation13 + $0xf0] sm:$0xff]
        %v2886 = vld [vmem:[#allocation13 + $0xf8] sm:$0xff]
        %v2887 = vpack.c.bf16 %v2851, %v2847
        %v2888 = vpack.c.bf16 %v2853, %v2849
        %v2889 = vld [vmem:[#allocation14] sm:$0x3]
        %v2891 = vlaneseq
        %v2892 = vshrl.u32 %v2891, 7
        %v2893 = vsub.s32 0, %v2892
        %v2894 = vrot.slane %v2889, %v2893
        %v2895 = vlaneseq
        %v2896 = vshrl.u32 %v2895, 7
        %v2897 = vsub.s32 1, %v2896
        %v2898 = vrot.slane %v2889, %v2897
        %v2933 = vunpack.c.l.b16 %v2855
        %v2934 = vunpack.c.h.b16 %v2855
        %v2935 = vunpack.c.l.b16 %v2856
        %v2936 = vunpack.c.h.b16 %v2856
        %v2937 = vunpack.c.l.b16 %v2857
        %v2938 = vunpack.c.h.b16 %v2857
        %v2939 = vunpack.c.l.b16 %v2858
        %v2940 = vunpack.c.h.b16 %v2858
        %v2941 = vunpack.c.l.b16 %v2859
        %v2942 = vunpack.c.h.b16 %v2859
        %v2943 = vunpack.c.l.b16 %v2860
        %v2944 = vunpack.c.h.b16 %v2860
        %v2945 = vunpack.c.l.b16 %v2861
        %v2946 = vunpack.c.h.b16 %v2861
        %v2947 = vunpack.c.l.b16 %v2862
        %v2948 = vunpack.c.h.b16 %v2862
        %v2949 = vunpack.c.l.b16 %v2863
        %v2950 = vunpack.c.h.b16 %v2863
        %v2951 = vunpack.c.l.b16 %v2864
        %v2952 = vunpack.c.h.b16 %v2864
        %v2953 = vunpack.c.l.b16 %v2865
        %v2954 = vunpack.c.h.b16 %v2865
        %v2955 = vunpack.c.l.b16 %v2866
        %v2956 = vunpack.c.h.b16 %v2866
        %v2957 = vunpack.c.l.b16 %v2867
        %v2958 = vunpack.c.h.b16 %v2867
        %v2959 = vunpack.c.l.b16 %v2868
        %v2960 = vunpack.c.h.b16 %v2868
        %v2961 = vunpack.c.l.b16 %v2869
        %v2962 = vunpack.c.h.b16 %v2869
        %v2963 = vunpack.c.l.b16 %v2870
        %v2964 = vunpack.c.h.b16 %v2870
        %v2965 = vunpack.c.l.b16 %v2871
        %v2966 = vunpack.c.h.b16 %v2871
        %v2967 = vunpack.c.l.b16 %v2872
        %v2968 = vunpack.c.h.b16 %v2872
        %v2969 = vunpack.c.l.b16 %v2873
        %v2970 = vunpack.c.h.b16 %v2873
        %v2971 = vunpack.c.l.b16 %v2874
        %v2972 = vunpack.c.h.b16 %v2874
        %v2973 = vunpack.c.l.b16 %v2875
        %v2974 = vunpack.c.h.b16 %v2875
        %v2975 = vunpack.c.l.b16 %v2876
        %v2976 = vunpack.c.h.b16 %v2876
        %v2977 = vunpack.c.l.b16 %v2877
        %v2978 = vunpack.c.h.b16 %v2877
        %v2979 = vunpack.c.l.b16 %v2878
        %v2980 = vunpack.c.h.b16 %v2878
        %v2981 = vunpack.c.l.b16 %v2879
        %v2982 = vunpack.c.h.b16 %v2879
        %v2983 = vunpack.c.l.b16 %v2880
        %v2984 = vunpack.c.h.b16 %v2880
        %v2985 = vunpack.c.l.b16 %v2881
        %v2986 = vunpack.c.h.b16 %v2881
        %v2987 = vunpack.c.l.b16 %v2882
        %v2988 = vunpack.c.h.b16 %v2882
        %v2989 = vunpack.c.l.b16 %v2883
        %v2990 = vunpack.c.h.b16 %v2883
        %v2991 = vunpack.c.l.b16 %v2884
        %v2992 = vunpack.c.h.b16 %v2884
        %v2993 = vunpack.c.l.b16 %v2885
        %v2994 = vunpack.c.h.b16 %v2885
        %v2995 = vunpack.c.l.b16 %v2886
        %v2996 = vunpack.c.h.b16 %v2886
        %v2997 = vpack.c.b16 %v2935, %v2933
        %v2998 = vpack.c.b16 %v2936, %v2934
        %v2999 = vpack.c.b16 %v2939, %v2937
        %v3000 = vpack.c.b16 %v2940, %v2938
        %v3001 = vpack.c.b16 %v2943, %v2941
        %v3002 = vpack.c.b16 %v2944, %v2942
        %v3003 = vpack.c.b16 %v2947, %v2945
        %v3004 = vpack.c.b16 %v2948, %v2946
        %v3005 = vpack.c.b16 %v2951, %v2949
        %v3006 = vpack.c.b16 %v2952, %v2950
        %v3007 = vpack.c.b16 %v2955, %v2953
        %v3008 = vpack.c.b16 %v2956, %v2954
        %v3009 = vpack.c.b16 %v2959, %v2957
        %v3010 = vpack.c.b16 %v2960, %v2958
        %v3011 = vpack.c.b16 %v2963, %v2961
        %v3012 = vpack.c.b16 %v2964, %v2962
        %v3013 = vpack.c.b16 %v2967, %v2965
        %v3014 = vpack.c.b16 %v2968, %v2966
        %v3015 = vpack.c.b16 %v2971, %v2969
        %v3016 = vpack.c.b16 %v2972, %v2970
        %v3017 = vpack.c.b16 %v2975, %v2973
        %v3018 = vpack.c.b16 %v2976, %v2974
        %v3019 = vpack.c.b16 %v2979, %v2977
        %v3020 = vpack.c.b16 %v2980, %v2978
        %v3021 = vpack.c.b16 %v2983, %v2981
        %v3022 = vpack.c.b16 %v2984, %v2982
        %v3023 = vpack.c.b16 %v2987, %v2985
        %v3024 = vpack.c.b16 %v2988, %v2986
        %v3025 = vpack.c.b16 %v2991, %v2989
        %v3026 = vpack.c.b16 %v2992, %v2990
        %v3027 = vpack.c.b16 %v2995, %v2993
        %v3028 = vpack.c.b16 %v2996, %v2994
        %3061 = vmatprep.subr.bf16.mxu0 %v2998
        %3062 = vmatpush1.bf16.msra.mxu0 %v2997
        %3063 = vmatprep.subr.bf16.mxu0 %v3000
        %3064 = vmatpush1.bf16.msra.mxu0 %v2999
        %3065 = vmatprep.subr.bf16.mxu0 %v3002
        %3066 = vmatpush1.bf16.msra.mxu0 %v3001
        %3067 = vmatprep.subr.bf16.mxu0 %v3004
        %3068 = vmatpush1.bf16.msra.mxu0 %v3003
        %3069 = vmatprep.subr.bf16.mxu0 %v3006
        %3070 = vmatpush1.bf16.msra.mxu0 %v3005
        %3071 = vmatprep.subr.bf16.mxu0 %v3008
        %3072 = vmatpush1.bf16.msra.mxu0 %v3007
        %3073 = vmatprep.subr.bf16.mxu0 %v3010
        %3074 = vmatpush1.bf16.msra.mxu0 %v3009
        %3075 = vmatprep.subr.bf16.mxu0 %v3012
        %3076 = vmatpush1.bf16.msra.mxu0 %v3011
        %3077 = vmatprep.subr.bf16.mxu0 %v3014
        %3078 = vmatpush1.bf16.msra.mxu0 %v3013
        %3079 = vmatprep.subr.bf16.mxu0 %v3016
        %3080 = vmatpush1.bf16.msra.mxu0 %v3015
        %3081 = vmatprep.subr.bf16.mxu0 %v3018
        %3082 = vmatpush1.bf16.msra.mxu0 %v3017
        %3083 = vmatprep.subr.bf16.mxu0 %v3020
        %3084 = vmatpush1.bf16.msra.mxu0 %v3019
        %3085 = vmatprep.subr.bf16.mxu0 %v3022
        %3086 = vmatpush1.bf16.msra.mxu0 %v3021
        %3087 = vmatprep.subr.bf16.mxu0 %v3024
        %3088 = vmatpush1.bf16.msra.mxu0 %v3023
        %3089 = vmatprep.subr.bf16.mxu0 %v3026
        %3090 = vmatpush1.bf16.msra.mxu0 %v3025
        %3091 = vmatprep.subr.bf16.mxu0 %v3028
        %3092 = vmatpush1.bf16.msra.mxu0 %v3027
        %3093 = vmatprep.mubr.bf16.mxu0 %v2888
        %3094 = vmatmul.mubr.bf16.gmra.mrb[0].mxu0 %v2887
        %v3095 = vpop.f32.mrb[0].mxu0
        %v3096 = vadd.f32 %v2894, %v3095
        %v3097 = vpop.f32.mrb[0].mxu0
        %v3098 = vadd.f32 %v2898, %v3097
        %v3099 = vpop.f32.mrb[0].mxu0
        %v3100 = vadd.f32 %v2894, %v3099
        %v3101 = vpop.f32.mrb[0].mxu0
        %v3102 = vadd.f32 %v2898, %v3101
        %3103 = vdwg.mxu0
        %v3104 = vadd.f32 %v1898, %v3096
        %v3105 = vadd.f32 %v1899, %v3098
        %v3106 = vadd.f32 %v1900, %v3100
        %v3107 = vadd.f32 %v1901, %v3102
        %v3108 = vld [vmem:[#allocation16] sm:$0x3]
        %v3109 = vld [vmem:[#allocation17] sm:$0x3]
        %v3110 = vadd.f32 %v3104, %v3105
        %3111 = vadd.xlane.f32.xlu0 %v3110
        %v3112 = vpop.xlane.xlu0 %3111
        %v3113 = vsel %vm1891, %v3106, 0.0
        %v3114 = vsel %vm1891, %v3107, 0.0
        %v3115 = vadd.f32 %v3113, %v3114
        %3116 = vadd.xlane.f32.xlu0 %v3115
        %v3117 = vpop.xlane.xlu0 %3116
        %v3118 = vmul.f32 %v3112, %v1912
        %v3119 = vmul.f32 %v3117, %v1912
        %v3120 = vsub.f32 %v3104, %v3118
        %v3121 = vsub.f32 %v3105, %v3118
        %v3122 = vsub.f32 %v3106, %v3119
        %v3123 = vsub.f32 %v3107, %v3119
        %v3124 = vmul.f32 %v3120, %v3120
        %v3125 = vmul.f32 %v3121, %v3121
        %v3126 = vmul.f32 %v3122, %v3122
        %v3127 = vmul.f32 %v3123, %v3123
        %v3128 = vadd.f32 %v3124, %v3125
        %3129 = vadd.xlane.f32.xlu0 %v3128
        %v3130 = vpop.xlane.xlu0 %3129
        %v3131 = vsel %vm1891, %v3126, 0.0
        %v3132 = vsel %vm1891, %v3127, 0.0
        %v3133 = vadd.f32 %v3131, %v3132
        %3134 = vadd.xlane.f32.xlu0 %v3133
        %v3135 = vpop.xlane.xlu0 %3134
        %v3136 = vmul.f32 %v3130, %v1931
        %v3137 = vmul.f32 %v3135, %v1931
        %v3138 = vrsqrt.pop %v3136
        %v3139 = vmul.f32 %v3136, %v3138
        %vm3140 = vcmp.eq.f32.partialorder %v3136, inf
        %v3141 = vsel %vm3140, %v3136, %v3139
        %vm3142 = vcmp.eq.f32.partialorder %v3136, 0.0
        %v3143 = vand.u32 %v3136, 2147483648
        %v3144 = vsel %vm3142, %v3143, %v3141
        %v3145 = vrsqrt.pop %v3137
        %v3146 = vmul.f32 %v3137, %v3145
        %vm3147 = vcmp.eq.f32.partialorder %v3137, inf
        %v3148 = vsel %vm3147, %v3137, %v3146
        %vm3149 = vcmp.eq.f32.partialorder %v3137, 0.0
        %v3150 = vand.u32 %v3137, 2147483648
        %v3151 = vsel %vm3149, %v3150, %v3148
        %v3153 = vlaneseq
        %v3154 = vshrl.u32 %v3153, 7
        %v3155 = vsub.s32 0, %v3154
        %v3156 = vrot.slane %v3108, %v3155
        %v3157 = vlaneseq
        %v3158 = vshrl.u32 %v3157, 7
        %v3159 = vsub.s32 1, %v3158
        %v3160 = vrot.slane %v3108, %v3159
        %v3163 = vmul.f32 %v3156, %v3120
        %v3164 = vmul.f32 %v3160, %v3121
        %v3165 = vmul.f32 %v3156, %v3122
        %v3166 = vmul.f32 %v3160, %v3123
        %v3167 = vadd.f32 %v3144, 1e-06
        %v3168 = vadd.f32 %v3151, 1e-06
        %v3169 = vrcp.pop %v3167
        %v3170 = vmul.f32 %v3163, %v3169
        %v3171 = vmul.f32 %v3164, %v3169
        %v3172 = vrcp.pop %v3168
        %v3173 = vmul.f32 %v3165, %v3172
        %v3174 = vmul.f32 %v3166, %v3172
        %v3176 = vlaneseq
        %v3177 = vshrl.u32 %v3176, 7
        %v3178 = vsub.s32 0, %v3177
        %v3179 = vrot.slane %v3109, %v3178
        %v3180 = vlaneseq
        %v3181 = vshrl.u32 %v3180, 7
        %v3182 = vsub.s32 1, %v3181
        %v3183 = vrot.slane %v3109, %v3182
        %v3186 = vadd.f32 %v3170, %v3179
        %v3187 = vadd.f32 %v3171, %v3183
        %v3188 = vadd.f32 %v3173, %v3179
        %v3189 = vadd.f32 %v3174, %v3183
        %v3190 = vld [vmem:[#allocation19] sm:$0xff]
        %v3191 = vld [vmem:[#allocation19 + $0x8] sm:$0xff]
        %v3192 = vld [vmem:[#allocation19 + $0x10] sm:$0xff]
        %v3193 = vld [vmem:[#allocation19 + $0x18] sm:$0xff]
        %v3194 = vld [vmem:[#allocation19 + $0x20] sm:$0xff]
        %v3195 = vld [vmem:[#allocation19 + $0x28] sm:$0xff]
        %v3196 = vld [vmem:[#allocation19 + $0x30] sm:$0xff]
        %v3197 = vld [vmem:[#allocation19 + $0x38] sm:$0xff]
        %v3198 = vld [vmem:[#allocation19 + $0x40] sm:$0xff]
        %v3199 = vld [vmem:[#allocation19 + $0x48] sm:$0xff]
        %v3200 = vld [vmem:[#allocation19 + $0x50] sm:$0xff]
        %v3201 = vld [vmem:[#allocation19 + $0x58] sm:$0xff]
        %v3202 = vld [vmem:[#allocation19 + $0x60] sm:$0xff]
        %v3203 = vld [vmem:[#allocation19 + $0x68] sm:$0xff]
        %v3204 = vld [vmem:[#allocation19 + $0x70] sm:$0xff]
        %v3205 = vld [vmem:[#allocation19 + $0x78] sm:$0xff]
        %v3206 = vld [vmem:[#allocation19 + $0x80] sm:$0xff]
        %v3207 = vld [vmem:[#allocation19 + $0x88] sm:$0xff]
        %v3208 = vld [vmem:[#allocation19 + $0x90] sm:$0xff]
        %v3209 = vld [vmem:[#allocation19 + $0x98] sm:$0xff]
        %v3210 = vld [vmem:[#allocation19 + $0xa0] sm:$0xff]
        %v3211 = vld [vmem:[#allocation19 + $0xa8] sm:$0xff]
        %v3212 = vld [vmem:[#allocation19 + $0xb0] sm:$0xff]
        %v3213 = vld [vmem:[#allocation19 + $0xb8] sm:$0xff]
        %v3214 = vld [vmem:[#allocation19 + $0xc0] sm:$0xff]
        %v3215 = vld [vmem:[#allocation19 + $0xc8] sm:$0xff]
        %v3216 = vld [vmem:[#allocation19 + $0xd0] sm:$0xff]
        %v3217 = vld [vmem:[#allocation19 + $0xd8] sm:$0xff]
        %v3218 = vld [vmem:[#allocation19 + $0xe0] sm:$0xff]
        %v3219 = vld [vmem:[#allocation19 + $0xe8] sm:$0xff]
        %v3220 = vld [vmem:[#allocation19 + $0xf0] sm:$0xff]
        %v3221 = vld [vmem:[#allocation19 + $0xf8] sm:$0xff]
        %v3222 = vld [vmem:[#allocation19 + $0x100] sm:$0xff]
        %v3223 = vld [vmem:[#allocation19 + $0x108] sm:$0xff]
        %v3224 = vld [vmem:[#allocation19 + $0x110] sm:$0xff]
        %v3225 = vld [vmem:[#allocation19 + $0x118] sm:$0xff]
        %v3226 = vld [vmem:[#allocation19 + $0x120] sm:$0xff]
        %v3227 = vld [vmem:[#allocation19 + $0x128] sm:$0xff]
        %v3228 = vld [vmem:[#allocation19 + $0x130] sm:$0xff]
        %v3229 = vld [vmem:[#allocation19 + $0x138] sm:$0xff]
        %v3230 = vld [vmem:[#allocation19 + $0x140] sm:$0xff]
        %v3231 = vld [vmem:[#allocation19 + $0x148] sm:$0xff]
        %v3232 = vld [vmem:[#allocation19 + $0x150] sm:$0xff]
        %v3233 = vld [vmem:[#allocation19 + $0x158] sm:$0xff]
        %v3234 = vld [vmem:[#allocation19 + $0x160] sm:$0xff]
        %v3235 = vld [vmem:[#allocation19 + $0x168] sm:$0xff]
        %v3236 = vld [vmem:[#allocation19 + $0x170] sm:$0xff]
        %v3237 = vld [vmem:[#allocation19 + $0x178] sm:$0xff]
        %v3238 = vld [vmem:[#allocation19 + $0x180] sm:$0xff]
        %v3239 = vld [vmem:[#allocation19 + $0x188] sm:$0xff]
        %v3240 = vld [vmem:[#allocation19 + $0x190] sm:$0xff]
        %v3241 = vld [vmem:[#allocation19 + $0x198] sm:$0xff]
        %v3242 = vld [vmem:[#allocation19 + $0x1a0] sm:$0xff]
        %v3243 = vld [vmem:[#allocation19 + $0x1a8] sm:$0xff]
        %v3244 = vld [vmem:[#allocation19 + $0x1b0] sm:$0xff]
        %v3245 = vld [vmem:[#allocation19 + $0x1b8] sm:$0xff]
        %v3246 = vld [vmem:[#allocation19 + $0x1c0] sm:$0xff]
        %v3247 = vld [vmem:[#allocation19 + $0x1c8] sm:$0xff]
        %v3248 = vld [vmem:[#allocation19 + $0x1d0] sm:$0xff]
        %v3249 = vld [vmem:[#allocation19 + $0x1d8] sm:$0xff]
        %v3250 = vld [vmem:[#allocation19 + $0x1e0] sm:$0xff]
        %v3251 = vld [vmem:[#allocation19 + $0x1e8] sm:$0xff]
        %v3252 = vld [vmem:[#allocation19 + $0x1f0] sm:$0xff]
        %v3253 = vld [vmem:[#allocation19 + $0x1f8] sm:$0xff]
        %v3254 = vld [vmem:[#allocation19 + $0x200] sm:$0xff]
        %v3255 = vld [vmem:[#allocation19 + $0x208] sm:$0xff]
        %v3256 = vld [vmem:[#allocation19 + $0x210] sm:$0xff]
        %v3257 = vld [vmem:[#allocation19 + $0x218] sm:$0xff]
        %v3258 = vld [vmem:[#allocation19 + $0x220] sm:$0xff]
        %v3259 = vld [vmem:[#allocation19 + $0x228] sm:$0xff]
        %v3260 = vld [vmem:[#allocation19 + $0x230] sm:$0xff]
        %v3261 = vld [vmem:[#allocation19 + $0x238] sm:$0xff]
        %v3262 = vld [vmem:[#allocation19 + $0x240] sm:$0xff]
        %v3263 = vld [vmem:[#allocation19 + $0x248] sm:$0xff]
        %v3264 = vld [vmem:[#allocation19 + $0x250] sm:$0xff]
        %v3265 = vld [vmem:[#allocation19 + $0x258] sm:$0xff]
        %v3266 = vld [vmem:[#allocation19 + $0x260] sm:$0xff]
        %v3267 = vld [vmem:[#allocation19 + $0x268] sm:$0xff]
        %v3268 = vld [vmem:[#allocation19 + $0x270] sm:$0xff]
        %v3269 = vld [vmem:[#allocation19 + $0x278] sm:$0xff]
        %v3270 = vld [vmem:[#allocation19 + $0x280] sm:$0xff]
        %v3271 = vld [vmem:[#allocation19 + $0x288] sm:$0xff]
        %v3272 = vld [vmem:[#allocation19 + $0x290] sm:$0xff]
        %v3273 = vld [vmem:[#allocation19 + $0x298] sm:$0xff]
        %v3274 = vld [vmem:[#allocation19 + $0x2a0] sm:$0xff]
        %v3275 = vld [vmem:[#allocation19 + $0x2a8] sm:$0xff]
        %v3276 = vld [vmem:[#allocation19 + $0x2b0] sm:$0xff]
        %v3277 = vld [vmem:[#allocation19 + $0x2b8] sm:$0xff]
        %v3278 = vld [vmem:[#allocation19 + $0x2c0] sm:$0xff]
        %v3279 = vld [vmem:[#allocation19 + $0x2c8] sm:$0xff]
        %v3280 = vld [vmem:[#allocation19 + $0x2d0] sm:$0xff]
        %v3281 = vld [vmem:[#allocation19 + $0x2d8] sm:$0xff]
        %v3282 = vld [vmem:[#allocation19 + $0x2e0] sm:$0xff]
        %v3283 = vld [vmem:[#allocation19 + $0x2e8] sm:$0xff]
        %v3284 = vld [vmem:[#allocation19 + $0x2f0] sm:$0xff]
        %v3285 = vld [vmem:[#allocation19 + $0x2f8] sm:$0xff]
        %v3286 = vld [vmem:[#allocation19 + $0x300] sm:$0xff]
        %v3287 = vld [vmem:[#allocation19 + $0x308] sm:$0xff]
        %v3288 = vld [vmem:[#allocation19 + $0x310] sm:$0xff]
        %v3289 = vld [vmem:[#allocation19 + $0x318] sm:$0xff]
        %v3290 = vld [vmem:[#allocation19 + $0x320] sm:$0xff]
        %v3291 = vld [vmem:[#allocation19 + $0x328] sm:$0xff]
        %v3292 = vld [vmem:[#allocation19 + $0x330] sm:$0xff]
        %v3293 = vld [vmem:[#allocation19 + $0x338] sm:$0xff]
        %v3294 = vld [vmem:[#allocation19 + $0x340] sm:$0xff]
        %v3295 = vld [vmem:[#allocation19 + $0x348] sm:$0xff]
        %v3296 = vld [vmem:[#allocation19 + $0x350] sm:$0xff]
        %v3297 = vld [vmem:[#allocation19 + $0x358] sm:$0xff]
        %v3298 = vld [vmem:[#allocation19 + $0x360] sm:$0xff]
        %v3299 = vld [vmem:[#allocation19 + $0x368] sm:$0xff]
        %v3300 = vld [vmem:[#allocation19 + $0x370] sm:$0xff]
        %v3301 = vld [vmem:[#allocation19 + $0x378] sm:$0xff]
        %v3302 = vld [vmem:[#allocation19 + $0x380] sm:$0xff]
        %v3303 = vld [vmem:[#allocation19 + $0x388] sm:$0xff]
        %v3304 = vld [vmem:[#allocation19 + $0x390] sm:$0xff]
        %v3305 = vld [vmem:[#allocation19 + $0x398] sm:$0xff]
        %v3306 = vld [vmem:[#allocation19 + $0x3a0] sm:$0xff]
        %v3307 = vld [vmem:[#allocation19 + $0x3a8] sm:$0xff]
        %v3308 = vld [vmem:[#allocation19 + $0x3b0] sm:$0xff]
        %v3309 = vld [vmem:[#allocation19 + $0x3b8] sm:$0xff]
        %v3310 = vld [vmem:[#allocation19 + $0x3c0] sm:$0xff]
        %v3311 = vld [vmem:[#allocation19 + $0x3c8] sm:$0xff]
        %v3312 = vld [vmem:[#allocation19 + $0x3d0] sm:$0xff]
        %v3313 = vld [vmem:[#allocation19 + $0x3d8] sm:$0xff]
        %v3314 = vld [vmem:[#allocation19 + $0x3e0] sm:$0xff]
        %v3315 = vld [vmem:[#allocation19 + $0x3e8] sm:$0xff]
        %v3316 = vld [vmem:[#allocation19 + $0x3f0] sm:$0xff]
        %v3317 = vld [vmem:[#allocation19 + $0x3f8] sm:$0xff]
        %v3318 = vpack.c.bf16 %v3188, %v3186
        %v3319 = vpack.c.bf16 %v3189, %v3187
        %v3320 = vld [vmem:[#allocation20] sm:$0xff]
        %v3322 = vlaneseq
        %v3323 = vshrl.u32 %v3322, 7
        %v3324 = vsub.s32 0, %v3323
        %v3325 = vrot.slane %v3320, %v3324
        %v3326 = vlaneseq
        %v3327 = vshrl.u32 %v3326, 7
        %v3328 = vsub.s32 1, %v3327
        %v3329 = vrot.slane %v3320, %v3328
        %v3330 = vlaneseq
        %v3331 = vshrl.u32 %v3330, 7
        %v3332 = vsub.s32 2, %v3331
        %v3333 = vrot.slane %v3320, %v3332
        %v3334 = vlaneseq
        %v3335 = vshrl.u32 %v3334, 7
        %v3336 = vsub.s32 3, %v3335
        %v3337 = vrot.slane %v3320, %v3336
        %v3338 = vlaneseq
        %v3339 = vshrl.u32 %v3338, 7
        %v3340 = vsub.s32 4, %v3339
        %v3341 = vrot.slane %v3320, %v3340
        %v3342 = vlaneseq
        %v3343 = vshrl.u32 %v3342, 7
        %v3344 = vsub.s32 5, %v3343
        %v3345 = vrot.slane %v3320, %v3344
        %v3346 = vlaneseq
        %v3347 = vshrl.u32 %v3346, 7
        %v3348 = vsub.s32 6, %v3347
        %v3349 = vrot.slane %v3320, %v3348
        %v3350 = vlaneseq
        %v3351 = vshrl.u32 %v3350, 7
        %v3352 = vsub.s32 7, %v3351
        %v3353 = vrot.slane %v3320, %v3352
        %v3490 = vunpack.c.l.b16 %v3190
        %v3491 = vunpack.c.h.b16 %v3190
        %v3492 = vunpack.c.l.b16 %v3191
        %v3493 = vunpack.c.h.b16 %v3191
        %v3494 = vunpack.c.l.b16 %v3192
        %v3495 = vunpack.c.h.b16 %v3192
        %v3496 = vunpack.c.l.b16 %v3193
        %v3497 = vunpack.c.h.b16 %v3193
        %v3498 = vunpack.c.l.b16 %v3194
        %v3499 = vunpack.c.h.b16 %v3194
        %v3500 = vunpack.c.l.b16 %v3195
        %v3501 = vunpack.c.h.b16 %v3195
        %v3502 = vunpack.c.l.b16 %v3196
        %v3503 = vunpack.c.h.b16 %v3196
        %v3504 = vunpack.c.l.b16 %v3197
        %v3505 = vunpack.c.h.b16 %v3197
        %v3506 = vunpack.c.l.b16 %v3198
        %v3507 = vunpack.c.h.b16 %v3198
        %v3508 = vunpack.c.l.b16 %v3199
        %v3509 = vunpack.c.h.b16 %v3199
        %v3510 = vunpack.c.l.b16 %v3200
        %v3511 = vunpack.c.h.b16 %v3200
        %v3512 = vunpack.c.l.b16 %v3201
        %v3513 = vunpack.c.h.b16 %v3201
        %v3514 = vunpack.c.l.b16 %v3202
        %v3515 = vunpack.c.h.b16 %v3202
        %v3516 = vunpack.c.l.b16 %v3203
        %v3517 = vunpack.c.h.b16 %v3203
        %v3518 = vunpack.c.l.b16 %v3204
        %v3519 = vunpack.c.h.b16 %v3204
        %v3520 = vunpack.c.l.b16 %v3205
        %v3521 = vunpack.c.h.b16 %v3205
        %v3522 = vunpack.c.l.b16 %v3206
        %v3523 = vunpack.c.h.b16 %v3206
        %v3524 = vunpack.c.l.b16 %v3207
        %v3525 = vunpack.c.h.b16 %v3207
        %v3526 = vunpack.c.l.b16 %v3208
        %v3527 = vunpack.c.h.b16 %v3208
        %v3528 = vunpack.c.l.b16 %v3209
        %v3529 = vunpack.c.h.b16 %v3209
        %v3530 = vunpack.c.l.b16 %v3210
        %v3531 = vunpack.c.h.b16 %v3210
        %v3532 = vunpack.c.l.b16 %v3211
        %v3533 = vunpack.c.h.b16 %v3211
        %v3534 = vunpack.c.l.b16 %v3212
        %v3535 = vunpack.c.h.b16 %v3212
        %v3536 = vunpack.c.l.b16 %v3213
        %v3537 = vunpack.c.h.b16 %v3213
        %v3538 = vunpack.c.l.b16 %v3214
        %v3539 = vunpack.c.h.b16 %v3214
        %v3540 = vunpack.c.l.b16 %v3215
        %v3541 = vunpack.c.h.b16 %v3215
        %v3542 = vunpack.c.l.b16 %v3216
        %v3543 = vunpack.c.h.b16 %v3216
        %v3544 = vunpack.c.l.b16 %v3217
        %v3545 = vunpack.c.h.b16 %v3217
        %v3546 = vunpack.c.l.b16 %v3218
        %v3547 = vunpack.c.h.b16 %v3218
        %v3548 = vunpack.c.l.b16 %v3219
        %v3549 = vunpack.c.h.b16 %v3219
        %v3550 = vunpack.c.l.b16 %v3220
        %v3551 = vunpack.c.h.b16 %v3220
        %v3552 = vunpack.c.l.b16 %v3221
        %v3553 = vunpack.c.h.b16 %v3221
        %v3554 = vunpack.c.l.b16 %v3222
        %v3555 = vunpack.c.h.b16 %v3222
        %v3556 = vunpack.c.l.b16 %v3223
        %v3557 = vunpack.c.h.b16 %v3223
        %v3558 = vunpack.c.l.b16 %v3224
        %v3559 = vunpack.c.h.b16 %v3224
        %v3560 = vunpack.c.l.b16 %v3225
        %v3561 = vunpack.c.h.b16 %v3225
        %v3562 = vunpack.c.l.b16 %v3226
        %v3563 = vunpack.c.h.b16 %v3226
        %v3564 = vunpack.c.l.b16 %v3227
        %v3565 = vunpack.c.h.b16 %v3227
        %v3566 = vunpack.c.l.b16 %v3228
        %v3567 = vunpack.c.h.b16 %v3228
        %v3568 = vunpack.c.l.b16 %v3229
        %v3569 = vunpack.c.h.b16 %v3229
        %v3570 = vunpack.c.l.b16 %v3230
        %v3571 = vunpack.c.h.b16 %v3230
        %v3572 = vunpack.c.l.b16 %v3231
        %v3573 = vunpack.c.h.b16 %v3231
        %v3574 = vunpack.c.l.b16 %v3232
        %v3575 = vunpack.c.h.b16 %v3232
        %v3576 = vunpack.c.l.b16 %v3233
        %v3577 = vunpack.c.h.b16 %v3233
        %v3578 = vunpack.c.l.b16 %v3234
        %v3579 = vunpack.c.h.b16 %v3234
        %v3580 = vunpack.c.l.b16 %v3235
        %v3581 = vunpack.c.h.b16 %v3235
        %v3582 = vunpack.c.l.b16 %v3236
        %v3583 = vunpack.c.h.b16 %v3236
        %v3584 = vunpack.c.l.b16 %v3237
        %v3585 = vunpack.c.h.b16 %v3237
        %v3586 = vunpack.c.l.b16 %v3238
        %v3587 = vunpack.c.h.b16 %v3238
        %v3588 = vunpack.c.l.b16 %v3239
        %v3589 = vunpack.c.h.b16 %v3239
        %v3590 = vunpack.c.l.b16 %v3240
        %v3591 = vunpack.c.h.b16 %v3240
        %v3592 = vunpack.c.l.b16 %v3241
        %v3593 = vunpack.c.h.b16 %v3241
        %v3594 = vunpack.c.l.b16 %v3242
        %v3595 = vunpack.c.h.b16 %v3242
        %v3596 = vunpack.c.l.b16 %v3243
        %v3597 = vunpack.c.h.b16 %v3243
        %v3598 = vunpack.c.l.b16 %v3244
        %v3599 = vunpack.c.h.b16 %v3244
        %v3600 = vunpack.c.l.b16 %v3245
        %v3601 = vunpack.c.h.b16 %v3245
        %v3602 = vunpack.c.l.b16 %v3246
        %v3603 = vunpack.c.h.b16 %v3246
        %v3604 = vunpack.c.l.b16 %v3247
        %v3605 = vunpack.c.h.b16 %v3247
        %v3606 = vunpack.c.l.b16 %v3248
        %v3607 = vunpack.c.h.b16 %v3248
        %v3608 = vunpack.c.l.b16 %v3249
        %v3609 = vunpack.c.h.b16 %v3249
        %v3610 = vunpack.c.l.b16 %v3250
        %v3611 = vunpack.c.h.b16 %v3250
        %v3612 = vunpack.c.l.b16 %v3251
        %v3613 = vunpack.c.h.b16 %v3251
        %v3614 = vunpack.c.l.b16 %v3252
        %v3615 = vunpack.c.h.b16 %v3252
        %v3616 = vunpack.c.l.b16 %v3253
        %v3617 = vunpack.c.h.b16 %v3253
        %v3618 = vunpack.c.l.b16 %v3254
        %v3619 = vunpack.c.h.b16 %v3254
        %v3620 = vunpack.c.l.b16 %v3255
        %v3621 = vunpack.c.h.b16 %v3255
        %v3622 = vunpack.c.l.b16 %v3256
        %v3623 = vunpack.c.h.b16 %v3256
        %v3624 = vunpack.c.l.b16 %v3257
        %v3625 = vunpack.c.h.b16 %v3257
        %v3626 = vunpack.c.l.b16 %v3258
        %v3627 = vunpack.c.h.b16 %v3258
        %v3628 = vunpack.c.l.b16 %v3259
        %v3629 = vunpack.c.h.b16 %v3259
        %v3630 = vunpack.c.l.b16 %v3260
        %v3631 = vunpack.c.h.b16 %v3260
        %v3632 = vunpack.c.l.b16 %v3261
        %v3633 = vunpack.c.h.b16 %v3261
        %v3634 = vunpack.c.l.b16 %v3262
        %v3635 = vunpack.c.h.b16 %v3262
        %v3636 = vunpack.c.l.b16 %v3263
        %v3637 = vunpack.c.h.b16 %v3263
        %v3638 = vunpack.c.l.b16 %v3264
        %v3639 = vunpack.c.h.b16 %v3264
        %v3640 = vunpack.c.l.b16 %v3265
        %v3641 = vunpack.c.h.b16 %v3265
        %v3642 = vunpack.c.l.b16 %v3266
        %v3643 = vunpack.c.h.b16 %v3266
        %v3644 = vunpack.c.l.b16 %v3267
        %v3645 = vunpack.c.h.b16 %v3267
        %v3646 = vunpack.c.l.b16 %v3268
        %v3647 = vunpack.c.h.b16 %v3268
        %v3648 = vunpack.c.l.b16 %v3269
        %v3649 = vunpack.c.h.b16 %v3269
        %v3650 = vunpack.c.l.b16 %v3270
        %v3651 = vunpack.c.h.b16 %v3270
        %v3652 = vunpack.c.l.b16 %v3271
        %v3653 = vunpack.c.h.b16 %v3271
        %v3654 = vunpack.c.l.b16 %v3272
        %v3655 = vunpack.c.h.b16 %v3272
        %v3656 = vunpack.c.l.b16 %v3273
        %v3657 = vunpack.c.h.b16 %v3273
        %v3658 = vunpack.c.l.b16 %v3274
        %v3659 = vunpack.c.h.b16 %v3274
        %v3660 = vunpack.c.l.b16 %v3275
        %v3661 = vunpack.c.h.b16 %v3275
        %v3662 = vunpack.c.l.b16 %v3276
        %v3663 = vunpack.c.h.b16 %v3276
        %v3664 = vunpack.c.l.b16 %v3277
        %v3665 = vunpack.c.h.b16 %v3277
        %v3666 = vunpack.c.l.b16 %v3278
        %v3667 = vunpack.c.h.b16 %v3278
        %v3668 = vunpack.c.l.b16 %v3279
        %v3669 = vunpack.c.h.b16 %v3279
        %v3670 = vunpack.c.l.b16 %v3280
        %v3671 = vunpack.c.h.b16 %v3280
        %v3672 = vunpack.c.l.b16 %v3281
        %v3673 = vunpack.c.h.b16 %v3281
        %v3674 = vunpack.c.l.b16 %v3282
        %v3675 = vunpack.c.h.b16 %v3282
        %v3676 = vunpack.c.l.b16 %v3283
        %v3677 = vunpack.c.h.b16 %v3283
        %v3678 = vunpack.c.l.b16 %v3284
        %v3679 = vunpack.c.h.b16 %v3284
        %v3680 = vunpack.c.l.b16 %v3285
        %v3681 = vunpack.c.h.b16 %v3285
        %v3682 = vunpack.c.l.b16 %v3286
        %v3683 = vunpack.c.h.b16 %v3286
        %v3684 = vunpack.c.l.b16 %v3287
        %v3685 = vunpack.c.h.b16 %v3287
        %v3686 = vunpack.c.l.b16 %v3288
        %v3687 = vunpack.c.h.b16 %v3288
        %v3688 = vunpack.c.l.b16 %v3289
        %v3689 = vunpack.c.h.b16 %v3289
        %v3690 = vunpack.c.l.b16 %v3290
        %v3691 = vunpack.c.h.b16 %v3290
        %v3692 = vunpack.c.l.b16 %v3291
        %v3693 = vunpack.c.h.b16 %v3291
        %v3694 = vunpack.c.l.b16 %v3292
        %v3695 = vunpack.c.h.b16 %v3292
        %v3696 = vunpack.c.l.b16 %v3293
        %v3697 = vunpack.c.h.b16 %v3293
        %v3698 = vunpack.c.l.b16 %v3294
        %v3699 = vunpack.c.h.b16 %v3294
        %v3700 = vunpack.c.l.b16 %v3295
        %v3701 = vunpack.c.h.b16 %v3295
        %v3702 = vunpack.c.l.b16 %v3296
        %v3703 = vunpack.c.h.b16 %v3296
        %v3704 = vunpack.c.l.b16 %v3297
        %v3705 = vunpack.c.h.b16 %v3297
        %v3706 = vunpack.c.l.b16 %v3298
        %v3707 = vunpack.c.h.b16 %v3298
        %v3708 = vunpack.c.l.b16 %v3299
        %v3709 = vunpack.c.h.b16 %v3299
        %v3710 = vunpack.c.l.b16 %v3300
        %v3711 = vunpack.c.h.b16 %v3300
        %v3712 = vunpack.c.l.b16 %v3301
        %v3713 = vunpack.c.h.b16 %v3301
        %v3714 = vunpack.c.l.b16 %v3302
        %v3715 = vunpack.c.h.b16 %v3302
        %v3716 = vunpack.c.l.b16 %v3303
        %v3717 = vunpack.c.h.b16 %v3303
        %v3718 = vunpack.c.l.b16 %v3304
        %v3719 = vunpack.c.h.b16 %v3304
        %v3720 = vunpack.c.l.b16 %v3305
        %v3721 = vunpack.c.h.b16 %v3305
        %v3722 = vunpack.c.l.b16 %v3306
        %v3723 = vunpack.c.h.b16 %v3306
        %v3724 = vunpack.c.l.b16 %v3307
        %v3725 = vunpack.c.h.b16 %v3307
        %v3726 = vunpack.c.l.b16 %v3308
        %v3727 = vunpack.c.h.b16 %v3308
        %v3728 = vunpack.c.l.b16 %v3309
        %v3729 = vunpack.c.h.b16 %v3309
        %v3730 = vunpack.c.l.b16 %v3310
        %v3731 = vunpack.c.h.b16 %v3310
        %v3732 = vunpack.c.l.b16 %v3311
        %v3733 = vunpack.c.h.b16 %v3311
        %v3734 = vunpack.c.l.b16 %v3312
        %v3735 = vunpack.c.h.b16 %v3312
        %v3736 = vunpack.c.l.b16 %v3313
        %v3737 = vunpack.c.h.b16 %v3313
        %v3738 = vunpack.c.l.b16 %v3314
        %v3739 = vunpack.c.h.b16 %v3314
        %v3740 = vunpack.c.l.b16 %v3315
        %v3741 = vunpack.c.h.b16 %v3315
        %v3742 = vunpack.c.l.b16 %v3316
        %v3743 = vunpack.c.h.b16 %v3316
        %v3744 = vunpack.c.l.b16 %v3317
        %v3745 = vunpack.c.h.b16 %v3317
        %v3746 = vpack.c.b16 %v3498, %v3490
        %v3747 = vpack.c.b16 %v3499, %v3491
        %v3748 = vpack.c.b16 %v3500, %v3492
        %v3749 = vpack.c.b16 %v3501, %v3493
        %v3750 = vpack.c.b16 %v3502, %v3494
        %v3751 = vpack.c.b16 %v3503, %v3495
        %v3752 = vpack.c.b16 %v3504, %v3496
        %v3753 = vpack.c.b16 %v3505, %v3497
        %v3754 = vpack.c.b16 %v3514, %v3506
        %v3755 = vpack.c.b16 %v3515, %v3507
        %v3756 = vpack.c.b16 %v3516, %v3508
        %v3757 = vpack.c.b16 %v3517, %v3509
        %v3758 = vpack.c.b16 %v3518, %v3510
        %v3759 = vpack.c.b16 %v3519, %v3511
        %v3760 = vpack.c.b16 %v3520, %v3512
        %v3761 = vpack.c.b16 %v3521, %v3513
        %v3762 = vpack.c.b16 %v3530, %v3522
        %v3763 = vpack.c.b16 %v3531, %v3523
        %v3764 = vpack.c.b16 %v3532, %v3524
        %v3765 = vpack.c.b16 %v3533, %v3525
        %v3766 = vpack.c.b16 %v3534, %v3526
        %v3767 = vpack.c.b16 %v3535, %v3527
        %v3768 = vpack.c.b16 %v3536, %v3528
        %v3769 = vpack.c.b16 %v3537, %v3529
        %v3770 = vpack.c.b16 %v3546, %v3538
        %v3771 = vpack.c.b16 %v3547, %v3539
        %v3772 = vpack.c.b16 %v3548, %v3540
        %v3773 = vpack.c.b16 %v3549, %v3541
        %v3774 = vpack.c.b16 %v3550, %v3542
        %v3775 = vpack.c.b16 %v3551, %v3543
        %v3776 = vpack.c.b16 %v3552, %v3544
        %v3777 = vpack.c.b16 %v3553, %v3545
        %v3778 = vpack.c.b16 %v3562, %v3554
        %v3779 = vpack.c.b16 %v3563, %v3555
        %v3780 = vpack.c.b16 %v3564, %v3556
        %v3781 = vpack.c.b16 %v3565, %v3557
        %v3782 = vpack.c.b16 %v3566, %v3558
        %v3783 = vpack.c.b16 %v3567, %v3559
        %v3784 = vpack.c.b16 %v3568, %v3560
        %v3785 = vpack.c.b16 %v3569, %v3561
        %v3786 = vpack.c.b16 %v3578, %v3570
        %v3787 = vpack.c.b16 %v3579, %v3571
        %v3788 = vpack.c.b16 %v3580, %v3572
        %v3789 = vpack.c.b16 %v3581, %v3573
        %v3790 = vpack.c.b16 %v3582, %v3574
        %v3791 = vpack.c.b16 %v3583, %v3575
        %v3792 = vpack.c.b16 %v3584, %v3576
        %v3793 = vpack.c.b16 %v3585, %v3577
        %v3794 = vpack.c.b16 %v3594, %v3586
        %v3795 = vpack.c.b16 %v3595, %v3587
        %v3796 = vpack.c.b16 %v3596, %v3588
        %v3797 = vpack.c.b16 %v3597, %v3589
        %v3798 = vpack.c.b16 %v3598, %v3590
        %v3799 = vpack.c.b16 %v3599, %v3591
        %v3800 = vpack.c.b16 %v3600, %v3592
        %v3801 = vpack.c.b16 %v3601, %v3593
        %v3802 = vpack.c.b16 %v3610, %v3602
        %v3803 = vpack.c.b16 %v3611, %v3603
        %v3804 = vpack.c.b16 %v3612, %v3604
        %v3805 = vpack.c.b16 %v3613, %v3605
        %v3806 = vpack.c.b16 %v3614, %v3606
        %v3807 = vpack.c.b16 %v3615, %v3607
        %v3808 = vpack.c.b16 %v3616, %v3608
        %v3809 = vpack.c.b16 %v3617, %v3609
        %v3810 = vpack.c.b16 %v3626, %v3618
        %v3811 = vpack.c.b16 %v3627, %v3619
        %v3812 = vpack.c.b16 %v3628, %v3620
        %v3813 = vpack.c.b16 %v3629, %v3621
        %v3814 = vpack.c.b16 %v3630, %v3622
        %v3815 = vpack.c.b16 %v3631, %v3623
        %v3816 = vpack.c.b16 %v3632, %v3624
        %v3817 = vpack.c.b16 %v3633, %v3625
        %v3818 = vpack.c.b16 %v3642, %v3634
        %v3819 = vpack.c.b16 %v3643, %v3635
        %v3820 = vpack.c.b16 %v3644, %v3636
        %v3821 = vpack.c.b16 %v3645, %v3637
        %v3822 = vpack.c.b16 %v3646, %v3638
        %v3823 = vpack.c.b16 %v3647, %v3639
        %v3824 = vpack.c.b16 %v3648, %v3640
        %v3825 = vpack.c.b16 %v3649, %v3641
        %v3826 = vpack.c.b16 %v3658, %v3650
        %v3827 = vpack.c.b16 %v3659, %v3651
        %v3828 = vpack.c.b16 %v3660, %v3652
        %v3829 = vpack.c.b16 %v3661, %v3653
        %v3830 = vpack.c.b16 %v3662, %v3654
        %v3831 = vpack.c.b16 %v3663, %v3655
        %v3832 = vpack.c.b16 %v3664, %v3656
        %v3833 = vpack.c.b16 %v3665, %v3657
        %v3834 = vpack.c.b16 %v3674, %v3666
        %v3835 = vpack.c.b16 %v3675, %v3667
        %v3836 = vpack.c.b16 %v3676, %v3668
        %v3837 = vpack.c.b16 %v3677, %v3669
        %v3838 = vpack.c.b16 %v3678, %v3670
        %v3839 = vpack.c.b16 %v3679, %v3671
        %v3840 = vpack.c.b16 %v3680, %v3672
        %v3841 = vpack.c.b16 %v3681, %v3673
        %v3842 = vpack.c.b16 %v3690, %v3682
        %v3843 = vpack.c.b16 %v3691, %v3683
        %v3844 = vpack.c.b16 %v3692, %v3684
        %v3845 = vpack.c.b16 %v3693, %v3685
        %v3846 = vpack.c.b16 %v3694, %v3686
        %v3847 = vpack.c.b16 %v3695, %v3687
        %v3848 = vpack.c.b16 %v3696, %v3688
        %v3849 = vpack.c.b16 %v3697, %v3689
        %v3850 = vpack.c.b16 %v3706, %v3698
        %v3851 = vpack.c.b16 %v3707, %v3699
        %v3852 = vpack.c.b16 %v3708, %v3700
        %v3853 = vpack.c.b16 %v3709, %v3701
        %v3854 = vpack.c.b16 %v3710, %v3702
        %v3855 = vpack.c.b16 %v3711, %v3703
        %v3856 = vpack.c.b16 %v3712, %v3704
        %v3857 = vpack.c.b16 %v3713, %v3705
        %v3858 = vpack.c.b16 %v3722, %v3714
        %v3859 = vpack.c.b16 %v3723, %v3715
        %v3860 = vpack.c.b16 %v3724, %v3716
        %v3861 = vpack.c.b16 %v3725, %v3717
        %v3862 = vpack.c.b16 %v3726, %v3718
        %v3863 = vpack.c.b16 %v3727, %v3719
        %v3864 = vpack.c.b16 %v3728, %v3720
        %v3865 = vpack.c.b16 %v3729, %v3721
        %v3866 = vpack.c.b16 %v3738, %v3730
        %v3867 = vpack.c.b16 %v3739, %v3731
        %v3868 = vpack.c.b16 %v3740, %v3732
        %v3869 = vpack.c.b16 %v3741, %v3733
        %v3870 = vpack.c.b16 %v3742, %v3734
        %v3871 = vpack.c.b16 %v3743, %v3735
        %v3872 = vpack.c.b16 %v3744, %v3736
        %v3873 = vpack.c.b16 %v3745, %v3737
        %4002 = vmatprep.subr.bf16.mxu0 %v3747
        %4003 = vmatpush1.bf16.msra.mxu0 %v3746
        %4004 = vmatprep.subr.bf16.mxu0 %v3755
        %4005 = vmatpush1.bf16.msra.mxu0 %v3754
        %4006 = vmatprep.subr.bf16.mxu0 %v3763
        %4007 = vmatpush1.bf16.msra.mxu0 %v3762
        %4008 = vmatprep.subr.bf16.mxu0 %v3771
        %4009 = vmatpush1.bf16.msra.mxu0 %v3770
        %4010 = vmatprep.subr.bf16.mxu0 %v3779
        %4011 = vmatpush1.bf16.msra.mxu0 %v3778
        %4012 = vmatprep.subr.bf16.mxu0 %v3787
        %4013 = vmatpush1.bf16.msra.mxu0 %v3786
        %4014 = vmatprep.subr.bf16.mxu0 %v3795
        %4015 = vmatpush1.bf16.msra.mxu0 %v3794
        %4016 = vmatprep.subr.bf16.mxu0 %v3803
        %4017 = vmatpush1.bf16.msra.mxu0 %v3802
        %4018 = vmatprep.subr.bf16.mxu0 %v3811
        %4019 = vmatpush1.bf16.msra.mxu0 %v3810
        %4020 = vmatprep.subr.bf16.mxu0 %v3819
        %4021 = vmatpush1.bf16.msra.mxu0 %v3818
        %4022 = vmatprep.subr.bf16.mxu0 %v3827
        %4023 = vmatpush1.bf16.msra.mxu0 %v3826
        %4024 = vmatprep.subr.bf16.mxu0 %v3835
        %4025 = vmatpush1.bf16.msra.mxu0 %v3834
        %4026 = vmatprep.subr.bf16.mxu0 %v3843
        %4027 = vmatpush1.bf16.msra.mxu0 %v3842
        %4028 = vmatprep.subr.bf16.mxu0 %v3851
        %4029 = vmatpush1.bf16.msra.mxu0 %v3850
        %4030 = vmatprep.subr.bf16.mxu0 %v3859
        %4031 = vmatpush1.bf16.msra.mxu0 %v3858
        %4032 = vmatprep.subr.bf16.mxu0 %v3867
        %4033 = vmatpush1.bf16.msra.mxu0 %v3866
        %4034 = vmatprep.mubr.bf16.mxu0 %v3319
        %4035 = vmatmul.mubr.bf16.gmra.mrb[0].mxu0 %v3318
        %v4036 = vpop.f32.mrb[0].mxu0
        %v4037 = vadd.f32 %v3325, %v4036
        %v4038 = vpop.f32.mrb[0].mxu0
        %v4039 = vadd.f32 %v3329, %v4038
        %v4040 = vpop.f32.mrb[0].mxu0
        %v4041 = vadd.f32 %v3325, %v4040
        %v4042 = vpop.f32.mrb[0].mxu0
        %v4043 = vadd.f32 %v3329, %v4042
        %4044 = vdwg.mxu0
        %4045 = vmatprep.subr.bf16.mxu0 %v3749
        %4046 = vmatpush1.bf16.msra.mxu0 %v3748
        %4047 = vmatprep.subr.bf16.mxu0 %v3757
        %4048 = vmatpush1.bf16.msra.mxu0 %v3756
        %4049 = vmatprep.subr.bf16.mxu0 %v3765
        %4050 = vmatpush1.bf16.msra.mxu0 %v3764
        %4051 = vmatprep.subr.bf16.mxu0 %v3773
        %4052 = vmatpush1.bf16.msra.mxu0 %v3772
        %4053 = vmatprep.subr.bf16.mxu0 %v3781
        %4054 = vmatpush1.bf16.msra.mxu0 %v3780
        %4055 = vmatprep.subr.bf16.mxu0 %v3789
        %4056 = vmatpush1.bf16.msra.mxu0 %v3788
        %4057 = vmatprep.subr.bf16.mxu0 %v3797
        %4058 = vmatpush1.bf16.msra.mxu0 %v3796
        %4059 = vmatprep.subr.bf16.mxu0 %v3805
        %4060 = vmatpush1.bf16.msra.mxu0 %v3804
        %4061 = vmatprep.subr.bf16.mxu0 %v3813
        %4062 = vmatpush1.bf16.msra.mxu0 %v3812
        %4063 = vmatprep.subr.bf16.mxu0 %v3821
        %4064 = vmatpush1.bf16.msra.mxu0 %v3820
        %4065 = vmatprep.subr.bf16.mxu0 %v3829
        %4066 = vmatpush1.bf16.msra.mxu0 %v3828
        %4067 = vmatprep.subr.bf16.mxu0 %v3837
        %4068 = vmatpush1.bf16.msra.mxu0 %v3836
        %4069 = vmatprep.subr.bf16.mxu0 %v3845
        %4070 = vmatpush1.bf16.msra.mxu0 %v3844
        %4071 = vmatprep.subr.bf16.mxu0 %v3853
        %4072 = vmatpush1.bf16.msra.mxu0 %v3852
        %4073 = vmatprep.subr.bf16.mxu0 %v3861
        %4074 = vmatpush1.bf16.msra.mxu0 %v3860
        %4075 = vmatprep.subr.bf16.mxu0 %v3869
        %4076 = vmatpush1.bf16.msra.mxu0 %v3868
        %4077 = vmatprep.mubr.bf16.mxu0 %v3319
        %4078 = vmatmul.mubr.bf16.gmra.mrb[0].mxu0 %v3318
        %v4079 = vpop.f32.mrb[0].mxu0
        %v4080 = vadd.f32 %v3333, %v4079
        %v4081 = vpop.f32.mrb[0].mxu0
        %v4082 = vadd.f32 %v3337, %v4081
        %v4083 = vpop.f32.mrb[0].mxu0
        %v4084 = vadd.f32 %v3333, %v4083
        %v4085 = vpop.f32.mrb[0].mxu0
        %v4086 = vadd.f32 %v3337, %v4085
        %4087 = vdwg.mxu0
        %4088 = vmatprep.subr.bf16.mxu0 %v3751
        %4089 = vmatpush1.bf16.msra.mxu0 %v3750
        %4090 = vmatprep.subr.bf16.mxu0 %v3759
        %4091 = vmatpush1.bf16.msra.mxu0 %v3758
        %4092 = vmatprep.subr.bf16.mxu0 %v3767
        %4093 = vmatpush1.bf16.msra.mxu0 %v3766
        %4094 = vmatprep.subr.bf16.mxu0 %v3775
        %4095 = vmatpush1.bf16.msra.mxu0 %v3774
        %4096 = vmatprep.subr.bf16.mxu0 %v3783
        %4097 = vmatpush1.bf16.msra.mxu0 %v3782
        %4098 = vmatprep.subr.bf16.mxu0 %v3791
        %4099 = vmatpush1.bf16.msra.mxu0 %v3790
        %4100 = vmatprep.subr.bf16.mxu0 %v3799
        %4101 = vmatpush1.bf16.msra.mxu0 %v3798
        %4102 = vmatprep.subr.bf16.mxu0 %v3807
        %4103 = vmatpush1.bf16.msra.mxu0 %v3806
        %4104 = vmatprep.subr.bf16.mxu0 %v3815
        %4105 = vmatpush1.bf16.msra.mxu0 %v3814
        %4106 = vmatprep.subr.bf16.mxu0 %v3823
        %4107 = vmatpush1.bf16.msra.mxu0 %v3822
        %4108 = vmatprep.subr.bf16.mxu0 %v3831
        %4109 = vmatpush1.bf16.msra.mxu0 %v3830
        %4110 = vmatprep.subr.bf16.mxu0 %v3839
        %4111 = vmatpush1.bf16.msra.mxu0 %v3838
        %4112 = vmatprep.subr.bf16.mxu0 %v3847
        %4113 = vmatpush1.bf16.msra.mxu0 %v3846
        %4114 = vmatprep.subr.bf16.mxu0 %v3855
        %4115 = vmatpush1.bf16.msra.mxu0 %v3854
        %4116 = vmatprep.subr.bf16.mxu0 %v3863
        %4117 = vmatpush1.bf16.msra.mxu0 %v3862
        %4118 = vmatprep.subr.bf16.mxu0 %v3871
        %4119 = vmatpush1.bf16.msra.mxu0 %v3870
        %4120 = vmatprep.mubr.bf16.mxu0 %v3319
        %4121 = vmatmul.mubr.bf16.gmra.mrb[0].mxu0 %v3318
        %v4122 = vpop.f32.mrb[0].mxu0
        %v4123 = vadd.f32 %v3341, %v4122
        %v4124 = vpop.f32.mrb[0].mxu0
        %v4125 = vadd.f32 %v3345, %v4124
        %v4126 = vpop.f32.mrb[0].mxu0
        %v4127 = vadd.f32 %v3341, %v4126
        %v4128 = vpop.f32.mrb[0].mxu0
        %v4129 = vadd.f32 %v3345, %v4128
        %4130 = vdwg.mxu0
        %4131 = vmatprep.subr.bf16.mxu0 %v3753
        %4132 = vmatpush1.bf16.msra.mxu0 %v3752
        %4133 = vmatprep.subr.bf16.mxu0 %v3761
        %4134 = vmatpush1.bf16.msra.mxu0 %v3760
        %4135 = vmatprep.subr.bf16.mxu0 %v3769
        %4136 = vmatpush1.bf16.msra.mxu0 %v3768
        %4137 = vmatprep.subr.bf16.mxu0 %v3777
        %4138 = vmatpush1.bf16.msra.mxu0 %v3776
        %4139 = vmatprep.subr.bf16.mxu0 %v3785
        %4140 = vmatpush1.bf16.msra.mxu0 %v3784
        %4141 = vmatprep.subr.bf16.mxu0 %v3793
        %4142 = vmatpush1.bf16.msra.mxu0 %v3792
        %4143 = vmatprep.subr.bf16.mxu0 %v3801
        %4144 = vmatpush1.bf16.msra.mxu0 %v3800
        %4145 = vmatprep.subr.bf16.mxu0 %v3809
        %4146 = vmatpush1.bf16.msra.mxu0 %v3808
        %4147 = vmatprep.subr.bf16.mxu0 %v3817
        %4148 = vmatpush1.bf16.msra.mxu0 %v3816
        %4149 = vmatprep.subr.bf16.mxu0 %v3825
        %4150 = vmatpush1.bf16.msra.mxu0 %v3824
        %4151 = vmatprep.subr.bf16.mxu0 %v3833
        %4152 = vmatpush1.bf16.msra.mxu0 %v3832
        %4153 = vmatprep.subr.bf16.mxu0 %v3841
        %4154 = vmatpush1.bf16.msra.mxu0 %v3840
        %4155 = vmatprep.subr.bf16.mxu0 %v3849
        %4156 = vmatpush1.bf16.msra.mxu0 %v3848
        %4157 = vmatprep.subr.bf16.mxu0 %v3857
        %4158 = vmatpush1.bf16.msra.mxu0 %v3856
        %4159 = vmatprep.subr.bf16.mxu0 %v3865
        %4160 = vmatpush1.bf16.msra.mxu0 %v3864
        %4161 = vmatprep.subr.bf16.mxu0 %v3873
        %4162 = vmatpush1.bf16.msra.mxu0 %v3872
        %4163 = vmatprep.mubr.bf16.mxu0 %v3319
        %4164 = vmatmul.mubr.bf16.gmra.mrb[0].mxu0 %v3318
        %v4165 = vpop.f32.mrb[0].mxu0
        %v4166 = vadd.f32 %v3349, %v4165
        %v4167 = vpop.f32.mrb[0].mxu0
        %v4168 = vadd.f32 %v3353, %v4167
        %v4169 = vpop.f32.mrb[0].mxu0
        %v4170 = vadd.f32 %v3349, %v4169
        %v4171 = vpop.f32.mrb[0].mxu0
        %v4172 = vadd.f32 %v3353, %v4171
        %4173 = vdwg.mxu0
        %v4174 = vmul.f32 %v4037, 0.5
        %v4175 = vmul.f32 %v4039, 0.5
        %v4176 = vmul.f32 %v4080, 0.5
        %v4177 = vmul.f32 %v4082, 0.5
        %v4178 = vmul.f32 %v4123, 0.5
        %v4179 = vmul.f32 %v4125, 0.5
        %v4180 = vmul.f32 %v4166, 0.5
        %v4181 = vmul.f32 %v4168, 0.5
        %v4182 = vmul.f32 %v4041, 0.5
        %v4183 = vmul.f32 %v4043, 0.5
        %v4184 = vmul.f32 %v4084, 0.5
        %v4185 = vmul.f32 %v4086, 0.5
        %v4186 = vmul.f32 %v4127, 0.5
        %v4187 = vmul.f32 %v4129, 0.5
        %v4188 = vmul.f32 %v4170, 0.5
        %v4189 = vmul.f32 %v4172, 0.5
        %v4190 = vmul.f32 %v4037, 0.044715
        %v4191 = vmul.f32 %v4039, 0.044715
        %v4192 = vmul.f32 %v4080, 0.044715
        %v4193 = vmul.f32 %v4082, 0.044715
        %v4194 = vmul.f32 %v4123, 0.044715
        %v4195 = vmul.f32 %v4125, 0.044715
        %v4196 = vmul.f32 %v4166, 0.044715
        %v4197 = vmul.f32 %v4168, 0.044715
        %v4198 = vmul.f32 %v4041, 0.044715
        %v4199 = vmul.f32 %v4043, 0.044715
        %v4200 = vmul.f32 %v4084, 0.044715
        %v4201 = vmul.f32 %v4086, 0.044715
        %v4202 = vmul.f32 %v4127, 0.044715
        %v4203 = vmul.f32 %v4129, 0.044715
        %v4204 = vmul.f32 %v4170, 0.044715
        %v4205 = vmul.f32 %v4172, 0.044715
        %v4206 = vmul.f32 %v4190, %v4037
        %v4207 = vmul.f32 %v4191, %v4039
        %v4208 = vmul.f32 %v4192, %v4080
        %v4209 = vmul.f32 %v4193, %v4082
        %v4210 = vmul.f32 %v4194, %v4123
        %v4211 = vmul.f32 %v4195, %v4125
        %v4212 = vmul.f32 %v4196, %v4166
        %v4213 = vmul.f32 %v4197, %v4168
        %v4214 = vmul.f32 %v4198, %v4041
        %v4215 = vmul.f32 %v4199, %v4043
        %v4216 = vmul.f32 %v4200, %v4084
        %v4217 = vmul.f32 %v4201, %v4086
        %v4218 = vmul.f32 %v4202, %v4127
        %v4219 = vmul.f32 %v4203, %v4129
        %v4220 = vmul.f32 %v4204, %v4170
        %v4221 = vmul.f32 %v4205, %v4172
        %v4222 = vmul.f32 %v4206, %v4037
        %v4223 = vmul.f32 %v4207, %v4039
        %v4224 = vmul.f32 %v4208, %v4080
        %v4225 = vmul.f32 %v4209, %v4082
        %v4226 = vmul.f32 %v4210, %v4123
        %v4227 = vmul.f32 %v4211, %v4125
        %v4228 = vmul.f32 %v4212, %v4166
        %v4229 = vmul.f32 %v4213, %v4168
        %v4230 = vmul.f32 %v4214, %v4041
        %v4231 = vmul.f32 %v4215, %v4043
        %v4232 = vmul.f32 %v4216, %v4084
        %v4233 = vmul.f32 %v4217, %v4086
        %v4234 = vmul.f32 %v4218, %v4127
        %v4235 = vmul.f32 %v4219, %v4129
        %v4236 = vmul.f32 %v4220, %v4170
        %v4237 = vmul.f32 %v4221, %v4172
        %v4238 = vadd.f32 %v4037, %v4222
        %v4239 = vadd.f32 %v4039, %v4223
        %v4240 = vadd.f32 %v4080, %v4224
        %v4241 = vadd.f32 %v4082, %v4225
        %v4242 = vadd.f32 %v4123, %v4226
        %v4243 = vadd.f32 %v4125, %v4227
        %v4244 = vadd.f32 %v4166, %v4228
        %v4245 = vadd.f32 %v4168, %v4229
        %v4246 = vadd.f32 %v4041, %v4230
        %v4247 = vadd.f32 %v4043, %v4231
        %v4248 = vadd.f32 %v4084, %v4232
        %v4249 = vadd.f32 %v4086, %v4233
        %v4250 = vadd.f32 %v4127, %v4234
        %v4251 = vadd.f32 %v4129, %v4235
        %v4252 = vadd.f32 %v4170, %v4236
        %v4253 = vadd.f32 %v4172, %v4237
        %v4254 = vmul.f32 %v4238, 0.7978846
        %v4255 = vmul.f32 %v4239, 0.7978846
        %v4256 = vmul.f32 %v4240, 0.7978846
        %v4257 = vmul.f32 %v4241, 0.7978846
        %v4258 = vmul.f32 %v4242, 0.7978846
        %v4259 = vmul.f32 %v4243, 0.7978846
        %v4260 = vmul.f32 %v4244, 0.7978846
        %v4261 = vmul.f32 %v4245, 0.7978846
        %v4262 = vmul.f32 %v4246, 0.7978846
        %v4263 = vmul.f32 %v4247, 0.7978846
        %v4264 = vmul.f32 %v4248, 0.7978846
        %v4265 = vmul.f32 %v4249, 0.7978846
        %v4266 = vmul.f32 %v4250, 0.7978846
        %v4267 = vmul.f32 %v4251, 0.7978846
        %v4268 = vmul.f32 %v4252, 0.7978846
        %v4269 = vmul.f32 %v4253, 0.7978846
        %v4270 = vtanh.pop %v4254
        %v4271 = vtanh.pop %v4255
        %v4272 = vtanh.pop %v4256
        %v4273 = vtanh.pop %v4257
        %v4274 = vtanh.pop %v4258
        %v4275 = vtanh.pop %v4259
        %v4276 = vtanh.pop %v4260
        %v4277 = vtanh.pop %v4261
        %v4278 = vtanh.pop %v4262
        %v4279 = vtanh.pop %v4263
        %v4280 = vtanh.pop %v4264
        %v4281 = vtanh.pop %v4265
        %v4282 = vtanh.pop %v4266
        %v4283 = vtanh.pop %v4267
        %v4284 = vtanh.pop %v4268
        %v4285 = vtanh.pop %v4269
        %v4286 = vadd.f32 %v4270, 1.0
        %v4287 = vadd.f32 %v4271, 1.0
        %v4288 = vadd.f32 %v4272, 1.0
        %v4289 = vadd.f32 %v4273, 1.0
        %v4290 = vadd.f32 %v4274, 1.0
        %v4291 = vadd.f32 %v4275, 1.0
        %v4292 = vadd.f32 %v4276, 1.0
        %v4293 = vadd.f32 %v4277, 1.0
        %v4294 = vadd.f32 %v4278, 1.0
        %v4295 = vadd.f32 %v4279, 1.0
        %v4296 = vadd.f32 %v4280, 1.0
        %v4297 = vadd.f32 %v4281, 1.0
        %v4298 = vadd.f32 %v4282, 1.0
        %v4299 = vadd.f32 %v4283, 1.0
        %v4300 = vadd.f32 %v4284, 1.0
        %v4301 = vadd.f32 %v4285, 1.0
        %v4302 = vmul.f32 %v4174, %v4286
        %v4303 = vmul.f32 %v4175, %v4287
        %v4304 = vmul.f32 %v4176, %v4288
        %v4305 = vmul.f32 %v4177, %v4289
        %v4306 = vmul.f32 %v4178, %v4290
        %v4307 = vmul.f32 %v4179, %v4291
        %v4308 = vmul.f32 %v4180, %v4292
        %v4309 = vmul.f32 %v4181, %v4293
        %v4310 = vmul.f32 %v4182, %v4294
        %v4311 = vmul.f32 %v4183, %v4295
        %v4312 = vmul.f32 %v4184, %v4296
        %v4313 = vmul.f32 %v4185, %v4297
        %v4314 = vmul.f32 %v4186, %v4298
        %v4315 = vmul.f32 %v4187, %v4299
        %v4316 = vmul.f32 %v4188, %v4300
        %v4317 = vmul.f32 %v4189, %v4301
        %v4318 = vld [vmem:[#allocation22] sm:$0xff]
        %v4319 = vld [vmem:[#allocation22 + $0x8] sm:$0xff]
        %v4320 = vld [vmem:[#allocation22 + $0x10] sm:$0xff]
        %v4321 = vld [vmem:[#allocation22 + $0x18] sm:$0xff]
        %v4322 = vld [vmem:[#allocation22 + $0x20] sm:$0xff]
        %v4323 = vld [vmem:[#allocation22 + $0x28] sm:$0xff]
        %v4324 = vld [vmem:[#allocation22 + $0x30] sm:$0xff]
        %v4325 = vld [vmem:[#allocation22 + $0x38] sm:$0xff]
        %v4326 = vld [vmem:[#allocation22 + $0x40] sm:$0xff]
        %v4327 = vld [vmem:[#allocation22 + $0x48] sm:$0xff]
        %v4328 = vld [vmem:[#allocation22 + $0x50] sm:$0xff]
        %v4329 = vld [vmem:[#allocation22 + $0x58] sm:$0xff]
        %v4330 = vld [vmem:[#allocation22 + $0x60] sm:$0xff]
        %v4331 = vld [vmem:[#allocation22 + $0x68] sm:$0xff]
        %v4332 = vld [vmem:[#allocation22 + $0x70] sm:$0xff]
        %v4333 = vld [vmem:[#allocation22 + $0x78] sm:$0xff]
        %v4334 = vld [vmem:[#allocation22 + $0x80] sm:$0xff]
        %v4335 = vld [vmem:[#allocation22 + $0x88] sm:$0xff]
        %v4336 = vld [vmem:[#allocation22 + $0x90] sm:$0xff]
        %v4337 = vld [vmem:[#allocation22 + $0x98] sm:$0xff]
        %v4338 = vld [vmem:[#allocation22 + $0xa0] sm:$0xff]
        %v4339 = vld [vmem:[#allocation22 + $0xa8] sm:$0xff]
        %v4340 = vld [vmem:[#allocation22 + $0xb0] sm:$0xff]
        %v4341 = vld [vmem:[#allocation22 + $0xb8] sm:$0xff]
        %v4342 = vld [vmem:[#allocation22 + $0xc0] sm:$0xff]
        %v4343 = vld [vmem:[#allocation22 + $0xc8] sm:$0xff]
        %v4344 = vld [vmem:[#allocation22 + $0xd0] sm:$0xff]
        %v4345 = vld [vmem:[#allocation22 + $0xd8] sm:$0xff]
        %v4346 = vld [vmem:[#allocation22 + $0xe0] sm:$0xff]
        %v4347 = vld [vmem:[#allocation22 + $0xe8] sm:$0xff]
        %v4348 = vld [vmem:[#allocation22 + $0xf0] sm:$0xff]
        %v4349 = vld [vmem:[#allocation22 + $0xf8] sm:$0xff]
        %v4350 = vld [vmem:[#allocation22 + $0x100] sm:$0xff]
        %v4351 = vld [vmem:[#allocation22 + $0x108] sm:$0xff]
        %v4352 = vld [vmem:[#allocation22 + $0x110] sm:$0xff]
        %v4353 = vld [vmem:[#allocation22 + $0x118] sm:$0xff]
        %v4354 = vld [vmem:[#allocation22 + $0x120] sm:$0xff]
        %v4355 = vld [vmem:[#allocation22 + $0x128] sm:$0xff]
        %v4356 = vld [vmem:[#allocation22 + $0x130] sm:$0xff]
        %v4357 = vld [vmem:[#allocation22 + $0x138] sm:$0xff]
        %v4358 = vld [vmem:[#allocation22 + $0x140] sm:$0xff]
        %v4359 = vld [vmem:[#allocation22 + $0x148] sm:$0xff]
        %v4360 = vld [vmem:[#allocation22 + $0x150] sm:$0xff]
        %v4361 = vld [vmem:[#allocation22 + $0x158] sm:$0xff]
        %v4362 = vld [vmem:[#allocation22 + $0x160] sm:$0xff]
        %v4363 = vld [vmem:[#allocation22 + $0x168] sm:$0xff]
        %v4364 = vld [vmem:[#allocation22 + $0x170] sm:$0xff]
        %v4365 = vld [vmem:[#allocation22 + $0x178] sm:$0xff]
        %v4366 = vld [vmem:[#allocation22 + $0x180] sm:$0xff]
        %v4367 = vld [vmem:[#allocation22 + $0x188] sm:$0xff]
        %v4368 = vld [vmem:[#allocation22 + $0x190] sm:$0xff]
        %v4369 = vld [vmem:[#allocation22 + $0x198] sm:$0xff]
        %v4370 = vld [vmem:[#allocation22 + $0x1a0] sm:$0xff]
        %v4371 = vld [vmem:[#allocation22 + $0x1a8] sm:$0xff]
        %v4372 = vld [vmem:[#allocation22 + $0x1b0] sm:$0xff]
        %v4373 = vld [vmem:[#allocation22 + $0x1b8] sm:$0xff]
        %v4374 = vld [vmem:[#allocation22 + $0x1c0] sm:$0xff]
        %v4375 = vld [vmem:[#allocation22 + $0x1c8] sm:$0xff]
        %v4376 = vld [vmem:[#allocation22 + $0x1d0] sm:$0xff]
        %v4377 = vld [vmem:[#allocation22 + $0x1d8] sm:$0xff]
        %v4378 = vld [vmem:[#allocation22 + $0x1e0] sm:$0xff]
        %v4379 = vld [vmem:[#allocation22 + $0x1e8] sm:$0xff]
        %v4380 = vld [vmem:[#allocation22 + $0x1f0] sm:$0xff]
        %v4381 = vld [vmem:[#allocation22 + $0x1f8] sm:$0xff]
        %v4382 = vld [vmem:[#allocation22 + $0x200] sm:$0xff]
        %v4383 = vld [vmem:[#allocation22 + $0x208] sm:$0xff]
        %v4384 = vld [vmem:[#allocation22 + $0x210] sm:$0xff]
        %v4385 = vld [vmem:[#allocation22 + $0x218] sm:$0xff]
        %v4386 = vld [vmem:[#allocation22 + $0x220] sm:$0xff]
        %v4387 = vld [vmem:[#allocation22 + $0x228] sm:$0xff]
        %v4388 = vld [vmem:[#allocation22 + $0x230] sm:$0xff]
        %v4389 = vld [vmem:[#allocation22 + $0x238] sm:$0xff]
        %v4390 = vld [vmem:[#allocation22 + $0x240] sm:$0xff]
        %v4391 = vld [vmem:[#allocation22 + $0x248] sm:$0xff]
        %v4392 = vld [vmem:[#allocation22 + $0x250] sm:$0xff]
        %v4393 = vld [vmem:[#allocation22 + $0x258] sm:$0xff]
        %v4394 = vld [vmem:[#allocation22 + $0x260] sm:$0xff]
        %v4395 = vld [vmem:[#allocation22 + $0x268] sm:$0xff]
        %v4396 = vld [vmem:[#allocation22 + $0x270] sm:$0xff]
        %v4397 = vld [vmem:[#allocation22 + $0x278] sm:$0xff]
        %v4398 = vld [vmem:[#allocation22 + $0x280] sm:$0xff]
        %v4399 = vld [vmem:[#allocation22 + $0x288] sm:$0xff]
        %v4400 = vld [vmem:[#allocation22 + $0x290] sm:$0xff]
        %v4401 = vld [vmem:[#allocation22 + $0x298] sm:$0xff]
        %v4402 = vld [vmem:[#allocation22 + $0x2a0] sm:$0xff]
        %v4403 = vld [vmem:[#allocation22 + $0x2a8] sm:$0xff]
        %v4404 = vld [vmem:[#allocation22 + $0x2b0] sm:$0xff]
        %v4405 = vld [vmem:[#allocation22 + $0x2b8] sm:$0xff]
        %v4406 = vld [vmem:[#allocation22 + $0x2c0] sm:$0xff]
        %v4407 = vld [vmem:[#allocation22 + $0x2c8] sm:$0xff]
        %v4408 = vld [vmem:[#allocation22 + $0x2d0] sm:$0xff]
        %v4409 = vld [vmem:[#allocation22 + $0x2d8] sm:$0xff]
        %v4410 = vld [vmem:[#allocation22 + $0x2e0] sm:$0xff]
        %v4411 = vld [vmem:[#allocation22 + $0x2e8] sm:$0xff]
        %v4412 = vld [vmem:[#allocation22 + $0x2f0] sm:$0xff]
        %v4413 = vld [vmem:[#allocation22 + $0x2f8] sm:$0xff]
        %v4414 = vld [vmem:[#allocation22 + $0x300] sm:$0xff]
        %v4415 = vld [vmem:[#allocation22 + $0x308] sm:$0xff]
        %v4416 = vld [vmem:[#allocation22 + $0x310] sm:$0xff]
        %v4417 = vld [vmem:[#allocation22 + $0x318] sm:$0xff]
        %v4418 = vld [vmem:[#allocation22 + $0x320] sm:$0xff]
        %v4419 = vld [vmem:[#allocation22 + $0x328] sm:$0xff]
        %v4420 = vld [vmem:[#allocation22 + $0x330] sm:$0xff]
        %v4421 = vld [vmem:[#allocation22 + $0x338] sm:$0xff]
        %v4422 = vld [vmem:[#allocation22 + $0x340] sm:$0xff]
        %v4423 = vld [vmem:[#allocation22 + $0x348] sm:$0xff]
        %v4424 = vld [vmem:[#allocation22 + $0x350] sm:$0xff]
        %v4425 = vld [vmem:[#allocation22 + $0x358] sm:$0xff]
        %v4426 = vld [vmem:[#allocation22 + $0x360] sm:$0xff]
        %v4427 = vld [vmem:[#allocation22 + $0x368] sm:$0xff]
        %v4428 = vld [vmem:[#allocation22 + $0x370] sm:$0xff]
        %v4429 = vld [vmem:[#allocation22 + $0x378] sm:$0xff]
        %v4430 = vld [vmem:[#allocation22 + $0x380] sm:$0xff]
        %v4431 = vld [vmem:[#allocation22 + $0x388] sm:$0xff]
        %v4432 = vld [vmem:[#allocation22 + $0x390] sm:$0xff]
        %v4433 = vld [vmem:[#allocation22 + $0x398] sm:$0xff]
        %v4434 = vld [vmem:[#allocation22 + $0x3a0] sm:$0xff]
        %v4435 = vld [vmem:[#allocation22 + $0x3a8] sm:$0xff]
        %v4436 = vld [vmem:[#allocation22 + $0x3b0] sm:$0xff]
        %v4437 = vld [vmem:[#allocation22 + $0x3b8] sm:$0xff]
        %v4438 = vld [vmem:[#allocation22 + $0x3c0] sm:$0xff]
        %v4439 = vld [vmem:[#allocation22 + $0x3c8] sm:$0xff]
        %v4440 = vld [vmem:[#allocation22 + $0x3d0] sm:$0xff]
        %v4441 = vld [vmem:[#allocation22 + $0x3d8] sm:$0xff]
        %v4442 = vld [vmem:[#allocation22 + $0x3e0] sm:$0xff]
        %v4443 = vld [vmem:[#allocation22 + $0x3e8] sm:$0xff]
        %v4444 = vld [vmem:[#allocation22 + $0x3f0] sm:$0xff]
        %v4445 = vld [vmem:[#allocation22 + $0x3f8] sm:$0xff]
        %v4446 = vpack.c.bf16 %v4310, %v4302
        %v4447 = vpack.c.bf16 %v4311, %v4303
        %v4448 = vpack.c.bf16 %v4312, %v4304
        %v4449 = vpack.c.bf16 %v4313, %v4305
        %v4450 = vpack.c.bf16 %v4314, %v4306
        %v4451 = vpack.c.bf16 %v4315, %v4307
        %v4452 = vpack.c.bf16 %v4316, %v4308
        %v4453 = vpack.c.bf16 %v4317, %v4309
        %v4454 = vld [vmem:[#allocation23] sm:$0x3]
        %v4456 = vlaneseq
        %v4457 = vshrl.u32 %v4456, 7
        %v4458 = vsub.s32 0, %v4457
        %v4459 = vrot.slane %v4454, %v4458
        %v4460 = vlaneseq
        %v4461 = vshrl.u32 %v4460, 7
        %v4462 = vsub.s32 1, %v4461
        %v4463 = vrot.slane %v4454, %v4462
        %v4594 = vunpack.c.l.b16 %v4318
        %v4595 = vunpack.c.h.b16 %v4318
        %v4596 = vunpack.c.l.b16 %v4319
        %v4597 = vunpack.c.h.b16 %v4319
        %v4598 = vunpack.c.l.b16 %v4320
        %v4599 = vunpack.c.h.b16 %v4320
        %v4600 = vunpack.c.l.b16 %v4321
        %v4601 = vunpack.c.h.b16 %v4321
        %v4602 = vunpack.c.l.b16 %v4322
        %v4603 = vunpack.c.h.b16 %v4322
        %v4604 = vunpack.c.l.b16 %v4323
        %v4605 = vunpack.c.h.b16 %v4323
        %v4606 = vunpack.c.l.b16 %v4324
        %v4607 = vunpack.c.h.b16 %v4324
        %v4608 = vunpack.c.l.b16 %v4325
        %v4609 = vunpack.c.h.b16 %v4325
        %v4610 = vunpack.c.l.b16 %v4326
        %v4611 = vunpack.c.h.b16 %v4326
        %v4612 = vunpack.c.l.b16 %v4327
        %v4613 = vunpack.c.h.b16 %v4327
        %v4614 = vunpack.c.l.b16 %v4328
        %v4615 = vunpack.c.h.b16 %v4328
        %v4616 = vunpack.c.l.b16 %v4329
        %v4617 = vunpack.c.h.b16 %v4329
        %v4618 = vunpack.c.l.b16 %v4330
        %v4619 = vunpack.c.h.b16 %v4330
        %v4620 = vunpack.c.l.b16 %v4331
        %v4621 = vunpack.c.h.b16 %v4331
        %v4622 = vunpack.c.l.b16 %v4332
        %v4623 = vunpack.c.h.b16 %v4332
        %v4624 = vunpack.c.l.b16 %v4333
        %v4625 = vunpack.c.h.b16 %v4333
        %v4626 = vunpack.c.l.b16 %v4334
        %v4627 = vunpack.c.h.b16 %v4334
        %v4628 = vunpack.c.l.b16 %v4335
        %v4629 = vunpack.c.h.b16 %v4335
        %v4630 = vunpack.c.l.b16 %v4336
        %v4631 = vunpack.c.h.b16 %v4336
        %v4632 = vunpack.c.l.b16 %v4337
        %v4633 = vunpack.c.h.b16 %v4337
        %v4634 = vunpack.c.l.b16 %v4338
        %v4635 = vunpack.c.h.b16 %v4338
        %v4636 = vunpack.c.l.b16 %v4339
        %v4637 = vunpack.c.h.b16 %v4339
        %v4638 = vunpack.c.l.b16 %v4340
        %v4639 = vunpack.c.h.b16 %v4340
        %v4640 = vunpack.c.l.b16 %v4341
        %v4641 = vunpack.c.h.b16 %v4341
        %v4642 = vunpack.c.l.b16 %v4342
        %v4643 = vunpack.c.h.b16 %v4342
        %v4644 = vunpack.c.l.b16 %v4343
        %v4645 = vunpack.c.h.b16 %v4343
        %v4646 = vunpack.c.l.b16 %v4344
        %v4647 = vunpack.c.h.b16 %v4344
        %v4648 = vunpack.c.l.b16 %v4345
        %v4649 = vunpack.c.h.b16 %v4345
        %v4650 = vunpack.c.l.b16 %v4346
        %v4651 = vunpack.c.h.b16 %v4346
        %v4652 = vunpack.c.l.b16 %v4347
        %v4653 = vunpack.c.h.b16 %v4347
        %v4654 = vunpack.c.l.b16 %v4348
        %v4655 = vunpack.c.h.b16 %v4348
        %v4656 = vunpack.c.l.b16 %v4349
        %v4657 = vunpack.c.h.b16 %v4349
        %v4658 = vunpack.c.l.b16 %v4350
        %v4659 = vunpack.c.h.b16 %v4350
        %v4660 = vunpack.c.l.b16 %v4351
        %v4661 = vunpack.c.h.b16 %v4351
        %v4662 = vunpack.c.l.b16 %v4352
        %v4663 = vunpack.c.h.b16 %v4352
        %v4664 = vunpack.c.l.b16 %v4353
        %v4665 = vunpack.c.h.b16 %v4353
        %v4666 = vunpack.c.l.b16 %v4354
        %v4667 = vunpack.c.h.b16 %v4354
        %v4668 = vunpack.c.l.b16 %v4355
        %v4669 = vunpack.c.h.b16 %v4355
        %v4670 = vunpack.c.l.b16 %v4356
        %v4671 = vunpack.c.h.b16 %v4356
        %v4672 = vunpack.c.l.b16 %v4357
        %v4673 = vunpack.c.h.b16 %v4357
        %v4674 = vunpack.c.l.b16 %v4358
        %v4675 = vunpack.c.h.b16 %v4358
        %v4676 = vunpack.c.l.b16 %v4359
        %v4677 = vunpack.c.h.b16 %v4359
        %v4678 = vunpack.c.l.b16 %v4360
        %v4679 = vunpack.c.h.b16 %v4360
        %v4680 = vunpack.c.l.b16 %v4361
        %v4681 = vunpack.c.h.b16 %v4361
        %v4682 = vunpack.c.l.b16 %v4362
        %v4683 = vunpack.c.h.b16 %v4362
        %v4684 = vunpack.c.l.b16 %v4363
        %v4685 = vunpack.c.h.b16 %v4363
        %v4686 = vunpack.c.l.b16 %v4364
        %v4687 = vunpack.c.h.b16 %v4364
        %v4688 = vunpack.c.l.b16 %v4365
        %v4689 = vunpack.c.h.b16 %v4365
        %v4690 = vunpack.c.l.b16 %v4366
        %v4691 = vunpack.c.h.b16 %v4366
        %v4692 = vunpack.c.l.b16 %v4367
        %v4693 = vunpack.c.h.b16 %v4367
        %v4694 = vunpack.c.l.b16 %v4368
        %v4695 = vunpack.c.h.b16 %v4368
        %v4696 = vunpack.c.l.b16 %v4369
        %v4697 = vunpack.c.h.b16 %v4369
        %v4698 = vunpack.c.l.b16 %v4370
        %v4699 = vunpack.c.h.b16 %v4370
        %v4700 = vunpack.c.l.b16 %v4371
        %v4701 = vunpack.c.h.b16 %v4371
        %v4702 = vunpack.c.l.b16 %v4372
        %v4703 = vunpack.c.h.b16 %v4372
        %v4704 = vunpack.c.l.b16 %v4373
        %v4705 = vunpack.c.h.b16 %v4373
        %v4706 = vunpack.c.l.b16 %v4374
        %v4707 = vunpack.c.h.b16 %v4374
        %v4708 = vunpack.c.l.b16 %v4375
        %v4709 = vunpack.c.h.b16 %v4375
        %v4710 = vunpack.c.l.b16 %v4376
        %v4711 = vunpack.c.h.b16 %v4376
        %v4712 = vunpack.c.l.b16 %v4377
        %v4713 = vunpack.c.h.b16 %v4377
        %v4714 = vunpack.c.l.b16 %v4378
        %v4715 = vunpack.c.h.b16 %v4378
        %v4716 = vunpack.c.l.b16 %v4379
        %v4717 = vunpack.c.h.b16 %v4379
        %v4718 = vunpack.c.l.b16 %v4380
        %v4719 = vunpack.c.h.b16 %v4380
        %v4720 = vunpack.c.l.b16 %v4381
        %v4721 = vunpack.c.h.b16 %v4381
        %v4722 = vunpack.c.l.b16 %v4382
        %v4723 = vunpack.c.h.b16 %v4382
        %v4724 = vunpack.c.l.b16 %v4383
        %v4725 = vunpack.c.h.b16 %v4383
        %v4726 = vunpack.c.l.b16 %v4384
        %v4727 = vunpack.c.h.b16 %v4384
        %v4728 = vunpack.c.l.b16 %v4385
        %v4729 = vunpack.c.h.b16 %v4385
        %v4730 = vunpack.c.l.b16 %v4386
        %v4731 = vunpack.c.h.b16 %v4386
        %v4732 = vunpack.c.l.b16 %v4387
        %v4733 = vunpack.c.h.b16 %v4387
        %v4734 = vunpack.c.l.b16 %v4388
        %v4735 = vunpack.c.h.b16 %v4388
        %v4736 = vunpack.c.l.b16 %v4389
        %v4737 = vunpack.c.h.b16 %v4389
        %v4738 = vunpack.c.l.b16 %v4390
        %v4739 = vunpack.c.h.b16 %v4390
        %v4740 = vunpack.c.l.b16 %v4391
        %v4741 = vunpack.c.h.b16 %v4391
        %v4742 = vunpack.c.l.b16 %v4392
        %v4743 = vunpack.c.h.b16 %v4392
        %v4744 = vunpack.c.l.b16 %v4393
        %v4745 = vunpack.c.h.b16 %v4393
        %v4746 = vunpack.c.l.b16 %v4394
        %v4747 = vunpack.c.h.b16 %v4394
        %v4748 = vunpack.c.l.b16 %v4395
        %v4749 = vunpack.c.h.b16 %v4395
        %v4750 = vunpack.c.l.b16 %v4396
        %v4751 = vunpack.c.h.b16 %v4396
        %v4752 = vunpack.c.l.b16 %v4397
        %v4753 = vunpack.c.h.b16 %v4397
        %v4754 = vunpack.c.l.b16 %v4398
        %v4755 = vunpack.c.h.b16 %v4398
        %v4756 = vunpack.c.l.b16 %v4399
        %v4757 = vunpack.c.h.b16 %v4399
        %v4758 = vunpack.c.l.b16 %v4400
        %v4759 = vunpack.c.h.b16 %v4400
        %v4760 = vunpack.c.l.b16 %v4401
        %v4761 = vunpack.c.h.b16 %v4401
        %v4762 = vunpack.c.l.b16 %v4402
        %v4763 = vunpack.c.h.b16 %v4402
        %v4764 = vunpack.c.l.b16 %v4403
        %v4765 = vunpack.c.h.b16 %v4403
        %v4766 = vunpack.c.l.b16 %v4404
        %v4767 = vunpack.c.h.b16 %v4404
        %v4768 = vunpack.c.l.b16 %v4405
        %v4769 = vunpack.c.h.b16 %v4405
        %v4770 = vunpack.c.l.b16 %v4406
        %v4771 = vunpack.c.h.b16 %v4406
        %v4772 = vunpack.c.l.b16 %v4407
        %v4773 = vunpack.c.h.b16 %v4407
        %v4774 = vunpack.c.l.b16 %v4408
        %v4775 = vunpack.c.h.b16 %v4408
        %v4776 = vunpack.c.l.b16 %v4409
        %v4777 = vunpack.c.h.b16 %v4409
        %v4778 = vunpack.c.l.b16 %v4410
        %v4779 = vunpack.c.h.b16 %v4410
        %v4780 = vunpack.c.l.b16 %v4411
        %v4781 = vunpack.c.h.b16 %v4411
        %v4782 = vunpack.c.l.b16 %v4412
        %v4783 = vunpack.c.h.b16 %v4412
        %v4784 = vunpack.c.l.b16 %v4413
        %v4785 = vunpack.c.h.b16 %v4413
        %v4786 = vunpack.c.l.b16 %v4414
        %v4787 = vunpack.c.h.b16 %v4414
        %v4788 = vunpack.c.l.b16 %v4415
        %v4789 = vunpack.c.h.b16 %v4415
        %v4790 = vunpack.c.l.b16 %v4416
        %v4791 = vunpack.c.h.b16 %v4416
        %v4792 = vunpack.c.l.b16 %v4417
        %v4793 = vunpack.c.h.b16 %v4417
        %v4794 = vunpack.c.l.b16 %v4418
        %v4795 = vunpack.c.h.b16 %v4418
        %v4796 = vunpack.c.l.b16 %v4419
        %v4797 = vunpack.c.h.b16 %v4419
        %v4798 = vunpack.c.l.b16 %v4420
        %v4799 = vunpack.c.h.b16 %v4420
        %v4800 = vunpack.c.l.b16 %v4421
        %v4801 = vunpack.c.h.b16 %v4421
        %v4802 = vunpack.c.l.b16 %v4422
        %v4803 = vunpack.c.h.b16 %v4422
        %v4804 = vunpack.c.l.b16 %v4423
        %v4805 = vunpack.c.h.b16 %v4423
        %v4806 = vunpack.c.l.b16 %v4424
        %v4807 = vunpack.c.h.b16 %v4424
        %v4808 = vunpack.c.l.b16 %v4425
        %v4809 = vunpack.c.h.b16 %v4425
        %v4810 = vunpack.c.l.b16 %v4426
        %v4811 = vunpack.c.h.b16 %v4426
        %v4812 = vunpack.c.l.b16 %v4427
        %v4813 = vunpack.c.h.b16 %v4427
        %v4814 = vunpack.c.l.b16 %v4428
        %v4815 = vunpack.c.h.b16 %v4428
        %v4816 = vunpack.c.l.b16 %v4429
        %v4817 = vunpack.c.h.b16 %v4429
        %v4818 = vunpack.c.l.b16 %v4430
        %v4819 = vunpack.c.h.b16 %v4430
        %v4820 = vunpack.c.l.b16 %v4431
        %v4821 = vunpack.c.h.b16 %v4431
        %v4822 = vunpack.c.l.b16 %v4432
        %v4823 = vunpack.c.h.b16 %v4432
        %v4824 = vunpack.c.l.b16 %v4433
        %v4825 = vunpack.c.h.b16 %v4433
        %v4826 = vunpack.c.l.b16 %v4434
        %v4827 = vunpack.c.h.b16 %v4434
        %v4828 = vunpack.c.l.b16 %v4435
        %v4829 = vunpack.c.h.b16 %v4435
        %v4830 = vunpack.c.l.b16 %v4436
        %v4831 = vunpack.c.h.b16 %v4436
        %v4832 = vunpack.c.l.b16 %v4437
        %v4833 = vunpack.c.h.b16 %v4437
        %v4834 = vunpack.c.l.b16 %v4438
        %v4835 = vunpack.c.h.b16 %v4438
        %v4836 = vunpack.c.l.b16 %v4439
        %v4837 = vunpack.c.h.b16 %v4439
        %v4838 = vunpack.c.l.b16 %v4440
        %v4839 = vunpack.c.h.b16 %v4440
        %v4840 = vunpack.c.l.b16 %v4441
        %v4841 = vunpack.c.h.b16 %v4441
        %v4842 = vunpack.c.l.b16 %v4442
        %v4843 = vunpack.c.h.b16 %v4442
        %v4844 = vunpack.c.l.b16 %v4443
        %v4845 = vunpack.c.h.b16 %v4443
        %v4846 = vunpack.c.l.b16 %v4444
        %v4847 = vunpack.c.h.b16 %v4444
        %v4848 = vunpack.c.l.b16 %v4445
        %v4849 = vunpack.c.h.b16 %v4445
        %v4850 = vpack.c.b16 %v4596, %v4594
        %v4851 = vpack.c.b16 %v4597, %v4595
        %v4852 = vpack.c.b16 %v4600, %v4598
        %v4853 = vpack.c.b16 %v4601, %v4599
        %v4854 = vpack.c.b16 %v4604, %v4602
        %v4855 = vpack.c.b16 %v4605, %v4603
        %v4856 = vpack.c.b16 %v4608, %v4606
        %v4857 = vpack.c.b16 %v4609, %v4607
        %v4858 = vpack.c.b16 %v4612, %v4610
        %v4859 = vpack.c.b16 %v4613, %v4611
        %v4860 = vpack.c.b16 %v4616, %v4614
        %v4861 = vpack.c.b16 %v4617, %v4615
        %v4862 = vpack.c.b16 %v4620, %v4618
        %v4863 = vpack.c.b16 %v4621, %v4619
        %v4864 = vpack.c.b16 %v4624, %v4622
        %v4865 = vpack.c.b16 %v4625, %v4623
        %v4866 = vpack.c.b16 %v4628, %v4626
        %v4867 = vpack.c.b16 %v4629, %v4627
        %v4868 = vpack.c.b16 %v4632, %v4630
        %v4869 = vpack.c.b16 %v4633, %v4631
        %v4870 = vpack.c.b16 %v4636, %v4634
        %v4871 = vpack.c.b16 %v4637, %v4635
        %v4872 = vpack.c.b16 %v4640, %v4638
        %v4873 = vpack.c.b16 %v4641, %v4639
        %v4874 = vpack.c.b16 %v4644, %v4642
        %v4875 = vpack.c.b16 %v4645, %v4643
        %v4876 = vpack.c.b16 %v4648, %v4646
        %v4877 = vpack.c.b16 %v4649, %v4647
        %v4878 = vpack.c.b16 %v4652, %v4650
        %v4879 = vpack.c.b16 %v4653, %v4651
        %v4880 = vpack.c.b16 %v4656, %v4654
        %v4881 = vpack.c.b16 %v4657, %v4655
        %v4882 = vpack.c.b16 %v4660, %v4658
        %v4883 = vpack.c.b16 %v4661, %v4659
        %v4884 = vpack.c.b16 %v4664, %v4662
        %v4885 = vpack.c.b16 %v4665, %v4663
        %v4886 = vpack.c.b16 %v4668, %v4666
        %v4887 = vpack.c.b16 %v4669, %v4667
        %v4888 = vpack.c.b16 %v4672, %v4670
        %v4889 = vpack.c.b16 %v4673, %v4671
        %v4890 = vpack.c.b16 %v4676, %v4674
        %v4891 = vpack.c.b16 %v4677, %v4675
        %v4892 = vpack.c.b16 %v4680, %v4678
        %v4893 = vpack.c.b16 %v4681, %v4679
        %v4894 = vpack.c.b16 %v4684, %v4682
        %v4895 = vpack.c.b16 %v4685, %v4683
        %v4896 = vpack.c.b16 %v4688, %v4686
        %v4897 = vpack.c.b16 %v4689, %v4687
        %v4898 = vpack.c.b16 %v4692, %v4690
        %v4899 = vpack.c.b16 %v4693, %v4691
        %v4900 = vpack.c.b16 %v4696, %v4694
        %v4901 = vpack.c.b16 %v4697, %v4695
        %v4902 = vpack.c.b16 %v4700, %v4698
        %v4903 = vpack.c.b16 %v4701, %v4699
        %v4904 = vpack.c.b16 %v4704, %v4702
        %v4905 = vpack.c.b16 %v4705, %v4703
        %v4906 = vpack.c.b16 %v4708, %v4706
        %v4907 = vpack.c.b16 %v4709, %v4707
        %v4908 = vpack.c.b16 %v4712, %v4710
        %v4909 = vpack.c.b16 %v4713, %v4711
        %v4910 = vpack.c.b16 %v4716, %v4714
        %v4911 = vpack.c.b16 %v4717, %v4715
        %v4912 = vpack.c.b16 %v4720, %v4718
        %v4913 = vpack.c.b16 %v4721, %v4719
        %v4914 = vpack.c.b16 %v4724, %v4722
        %v4915 = vpack.c.b16 %v4725, %v4723
        %v4916 = vpack.c.b16 %v4728, %v4726
        %v4917 = vpack.c.b16 %v4729, %v4727
        %v4918 = vpack.c.b16 %v4732, %v4730
        %v4919 = vpack.c.b16 %v4733, %v4731
        %v4920 = vpack.c.b16 %v4736, %v4734
        %v4921 = vpack.c.b16 %v4737, %v4735
        %v4922 = vpack.c.b16 %v4740, %v4738
        %v4923 = vpack.c.b16 %v4741, %v4739
        %v4924 = vpack.c.b16 %v4744, %v4742
        %v4925 = vpack.c.b16 %v4745, %v4743
        %v4926 = vpack.c.b16 %v4748, %v4746
        %v4927 = vpack.c.b16 %v4749, %v4747
        %v4928 = vpack.c.b16 %v4752, %v4750
        %v4929 = vpack.c.b16 %v4753, %v4751
        %v4930 = vpack.c.b16 %v4756, %v4754
        %v4931 = vpack.c.b16 %v4757, %v4755
        %v4932 = vpack.c.b16 %v4760, %v4758
        %v4933 = vpack.c.b16 %v4761, %v4759
        %v4934 = vpack.c.b16 %v4764, %v4762
        %v4935 = vpack.c.b16 %v4765, %v4763
        %v4936 = vpack.c.b16 %v4768, %v4766
        %v4937 = vpack.c.b16 %v4769, %v4767
        %v4938 = vpack.c.b16 %v4772, %v4770
        %v4939 = vpack.c.b16 %v4773, %v4771
        %v4940 = vpack.c.b16 %v4776, %v4774
        %v4941 = vpack.c.b16 %v4777, %v4775
        %v4942 = vpack.c.b16 %v4780, %v4778
        %v4943 = vpack.c.b16 %v4781, %v4779
        %v4944 = vpack.c.b16 %v4784, %v4782
        %v4945 = vpack.c.b16 %v4785, %v4783
        %v4946 = vpack.c.b16 %v4788, %v4786
        %v4947 = vpack.c.b16 %v4789, %v4787
        %v4948 = vpack.c.b16 %v4792, %v4790
        %v4949 = vpack.c.b16 %v4793, %v4791
        %v4950 = vpack.c.b16 %v4796, %v4794
        %v4951 = vpack.c.b16 %v4797, %v4795
        %v4952 = vpack.c.b16 %v4800, %v4798
        %v4953 = vpack.c.b16 %v4801, %v4799
        %v4954 = vpack.c.b16 %v4804, %v4802
        %v4955 = vpack.c.b16 %v4805, %v4803
        %v4956 = vpack.c.b16 %v4808, %v4806
        %v4957 = vpack.c.b16 %v4809, %v4807
        %v4958 = vpack.c.b16 %v4812, %v4810
        %v4959 = vpack.c.b16 %v4813, %v4811
        %v4960 = vpack.c.b16 %v4816, %v4814
        %v4961 = vpack.c.b16 %v4817, %v4815
        %v4962 = vpack.c.b16 %v4820, %v4818
        %v4963 = vpack.c.b16 %v4821, %v4819
        %v4964 = vpack.c.b16 %v4824, %v4822
        %v4965 = vpack.c.b16 %v4825, %v4823
        %v4966 = vpack.c.b16 %v4828, %v4826
        %v4967 = vpack.c.b16 %v4829, %v4827
        %v4968 = vpack.c.b16 %v4832, %v4830
        %v4969 = vpack.c.b16 %v4833, %v4831
        %v4970 = vpack.c.b16 %v4836, %v4834
        %v4971 = vpack.c.b16 %v4837, %v4835
        %v4972 = vpack.c.b16 %v4840, %v4838
        %v4973 = vpack.c.b16 %v4841, %v4839
        %v4974 = vpack.c.b16 %v4844, %v4842
        %v4975 = vpack.c.b16 %v4845, %v4843
        %v4976 = vpack.c.b16 %v4848, %v4846
        %v4977 = vpack.c.b16 %v4849, %v4847
        %5106 = vmatprep.subr.bf16.mxu0 %v4851
        %5107 = vmatpush1.bf16.msra.mxu0 %v4850
        %5108 = vmatprep.subr.bf16.mxu0 %v4853
        %5109 = vmatpush1.bf16.msra.mxu0 %v4852
        %5110 = vmatprep.subr.bf16.mxu0 %v4855
        %5111 = vmatpush1.bf16.msra.mxu0 %v4854
        %5112 = vmatprep.subr.bf16.mxu0 %v4857
        %5113 = vmatpush1.bf16.msra.mxu0 %v4856
        %5114 = vmatprep.subr.bf16.mxu0 %v4859
        %5115 = vmatpush1.bf16.msra.mxu0 %v4858
        %5116 = vmatprep.subr.bf16.mxu0 %v4861
        %5117 = vmatpush1.bf16.msra.mxu0 %v4860
        %5118 = vmatprep.subr.bf16.mxu0 %v4863
        %5119 = vmatpush1.bf16.msra.mxu0 %v4862
        %5120 = vmatprep.subr.bf16.mxu0 %v4865
        %5121 = vmatpush1.bf16.msra.mxu0 %v4864
        %5122 = vmatprep.subr.bf16.mxu0 %v4867
        %5123 = vmatpush1.bf16.msra.mxu0 %v4866
        %5124 = vmatprep.subr.bf16.mxu0 %v4869
        %5125 = vmatpush1.bf16.msra.mxu0 %v4868
        %5126 = vmatprep.subr.bf16.mxu0 %v4871
        %5127 = vmatpush1.bf16.msra.mxu0 %v4870
        %5128 = vmatprep.subr.bf16.mxu0 %v4873
        %5129 = vmatpush1.bf16.msra.mxu0 %v4872
        %5130 = vmatprep.subr.bf16.mxu0 %v4875
        %5131 = vmatpush1.bf16.msra.mxu0 %v4874
        %5132 = vmatprep.subr.bf16.mxu0 %v4877
        %5133 = vmatpush1.bf16.msra.mxu0 %v4876
        %5134 = vmatprep.subr.bf16.mxu0 %v4879
        %5135 = vmatpush1.bf16.msra.mxu0 %v4878
        %5136 = vmatprep.subr.bf16.mxu0 %v4881
        %5137 = vmatpush1.bf16.msra.mxu0 %v4880
        %5138 = vmatprep.mubr.bf16.mxu0 %v4447
        %5139 = vmatmul.mubr.bf16.gmra.mrb[0].mxu0 %v4446
        %v5140 = vpop.f32.mrb[0].mxu0
        %v5141 = vadd.f32 %v4459, %v5140
        %v5142 = vpop.f32.mrb[0].mxu0
        %v5143 = vadd.f32 %v4463, %v5142
        %v5144 = vpop.f32.mrb[0].mxu0
        %v5145 = vadd.f32 %v4459, %v5144
        %v5146 = vpop.f32.mrb[0].mxu0
        %v5147 = vadd.f32 %v4463, %v5146
        %5148 = vdwg.mxu0
        %5149 = vmatprep.subr.bf16.mxu0 %v4883
        %5150 = vmatpush1.bf16.msra.mxu0 %v4882
        %5151 = vmatprep.subr.bf16.mxu0 %v4885
        %5152 = vmatpush1.bf16.msra.mxu0 %v4884
        %5153 = vmatprep.subr.bf16.mxu0 %v4887
        %5154 = vmatpush1.bf16.msra.mxu0 %v4886
        %5155 = vmatprep.subr.bf16.mxu0 %v4889
        %5156 = vmatpush1.bf16.msra.mxu0 %v4888
        %5157 = vmatprep.subr.bf16.mxu0 %v4891
        %5158 = vmatpush1.bf16.msra.mxu0 %v4890
        %5159 = vmatprep.subr.bf16.mxu0 %v4893
        %5160 = vmatpush1.bf16.msra.mxu0 %v4892
        %5161 = vmatprep.subr.bf16.mxu0 %v4895
        %5162 = vmatpush1.bf16.msra.mxu0 %v4894
        %5163 = vmatprep.subr.bf16.mxu0 %v4897
        %5164 = vmatpush1.bf16.msra.mxu0 %v4896
        %5165 = vmatprep.subr.bf16.mxu0 %v4899
        %5166 = vmatpush1.bf16.msra.mxu0 %v4898
        %5167 = vmatprep.subr.bf16.mxu0 %v4901
        %5168 = vmatpush1.bf16.msra.mxu0 %v4900
        %5169 = vmatprep.subr.bf16.mxu0 %v4903
        %5170 = vmatpush1.bf16.msra.mxu0 %v4902
        %5171 = vmatprep.subr.bf16.mxu0 %v4905
        %5172 = vmatpush1.bf16.msra.mxu0 %v4904
        %5173 = vmatprep.subr.bf16.mxu0 %v4907
        %5174 = vmatpush1.bf16.msra.mxu0 %v4906
        %5175 = vmatprep.subr.bf16.mxu0 %v4909
        %5176 = vmatpush1.bf16.msra.mxu0 %v4908
        %5177 = vmatprep.subr.bf16.mxu0 %v4911
        %5178 = vmatpush1.bf16.msra.mxu0 %v4910
        %5179 = vmatprep.subr.bf16.mxu0 %v4913
        %5180 = vmatpush1.bf16.msra.mxu0 %v4912
        %5181 = vmatprep.mubr.bf16.mxu0 %v4449
        %5182 = vmatmul.mubr.bf16.gmra.mrb[0].mxu0 %v4448
        %v5183 = vpop.f32.mrb[0].mxu0
        %v5184 = vadd.f32 %v5141, %v5183
        %v5185 = vpop.f32.mrb[0].mxu0
        %v5186 = vadd.f32 %v5143, %v5185
        %v5187 = vpop.f32.mrb[0].mxu0
        %v5188 = vadd.f32 %v5145, %v5187
        %v5189 = vpop.f32.mrb[0].mxu0
        %v5190 = vadd.f32 %v5147, %v5189
        %5191 = vdwg.mxu0
        %5192 = vmatprep.subr.bf16.mxu0 %v4915
        %5193 = vmatpush1.bf16.msra.mxu0 %v4914
        %5194 = vmatprep.subr.bf16.mxu0 %v4917
        %5195 = vmatpush1.bf16.msra.mxu0 %v4916
        %5196 = vmatprep.subr.bf16.mxu0 %v4919
        %5197 = vmatpush1.bf16.msra.mxu0 %v4918
        %5198 = vmatprep.subr.bf16.mxu0 %v4921
        %5199 = vmatpush1.bf16.msra.mxu0 %v4920
        %5200 = vmatprep.subr.bf16.mxu0 %v4923
        %5201 = vmatpush1.bf16.msra.mxu0 %v4922
        %5202 = vmatprep.subr.bf16.mxu0 %v4925
        %5203 = vmatpush1.bf16.msra.mxu0 %v4924
        %5204 = vmatprep.subr.bf16.mxu0 %v4927
        %5205 = vmatpush1.bf16.msra.mxu0 %v4926
        %5206 = vmatprep.subr.bf16.mxu0 %v4929
        %5207 = vmatpush1.bf16.msra.mxu0 %v4928
        %5208 = vmatprep.subr.bf16.mxu0 %v4931
        %5209 = vmatpush1.bf16.msra.mxu0 %v4930
        %5210 = vmatprep.subr.bf16.mxu0 %v4933
        %5211 = vmatpush1.bf16.msra.mxu0 %v4932
        %5212 = vmatprep.subr.bf16.mxu0 %v4935
        %5213 = vmatpush1.bf16.msra.mxu0 %v4934
        %5214 = vmatprep.subr.bf16.mxu0 %v4937
        %5215 = vmatpush1.bf16.msra.mxu0 %v4936
        %5216 = vmatprep.subr.bf16.mxu0 %v4939
        %5217 = vmatpush1.bf16.msra.mxu0 %v4938
        %5218 = vmatprep.subr.bf16.mxu0 %v4941
        %5219 = vmatpush1.bf16.msra.mxu0 %v4940
        %5220 = vmatprep.subr.bf16.mxu0 %v4943
        %5221 = vmatpush1.bf16.msra.mxu0 %v4942
        %5222 = vmatprep.subr.bf16.mxu0 %v4945
        %5223 = vmatpush1.bf16.msra.mxu0 %v4944
        %5224 = vmatprep.mubr.bf16.mxu0 %v4451
        %5225 = vmatmul.mubr.bf16.gmra.mrb[0].mxu0 %v4450
        %v5226 = vpop.f32.mrb[0].mxu0
        %v5227 = vadd.f32 %v5184, %v5226
        %v5228 = vpop.f32.mrb[0].mxu0
        %v5229 = vadd.f32 %v5186, %v5228
        %v5230 = vpop.f32.mrb[0].mxu0
        %v5231 = vadd.f32 %v5188, %v5230
        %v5232 = vpop.f32.mrb[0].mxu0
        %v5233 = vadd.f32 %v5190, %v5232
        %5234 = vdwg.mxu0
        %5235 = vmatprep.subr.bf16.mxu0 %v4947
        %5236 = vmatpush1.bf16.msra.mxu0 %v4946
        %5237 = vmatprep.subr.bf16.mxu0 %v4949
        %5238 = vmatpush1.bf16.msra.mxu0 %v4948
        %5239 = vmatprep.subr.bf16.mxu0 %v4951
        %5240 = vmatpush1.bf16.msra.mxu0 %v4950
        %5241 = vmatprep.subr.bf16.mxu0 %v4953
        %5242 = vmatpush1.bf16.msra.mxu0 %v4952
        %5243 = vmatprep.subr.bf16.mxu0 %v4955
        %5244 = vmatpush1.bf16.msra.mxu0 %v4954
        %5245 = vmatprep.subr.bf16.mxu0 %v4957
        %5246 = vmatpush1.bf16.msra.mxu0 %v4956
        %5247 = vmatprep.subr.bf16.mxu0 %v4959
        %5248 = vmatpush1.bf16.msra.mxu0 %v4958
        %5249 = vmatprep.subr.bf16.mxu0 %v4961
        %5250 = vmatpush1.bf16.msra.mxu0 %v4960
        %5251 = vmatprep.subr.bf16.mxu0 %v4963
        %5252 = vmatpush1.bf16.msra.mxu0 %v4962
        %5253 = vmatprep.subr.bf16.mxu0 %v4965
        %5254 = vmatpush1.bf16.msra.mxu0 %v4964
        %5255 = vmatprep.subr.bf16.mxu0 %v4967
        %5256 = vmatpush1.bf16.msra.mxu0 %v4966
        %5257 = vmatprep.subr.bf16.mxu0 %v4969
        %5258 = vmatpush1.bf16.msra.mxu0 %v4968
        %5259 = vmatprep.subr.bf16.mxu0 %v4971
        %5260 = vmatpush1.bf16.msra.mxu0 %v4970
        %5261 = vmatprep.subr.bf16.mxu0 %v4973
        %5262 = vmatpush1.bf16.msra.mxu0 %v4972
        %5263 = vmatprep.subr.bf16.mxu0 %v4975
        %5264 = vmatpush1.bf16.msra.mxu0 %v4974
        %5265 = vmatprep.subr.bf16.mxu0 %v4977
        %5266 = vmatpush1.bf16.msra.mxu0 %v4976
        %5267 = vmatprep.mubr.bf16.mxu0 %v4453
        %5268 = vmatmul.mubr.bf16.gmra.mrb[0].mxu0 %v4452
        %v5269 = vpop.f32.mrb[0].mxu0
        %v5270 = vadd.f32 %v5227, %v5269
        %v5271 = vpop.f32.mrb[0].mxu0
        %v5272 = vadd.f32 %v5229, %v5271
        %v5273 = vpop.f32.mrb[0].mxu0
        %v5274 = vadd.f32 %v5231, %v5273
        %v5275 = vpop.f32.mrb[0].mxu0
        %v5276 = vadd.f32 %v5233, %v5275
        %5277 = vdwg.mxu0
        %v5278 = vadd.f32 %v3104, %v5270
        %v5279 = vadd.f32 %v3105, %v5272
        %v5280 = vadd.f32 %v3106, %v5274
        %v5281 = vadd.f32 %v3107, %v5276
        %v5282 = vld [vmem:[#allocation26] sm:$0xff]
        %v5283 = vld [vmem:[#allocation26 + $0x8] sm:$0xff]
        %v5284 = vld [vmem:[#allocation26 + $0x10] sm:$0xff]
        %v5285 = vld [vmem:[#allocation26 + $0x18] sm:$0xff]
        %v5286 = vld [vmem:[#allocation26 + $0x20] sm:$0xff]
        %v5287 = vld [vmem:[#allocation26 + $0x28] sm:$0xff]
        %v5288 = vld [vmem:[#allocation26 + $0x30] sm:$0xff]
        %v5289 = vld [vmem:[#allocation26 + $0x38] sm:$0xff]
        %v5290 = vld [vmem:[#allocation26 + $0x40] sm:$0xff]
        %v5291 = vld [vmem:[#allocation26 + $0x48] sm:$0xff]
        %v5292 = vld [vmem:[#allocation26 + $0x50] sm:$0xff]
        %v5293 = vld [vmem:[#allocation26 + $0x58] sm:$0xff]
        %v5294 = vld [vmem:[#allocation26 + $0x60] sm:$0xff]
        %v5295 = vld [vmem:[#allocation26 + $0x68] sm:$0xff]
        %v5296 = vld [vmem:[#allocation26 + $0x70] sm:$0xff]
        %v5297 = vld [vmem:[#allocation26 + $0x78] sm:$0xff]
        %v5298 = vld [vmem:[#allocation26 + $0x80] sm:$0xff]
        %v5299 = vld [vmem:[#allocation26 + $0x88] sm:$0xff]
        %v5300 = vld [vmem:[#allocation26 + $0x90] sm:$0xff]
        %v5301 = vld [vmem:[#allocation26 + $0x98] sm:$0xff]
        %v5302 = vld [vmem:[#allocation26 + $0xa0] sm:$0xff]
        %v5303 = vld [vmem:[#allocation26 + $0xa8] sm:$0xff]
        %v5304 = vld [vmem:[#allocation26 + $0xb0] sm:$0xff]
        %v5305 = vld [vmem:[#allocation26 + $0xb8] sm:$0xff]
        %v5306 = vld [vmem:[#allocation26 + $0xc0] sm:$0xff]
        %v5307 = vld [vmem:[#allocation26 + $0xc8] sm:$0xff]
        %v5308 = vld [vmem:[#allocation26 + $0xd0] sm:$0xff]
        %v5309 = vld [vmem:[#allocation26 + $0xd8] sm:$0xff]
        %v5310 = vld [vmem:[#allocation26 + $0xe0] sm:$0xff]
        %v5311 = vld [vmem:[#allocation26 + $0xe8] sm:$0xff]
        %v5312 = vld [vmem:[#allocation26 + $0xf0] sm:$0xff]
        %v5313 = vld [vmem:[#allocation26 + $0xf8] sm:$0xff]
        %v5314 = vld [vmem:[#allocation26 + $0x100] sm:$0xff]
        %v5315 = vld [vmem:[#allocation26 + $0x108] sm:$0xff]
        %v5316 = vld [vmem:[#allocation26 + $0x110] sm:$0xff]
        %v5317 = vld [vmem:[#allocation26 + $0x118] sm:$0xff]
        %v5318 = vld [vmem:[#allocation26 + $0x120] sm:$0xff]
        %v5319 = vld [vmem:[#allocation26 + $0x128] sm:$0xff]
        %v5320 = vld [vmem:[#allocation26 + $0x130] sm:$0xff]
        %v5321 = vld [vmem:[#allocation26 + $0x138] sm:$0xff]
        %v5322 = vld [vmem:[#allocation26 + $0x140] sm:$0xff]
        %v5323 = vld [vmem:[#allocation26 + $0x148] sm:$0xff]
        %v5324 = vld [vmem:[#allocation26 + $0x150] sm:$0xff]
        %v5325 = vld [vmem:[#allocation26 + $0x158] sm:$0xff]
        %v5326 = vld [vmem:[#allocation26 + $0x160] sm:$0xff]
        %v5327 = vld [vmem:[#allocation26 + $0x168] sm:$0xff]
        %v5328 = vld [vmem:[#allocation26 + $0x170] sm:$0xff]
        %v5329 = vld [vmem:[#allocation26 + $0x178] sm:$0xff]
        %v5330 = vld [vmem:[#allocation26 + $0x180] sm:$0xff]
        %v5331 = vld [vmem:[#allocation26 + $0x188] sm:$0xff]
        %v5332 = vld [vmem:[#allocation26 + $0x190] sm:$0xff]
        %v5333 = vld [vmem:[#allocation26 + $0x198] sm:$0xff]
        %v5334 = vld [vmem:[#allocation26 + $0x1a0] sm:$0xff]
        %v5335 = vld [vmem:[#allocation26 + $0x1a8] sm:$0xff]
        %v5336 = vld [vmem:[#allocation26 + $0x1b0] sm:$0xff]
        %v5337 = vld [vmem:[#allocation26 + $0x1b8] sm:$0xff]
        %v5338 = vld [vmem:[#allocation26 + $0x1c0] sm:$0xff]
        %v5339 = vld [vmem:[#allocation26 + $0x1c8] sm:$0xff]
        %v5340 = vld [vmem:[#allocation26 + $0x1d0] sm:$0xff]
        %v5341 = vld [vmem:[#allocation26 + $0x1d8] sm:$0xff]
        %v5342 = vld [vmem:[#allocation26 + $0x1e0] sm:$0xff]
        %v5343 = vld [vmem:[#allocation26 + $0x1e8] sm:$0xff]
        %v5344 = vld [vmem:[#allocation26 + $0x1f0] sm:$0xff]
        %v5345 = vld [vmem:[#allocation26 + $0x1f8] sm:$0xff]
        %v5346 = vld [vmem:[#allocation26 + $0x200] sm:$0xff]
        %v5347 = vld [vmem:[#allocation26 + $0x208] sm:$0xff]
        %v5348 = vld [vmem:[#allocation26 + $0x210] sm:$0xff]
        %v5349 = vld [vmem:[#allocation26 + $0x218] sm:$0xff]
        %v5350 = vld [vmem:[#allocation26 + $0x220] sm:$0xff]
        %v5351 = vld [vmem:[#allocation26 + $0x228] sm:$0xff]
        %v5352 = vld [vmem:[#allocation26 + $0x230] sm:$0xff]
        %v5353 = vld [vmem:[#allocation26 + $0x238] sm:$0xff]
        %v5354 = vld [vmem:[#allocation26 + $0x240] sm:$0xff]
        %v5355 = vld [vmem:[#allocation26 + $0x248] sm:$0xff]
        %v5356 = vld [vmem:[#allocation26 + $0x250] sm:$0xff]
        %v5357 = vld [vmem:[#allocation26 + $0x258] sm:$0xff]
        %v5358 = vld [vmem:[#allocation26 + $0x260] sm:$0xff]
        %v5359 = vld [vmem:[#allocation26 + $0x268] sm:$0xff]
        %v5360 = vld [vmem:[#allocation26 + $0x270] sm:$0xff]
        %v5361 = vld [vmem:[#allocation26 + $0x278] sm:$0xff]
        %v5362 = vld [vmem:[#allocation26 + $0x280] sm:$0xff]
        %v5363 = vld [vmem:[#allocation26 + $0x288] sm:$0xff]
        %v5364 = vld [vmem:[#allocation26 + $0x290] sm:$0xff]
        %v5365 = vld [vmem:[#allocation26 + $0x298] sm:$0xff]
        %v5366 = vld [vmem:[#allocation26 + $0x2a0] sm:$0xff]
        %v5367 = vld [vmem:[#allocation26 + $0x2a8] sm:$0xff]
        %v5368 = vld [vmem:[#allocation26 + $0x2b0] sm:$0xff]
        %v5369 = vld [vmem:[#allocation26 + $0x2b8] sm:$0xff]
        %v5370 = vld [vmem:[#allocation26 + $0x2c0] sm:$0xff]
        %v5371 = vld [vmem:[#allocation26 + $0x2c8] sm:$0xff]
        %v5372 = vld [vmem:[#allocation26 + $0x2d0] sm:$0xff]
        %v5373 = vld [vmem:[#allocation26 + $0x2d8] sm:$0xff]
        %v5374 = vld [vmem:[#allocation26 + $0x2e0] sm:$0xff]
        %v5375 = vld [vmem:[#allocation26 + $0x2e8] sm:$0xff]
        %v5376 = vld [vmem:[#allocation26 + $0x2f0] sm:$0xff]
        %v5377 = vld [vmem:[#allocation26 + $0x2f8] sm:$0xff]
        %v5378 = vld [vmem:[#allocation26 + $0x300] sm:$0xff]
        %v5379 = vld [vmem:[#allocation26 + $0x308] sm:$0xff]
        %v5380 = vld [vmem:[#allocation26 + $0x310] sm:$0xff]
        %v5381 = vld [vmem:[#allocation26 + $0x318] sm:$0xff]
        %v5382 = vld [vmem:[#allocation26 + $0x320] sm:$0xff]
        %v5383 = vld [vmem:[#allocation26 + $0x328] sm:$0xff]
        %v5384 = vld [vmem:[#allocation26 + $0x330] sm:$0xff]
        %v5385 = vld [vmem:[#allocation26 + $0x338] sm:$0xff]
        %v5386 = vld [vmem:[#allocation26 + $0x340] sm:$0xff]
        %v5387 = vld [vmem:[#allocation26 + $0x348] sm:$0xff]
        %v5388 = vld [vmem:[#allocation26 + $0x350] sm:$0xff]
        %v5389 = vld [vmem:[#allocation26 + $0x358] sm:$0xff]
        %v5390 = vld [vmem:[#allocation26 + $0x360] sm:$0xff]
        %v5391 = vld [vmem:[#allocation26 + $0x368] sm:$0xff]
        %v5392 = vld [vmem:[#allocation26 + $0x370] sm:$0xff]
        %v5393 = vld [vmem:[#allocation26 + $0x378] sm:$0xff]
        %v5394 = vld [vmem:[#allocation26 + $0x380] sm:$0xff]
        %v5395 = vld [vmem:[#allocation26 + $0x388] sm:$0xff]
        %v5396 = vld [vmem:[#allocation26 + $0x390] sm:$0xff]
        %v5397 = vld [vmem:[#allocation26 + $0x398] sm:$0xff]
        %v5398 = vld [vmem:[#allocation26 + $0x3a0] sm:$0xff]
        %v5399 = vld [vmem:[#allocation26 + $0x3a8] sm:$0xff]
        %v5400 = vld [vmem:[#allocation26 + $0x3b0] sm:$0xff]
        %v5401 = vld [vmem:[#allocation26 + $0x3b8] sm:$0xff]
        %v5402 = vld [vmem:[#allocation26 + $0x3c0] sm:$0xff]
        %v5403 = vld [vmem:[#allocation26 + $0x3c8] sm:$0xff]
        %v5404 = vld [vmem:[#allocation26 + $0x3d0] sm:$0xff]
        %v5405 = vld [vmem:[#allocation26 + $0x3d8] sm:$0xff]
        %v5406 = vld [vmem:[#allocation26 + $0x3e0] sm:$0xff]
        %v5407 = vld [vmem:[#allocation26 + $0x3e8] sm:$0xff]
        %v5408 = vld [vmem:[#allocation26 + $0x3f0] sm:$0xff]
        %v5409 = vld [vmem:[#allocation26 + $0x3f8] sm:$0xff]
        %v5410 = vpack.c.bf16 %v5280, %v5278
        %v5411 = vpack.c.bf16 %v5281, %v5279
        %v5412 = vld [vmem:[%s20] sm:$0xff]
        %v5414 = vlaneseq
        %v5415 = vshrl.u32 %v5414, 7
        %v5416 = vsub.s32 0, %v5415
        %v5417 = vrot.slane %v5412, %v5416
        %v5418 = vlaneseq
        %v5419 = vshrl.u32 %v5418, 7
        %v5420 = vsub.s32 1, %v5419
        %v5421 = vrot.slane %v5412, %v5420
        %v5422 = vlaneseq
        %v5423 = vshrl.u32 %v5422, 7
        %v5424 = vsub.s32 2, %v5423
        %v5425 = vrot.slane %v5412, %v5424
        %v5426 = vlaneseq
        %v5427 = vshrl.u32 %v5426, 7
        %v5428 = vsub.s32 3, %v5427
        %v5429 = vrot.slane %v5412, %v5428
        %v5430 = vlaneseq
        %v5431 = vshrl.u32 %v5430, 7
        %v5432 = vsub.s32 4, %v5431
        %v5433 = vrot.slane %v5412, %v5432
        %v5434 = vlaneseq
        %v5435 = vshrl.u32 %v5434, 7
        %v5436 = vsub.s32 5, %v5435
        %v5437 = vrot.slane %v5412, %v5436
        %v5438 = vlaneseq
        %v5439 = vshrl.u32 %v5438, 7
        %v5440 = vsub.s32 6, %v5439
        %v5441 = vrot.slane %v5412, %v5440
        %v5442 = vlaneseq
        %v5443 = vshrl.u32 %v5442, 7
        %v5444 = vsub.s32 7, %v5443
        %v5445 = vrot.slane %v5412, %v5444
        %v5455 = vshrl.u32 %v5410, 16
        %v5457 = vshll.u32 %v5410, 16
        %v5459 = vrot.slane %v5457, 1
        %v5460 = vor.u32 %v5455, %v5459
        %v5462 = vshrl.u32 %v5411, 16
        %v5464 = vshll.u32 %v5411, 16
        %v5466 = vrot.slane %v5464, 1
        %v5467 = vor.u32 %v5462, %v5466
        %v5598 = vunpack.c.l.b16 %v5282
        %v5599 = vunpack.c.h.b16 %v5282
        %v5600 = vunpack.c.l.b16 %v5283
        %v5601 = vunpack.c.h.b16 %v5283
        %v5602 = vunpack.c.l.b16 %v5284
        %v5603 = vunpack.c.h.b16 %v5284
        %v5604 = vunpack.c.l.b16 %v5285
        %v5605 = vunpack.c.h.b16 %v5285
        %v5606 = vunpack.c.l.b16 %v5286
        %v5607 = vunpack.c.h.b16 %v5286
        %v5608 = vunpack.c.l.b16 %v5287
        %v5609 = vunpack.c.h.b16 %v5287
        %v5610 = vunpack.c.l.b16 %v5288
        %v5611 = vunpack.c.h.b16 %v5288
        %v5612 = vunpack.c.l.b16 %v5289
        %v5613 = vunpack.c.h.b16 %v5289
        %v5614 = vunpack.c.l.b16 %v5290
        %v5615 = vunpack.c.h.b16 %v5290
        %v5616 = vunpack.c.l.b16 %v5291
        %v5617 = vunpack.c.h.b16 %v5291
        %v5618 = vunpack.c.l.b16 %v5292
        %v5619 = vunpack.c.h.b16 %v5292
        %v5620 = vunpack.c.l.b16 %v5293
        %v5621 = vunpack.c.h.b16 %v5293
        %v5622 = vunpack.c.l.b16 %v5294
        %v5623 = vunpack.c.h.b16 %v5294
        %v5624 = vunpack.c.l.b16 %v5295
        %v5625 = vunpack.c.h.b16 %v5295
        %v5626 = vunpack.c.l.b16 %v5296
        %v5627 = vunpack.c.h.b16 %v5296
        %v5628 = vunpack.c.l.b16 %v5297
        %v5629 = vunpack.c.h.b16 %v5297
        %v5630 = vunpack.c.l.b16 %v5298
        %v5631 = vunpack.c.h.b16 %v5298
        %v5632 = vunpack.c.l.b16 %v5299
        %v5633 = vunpack.c.h.b16 %v5299
        %v5634 = vunpack.c.l.b16 %v5300
        %v5635 = vunpack.c.h.b16 %v5300
        %v5636 = vunpack.c.l.b16 %v5301
        %v5637 = vunpack.c.h.b16 %v5301
        %v5638 = vunpack.c.l.b16 %v5302
        %v5639 = vunpack.c.h.b16 %v5302
        %v5640 = vunpack.c.l.b16 %v5303
        %v5641 = vunpack.c.h.b16 %v5303
        %v5642 = vunpack.c.l.b16 %v5304
        %v5643 = vunpack.c.h.b16 %v5304
        %v5644 = vunpack.c.l.b16 %v5305
        %v5645 = vunpack.c.h.b16 %v5305
        %v5646 = vunpack.c.l.b16 %v5306
        %v5647 = vunpack.c.h.b16 %v5306
        %v5648 = vunpack.c.l.b16 %v5307
        %v5649 = vunpack.c.h.b16 %v5307
        %v5650 = vunpack.c.l.b16 %v5308
        %v5651 = vunpack.c.h.b16 %v5308
        %v5652 = vunpack.c.l.b16 %v5309
        %v5653 = vunpack.c.h.b16 %v5309
        %v5654 = vunpack.c.l.b16 %v5310
        %v5655 = vunpack.c.h.b16 %v5310
        %v5656 = vunpack.c.l.b16 %v5311
        %v5657 = vunpack.c.h.b16 %v5311
        %v5658 = vunpack.c.l.b16 %v5312
        %v5659 = vunpack.c.h.b16 %v5312
        %v5660 = vunpack.c.l.b16 %v5313
        %v5661 = vunpack.c.h.b16 %v5313
        %v5662 = vunpack.c.l.b16 %v5314
        %v5663 = vunpack.c.h.b16 %v5314
        %v5664 = vunpack.c.l.b16 %v5315
        %v5665 = vunpack.c.h.b16 %v5315
        %v5666 = vunpack.c.l.b16 %v5316
        %v5667 = vunpack.c.h.b16 %v5316
        %v5668 = vunpack.c.l.b16 %v5317
        %v5669 = vunpack.c.h.b16 %v5317
        %v5670 = vunpack.c.l.b16 %v5318
        %v5671 = vunpack.c.h.b16 %v5318
        %v5672 = vunpack.c.l.b16 %v5319
        %v5673 = vunpack.c.h.b16 %v5319
        %v5674 = vunpack.c.l.b16 %v5320
        %v5675 = vunpack.c.h.b16 %v5320
        %v5676 = vunpack.c.l.b16 %v5321
        %v5677 = vunpack.c.h.b16 %v5321
        %v5678 = vunpack.c.l.b16 %v5322
        %v5679 = vunpack.c.h.b16 %v5322
        %v5680 = vunpack.c.l.b16 %v5323
        %v5681 = vunpack.c.h.b16 %v5323
        %v5682 = vunpack.c.l.b16 %v5324
        %v5683 = vunpack.c.h.b16 %v5324
        %v5684 = vunpack.c.l.b16 %v5325
        %v5685 = vunpack.c.h.b16 %v5325
        %v5686 = vunpack.c.l.b16 %v5326
        %v5687 = vunpack.c.h.b16 %v5326
        %v5688 = vunpack.c.l.b16 %v5327
        %v5689 = vunpack.c.h.b16 %v5327
        %v5690 = vunpack.c.l.b16 %v5328
        %v5691 = vunpack.c.h.b16 %v5328
        %v5692 = vunpack.c.l.b16 %v5329
        %v5693 = vunpack.c.h.b16 %v5329
        %v5694 = vunpack.c.l.b16 %v5330
        %v5695 = vunpack.c.h.b16 %v5330
        %v5696 = vunpack.c.l.b16 %v5331
        %v5697 = vunpack.c.h.b16 %v5331
        %v5698 = vunpack.c.l.b16 %v5332
        %v5699 = vunpack.c.h.b16 %v5332
        %v5700 = vunpack.c.l.b16 %v5333
        %v5701 = vunpack.c.h.b16 %v5333
        %v5702 = vunpack.c.l.b16 %v5334
        %v5703 = vunpack.c.h.b16 %v5334
        %v5704 = vunpack.c.l.b16 %v5335
        %v5705 = vunpack.c.h.b16 %v5335
        %v5706 = vunpack.c.l.b16 %v5336
        %v5707 = vunpack.c.h.b16 %v5336
        %v5708 = vunpack.c.l.b16 %v5337
        %v5709 = vunpack.c.h.b16 %v5337
        %v5710 = vunpack.c.l.b16 %v5338
        %v5711 = vunpack.c.h.b16 %v5338
        %v5712 = vunpack.c.l.b16 %v5339
        %v5713 = vunpack.c.h.b16 %v5339
        %v5714 = vunpack.c.l.b16 %v5340
        %v5715 = vunpack.c.h.b16 %v5340
        %v5716 = vunpack.c.l.b16 %v5341
        %v5717 = vunpack.c.h.b16 %v5341
        %v5718 = vunpack.c.l.b16 %v5342
        %v5719 = vunpack.c.h.b16 %v5342
        %v5720 = vunpack.c.l.b16 %v5343
        %v5721 = vunpack.c.h.b16 %v5343
        %v5722 = vunpack.c.l.b16 %v5344
        %v5723 = vunpack.c.h.b16 %v5344
        %v5724 = vunpack.c.l.b16 %v5345
        %v5725 = vunpack.c.h.b16 %v5345
        %v5726 = vunpack.c.l.b16 %v5346
        %v5727 = vunpack.c.h.b16 %v5346
        %v5728 = vunpack.c.l.b16 %v5347
        %v5729 = vunpack.c.h.b16 %v5347
        %v5730 = vunpack.c.l.b16 %v5348
        %v5731 = vunpack.c.h.b16 %v5348
        %v5732 = vunpack.c.l.b16 %v5349
        %v5733 = vunpack.c.h.b16 %v5349
        %v5734 = vunpack.c.l.b16 %v5350
        %v5735 = vunpack.c.h.b16 %v5350
        %v5736 = vunpack.c.l.b16 %v5351
        %v5737 = vunpack.c.h.b16 %v5351
        %v5738 = vunpack.c.l.b16 %v5352
        %v5739 = vunpack.c.h.b16 %v5352
        %v5740 = vunpack.c.l.b16 %v5353
        %v5741 = vunpack.c.h.b16 %v5353
        %v5742 = vunpack.c.l.b16 %v5354
        %v5743 = vunpack.c.h.b16 %v5354
        %v5744 = vunpack.c.l.b16 %v5355
        %v5745 = vunpack.c.h.b16 %v5355
        %v5746 = vunpack.c.l.b16 %v5356
        %v5747 = vunpack.c.h.b16 %v5356
        %v5748 = vunpack.c.l.b16 %v5357
        %v5749 = vunpack.c.h.b16 %v5357
        %v5750 = vunpack.c.l.b16 %v5358
        %v5751 = vunpack.c.h.b16 %v5358
        %v5752 = vunpack.c.l.b16 %v5359
        %v5753 = vunpack.c.h.b16 %v5359
        %v5754 = vunpack.c.l.b16 %v5360
        %v5755 = vunpack.c.h.b16 %v5360
        %v5756 = vunpack.c.l.b16 %v5361
        %v5757 = vunpack.c.h.b16 %v5361
        %v5758 = vunpack.c.l.b16 %v5362
        %v5759 = vunpack.c.h.b16 %v5362
        %v5760 = vunpack.c.l.b16 %v5363
        %v5761 = vunpack.c.h.b16 %v5363
        %v5762 = vunpack.c.l.b16 %v5364
        %v5763 = vunpack.c.h.b16 %v5364
        %v5764 = vunpack.c.l.b16 %v5365
        %v5765 = vunpack.c.h.b16 %v5365
        %v5766 = vunpack.c.l.b16 %v5366
        %v5767 = vunpack.c.h.b16 %v5366
        %v5768 = vunpack.c.l.b16 %v5367
        %v5769 = vunpack.c.h.b16 %v5367
        %v5770 = vunpack.c.l.b16 %v5368
        %v5771 = vunpack.c.h.b16 %v5368
        %v5772 = vunpack.c.l.b16 %v5369
        %v5773 = vunpack.c.h.b16 %v5369
        %v5774 = vunpack.c.l.b16 %v5370
        %v5775 = vunpack.c.h.b16 %v5370
        %v5776 = vunpack.c.l.b16 %v5371
        %v5777 = vunpack.c.h.b16 %v5371
        %v5778 = vunpack.c.l.b16 %v5372
        %v5779 = vunpack.c.h.b16 %v5372
        %v5780 = vunpack.c.l.b16 %v5373
        %v5781 = vunpack.c.h.b16 %v5373
        %v5782 = vunpack.c.l.b16 %v5374
        %v5783 = vunpack.c.h.b16 %v5374
        %v5784 = vunpack.c.l.b16 %v5375
        %v5785 = vunpack.c.h.b16 %v5375
        %v5786 = vunpack.c.l.b16 %v5376
        %v5787 = vunpack.c.h.b16 %v5376
        %v5788 = vunpack.c.l.b16 %v5377
        %v5789 = vunpack.c.h.b16 %v5377
        %v5790 = vunpack.c.l.b16 %v5378
        %v5791 = vunpack.c.h.b16 %v5378
        %v5792 = vunpack.c.l.b16 %v5379
        %v5793 = vunpack.c.h.b16 %v5379
        %v5794 = vunpack.c.l.b16 %v5380
        %v5795 = vunpack.c.h.b16 %v5380
        %v5796 = vunpack.c.l.b16 %v5381
        %v5797 = vunpack.c.h.b16 %v5381
        %v5798 = vunpack.c.l.b16 %v5382
        %v5799 = vunpack.c.h.b16 %v5382
        %v5800 = vunpack.c.l.b16 %v5383
        %v5801 = vunpack.c.h.b16 %v5383
        %v5802 = vunpack.c.l.b16 %v5384
        %v5803 = vunpack.c.h.b16 %v5384
        %v5804 = vunpack.c.l.b16 %v5385
        %v5805 = vunpack.c.h.b16 %v5385
        %v5806 = vunpack.c.l.b16 %v5386
        %v5807 = vunpack.c.h.b16 %v5386
        %v5808 = vunpack.c.l.b16 %v5387
        %v5809 = vunpack.c.h.b16 %v5387
        %v5810 = vunpack.c.l.b16 %v5388
        %v5811 = vunpack.c.h.b16 %v5388
        %v5812 = vunpack.c.l.b16 %v5389
        %v5813 = vunpack.c.h.b16 %v5389
        %v5814 = vunpack.c.l.b16 %v5390
        %v5815 = vunpack.c.h.b16 %v5390
        %v5816 = vunpack.c.l.b16 %v5391
        %v5817 = vunpack.c.h.b16 %v5391
        %v5818 = vunpack.c.l.b16 %v5392
        %v5819 = vunpack.c.h.b16 %v5392
        %v5820 = vunpack.c.l.b16 %v5393
        %v5821 = vunpack.c.h.b16 %v5393
        %v5822 = vunpack.c.l.b16 %v5394
        %v5823 = vunpack.c.h.b16 %v5394
        %v5824 = vunpack.c.l.b16 %v5395
        %v5825 = vunpack.c.h.b16 %v5395
        %v5826 = vunpack.c.l.b16 %v5396
        %v5827 = vunpack.c.h.b16 %v5396
        %v5828 = vunpack.c.l.b16 %v5397
        %v5829 = vunpack.c.h.b16 %v5397
        %v5830 = vunpack.c.l.b16 %v5398
        %v5831 = vunpack.c.h.b16 %v5398
        %v5832 = vunpack.c.l.b16 %v5399
        %v5833 = vunpack.c.h.b16 %v5399
        %v5834 = vunpack.c.l.b16 %v5400
        %v5835 = vunpack.c.h.b16 %v5400
        %v5836 = vunpack.c.l.b16 %v5401
        %v5837 = vunpack.c.h.b16 %v5401
        %v5838 = vunpack.c.l.b16 %v5402
        %v5839 = vunpack.c.h.b16 %v5402
        %v5840 = vunpack.c.l.b16 %v5403
        %v5841 = vunpack.c.h.b16 %v5403
        %v5842 = vunpack.c.l.b16 %v5404
        %v5843 = vunpack.c.h.b16 %v5404
        %v5844 = vunpack.c.l.b16 %v5405
        %v5845 = vunpack.c.h.b16 %v5405
        %v5846 = vunpack.c.l.b16 %v5406
        %v5847 = vunpack.c.h.b16 %v5406
        %v5848 = vunpack.c.l.b16 %v5407
        %v5849 = vunpack.c.h.b16 %v5407
        %v5850 = vunpack.c.l.b16 %v5408
        %v5851 = vunpack.c.h.b16 %v5408
        %v5852 = vunpack.c.l.b16 %v5409
        %v5853 = vunpack.c.h.b16 %v5409
        %v5854 = vpack.c.b16 %v5606, %v5598
        %v5855 = vpack.c.b16 %v5607, %v5599
        %v5856 = vpack.c.b16 %v5608, %v5600
        %v5857 = vpack.c.b16 %v5609, %v5601
        %v5858 = vpack.c.b16 %v5610, %v5602
        %v5859 = vpack.c.b16 %v5611, %v5603
        %v5860 = vpack.c.b16 %v5612, %v5604
        %v5861 = vpack.c.b16 %v5613, %v5605
        %v5862 = vpack.c.b16 %v5622, %v5614
        %v5863 = vpack.c.b16 %v5623, %v5615
        %v5864 = vpack.c.b16 %v5624, %v5616
        %v5865 = vpack.c.b16 %v5625, %v5617
        %v5866 = vpack.c.b16 %v5626, %v5618
        %v5867 = vpack.c.b16 %v5627, %v5619
        %v5868 = vpack.c.b16 %v5628, %v5620
        %v5869 = vpack.c.b16 %v5629, %v5621
        %v5870 = vpack.c.b16 %v5638, %v5630
        %v5871 = vpack.c.b16 %v5639, %v5631
        %v5872 = vpack.c.b16 %v5640, %v5632
        %v5873 = vpack.c.b16 %v5641, %v5633
        %v5874 = vpack.c.b16 %v5642, %v5634
        %v5875 = vpack.c.b16 %v5643, %v5635
        %v5876 = vpack.c.b16 %v5644, %v5636
        %v5877 = vpack.c.b16 %v5645, %v5637
        %v5878 = vpack.c.b16 %v5654, %v5646
        %v5879 = vpack.c.b16 %v5655, %v5647
        %v5880 = vpack.c.b16 %v5656, %v5648
        %v5881 = vpack.c.b16 %v5657, %v5649
        %v5882 = vpack.c.b16 %v5658, %v5650
        %v5883 = vpack.c.b16 %v5659, %v5651
        %v5884 = vpack.c.b16 %v5660, %v5652
        %v5885 = vpack.c.b16 %v5661, %v5653
        %v5886 = vpack.c.b16 %v5670, %v5662
        %v5887 = vpack.c.b16 %v5671, %v5663
        %v5888 = vpack.c.b16 %v5672, %v5664
        %v5889 = vpack.c.b16 %v5673, %v5665
        %v5890 = vpack.c.b16 %v5674, %v5666
        %v5891 = vpack.c.b16 %v5675, %v5667
        %v5892 = vpack.c.b16 %v5676, %v5668
        %v5893 = vpack.c.b16 %v5677, %v5669
        %v5894 = vpack.c.b16 %v5686, %v5678
        %v5895 = vpack.c.b16 %v5687, %v5679
        %v5896 = vpack.c.b16 %v5688, %v5680
        %v5897 = vpack.c.b16 %v5689, %v5681
        %v5898 = vpack.c.b16 %v5690, %v5682
        %v5899 = vpack.c.b16 %v5691, %v5683
        %v5900 = vpack.c.b16 %v5692, %v5684
        %v5901 = vpack.c.b16 %v5693, %v5685
        %v5902 = vpack.c.b16 %v5702, %v5694
        %v5903 = vpack.c.b16 %v5703, %v5695
        %v5904 = vpack.c.b16 %v5704, %v5696
        %v5905 = vpack.c.b16 %v5705, %v5697
        %v5906 = vpack.c.b16 %v5706, %v5698
        %v5907 = vpack.c.b16 %v5707, %v5699
        %v5908 = vpack.c.b16 %v5708, %v5700
        %v5909 = vpack.c.b16 %v5709, %v5701
        %v5910 = vpack.c.b16 %v5718, %v5710
        %v5911 = vpack.c.b16 %v5719, %v5711
        %v5912 = vpack.c.b16 %v5720, %v5712
        %v5913 = vpack.c.b16 %v5721, %v5713
        %v5914 = vpack.c.b16 %v5722, %v5714
        %v5915 = vpack.c.b16 %v5723, %v5715
        %v5916 = vpack.c.b16 %v5724, %v5716
        %v5917 = vpack.c.b16 %v5725, %v5717
        %v5918 = vpack.c.b16 %v5734, %v5726
        %v5919 = vpack.c.b16 %v5735, %v5727
        %v5920 = vpack.c.b16 %v5736, %v5728
        %v5921 = vpack.c.b16 %v5737, %v5729
        %v5922 = vpack.c.b16 %v5738, %v5730
        %v5923 = vpack.c.b16 %v5739, %v5731
        %v5924 = vpack.c.b16 %v5740, %v5732
        %v5925 = vpack.c.b16 %v5741, %v5733
        %v5926 = vpack.c.b16 %v5750, %v5742
        %v5927 = vpack.c.b16 %v5751, %v5743
        %v5928 = vpack.c.b16 %v5752, %v5744
        %v5929 = vpack.c.b16 %v5753, %v5745
        %v5930 = vpack.c.b16 %v5754, %v5746
        %v5931 = vpack.c.b16 %v5755, %v5747
        %v5932 = vpack.c.b16 %v5756, %v5748
        %v5933 = vpack.c.b16 %v5757, %v5749
        %v5934 = vpack.c.b16 %v5766, %v5758
        %v5935 = vpack.c.b16 %v5767, %v5759
        %v5936 = vpack.c.b16 %v5768, %v5760
        %v5937 = vpack.c.b16 %v5769, %v5761
        %v5938 = vpack.c.b16 %v5770, %v5762
        %v5939 = vpack.c.b16 %v5771, %v5763
        %v5940 = vpack.c.b16 %v5772, %v5764
        %v5941 = vpack.c.b16 %v5773, %v5765
        %v5942 = vpack.c.b16 %v5782, %v5774
        %v5943 = vpack.c.b16 %v5783, %v5775
        %v5944 = vpack.c.b16 %v5784, %v5776
        %v5945 = vpack.c.b16 %v5785, %v5777
        %v5946 = vpack.c.b16 %v5786, %v5778
        %v5947 = vpack.c.b16 %v5787, %v5779
        %v5948 = vpack.c.b16 %v5788, %v5780
        %v5949 = vpack.c.b16 %v5789, %v5781
        %v5950 = vpack.c.b16 %v5798, %v5790
        %v5951 = vpack.c.b16 %v5799, %v5791
        %v5952 = vpack.c.b16 %v5800, %v5792
        %v5953 = vpack.c.b16 %v5801, %v5793
        %v5954 = vpack.c.b16 %v5802, %v5794
        %v5955 = vpack.c.b16 %v5803, %v5795
        %v5956 = vpack.c.b16 %v5804, %v5796
        %v5957 = vpack.c.b16 %v5805, %v5797
        %v5958 = vpack.c.b16 %v5814, %v5806
        %v5959 = vpack.c.b16 %v5815, %v5807
        %v5960 = vpack.c.b16 %v5816, %v5808
        %v5961 = vpack.c.b16 %v5817, %v5809
        %v5962 = vpack.c.b16 %v5818, %v5810
        %v5963 = vpack.c.b16 %v5819, %v5811
        %v5964 = vpack.c.b16 %v5820, %v5812
        %v5965 = vpack.c.b16 %v5821, %v5813
        %v5966 = vpack.c.b16 %v5830, %v5822
        %v5967 = vpack.c.b16 %v5831, %v5823
        %v5968 = vpack.c.b16 %v5832, %v5824
        %v5969 = vpack.c.b16 %v5833, %v5825
        %v5970 = vpack.c.b16 %v5834, %v5826
        %v5971 = vpack.c.b16 %v5835, %v5827
        %v5972 = vpack.c.b16 %v5836, %v5828
        %v5973 = vpack.c.b16 %v5837, %v5829
        %v5974 = vpack.c.b16 %v5846, %v5838
        %v5975 = vpack.c.b16 %v5847, %v5839
        %v5976 = vpack.c.b16 %v5848, %v5840
        %v5977 = vpack.c.b16 %v5849, %v5841
        %v5978 = vpack.c.b16 %v5850, %v5842
        %v5979 = vpack.c.b16 %v5851, %v5843
        %v5980 = vpack.c.b16 %v5852, %v5844
        %v5981 = vpack.c.b16 %v5853, %v5845
        %6110 = vmatprep.subr.bf16.mxu0 %v5855
        %6111 = vmatpush1.bf16.msra.mxu0 %v5854
        %6112 = vmatprep.subr.bf16.mxu0 %v5863
        %6113 = vmatpush1.bf16.msra.mxu0 %v5862
        %6114 = vmatprep.subr.bf16.mxu0 %v5871
        %6115 = vmatpush1.bf16.msra.mxu0 %v5870
        %6116 = vmatprep.subr.bf16.mxu0 %v5879
        %6117 = vmatpush1.bf16.msra.mxu0 %v5878
        %6118 = vmatprep.subr.bf16.mxu0 %v5887
        %6119 = vmatpush1.bf16.msra.mxu0 %v5886
        %6120 = vmatprep.subr.bf16.mxu0 %v5895
        %6121 = vmatpush1.bf16.msra.mxu0 %v5894
        %6122 = vmatprep.subr.bf16.mxu0 %v5903
        %6123 = vmatpush1.bf16.msra.mxu0 %v5902
        %6124 = vmatprep.subr.bf16.mxu0 %v5911
        %6125 = vmatpush1.bf16.msra.mxu0 %v5910
        %6126 = vmatprep.subr.bf16.mxu0 %v5919
        %6127 = vmatpush1.bf16.msra.mxu0 %v5918
        %6128 = vmatprep.subr.bf16.mxu0 %v5927
        %6129 = vmatpush1.bf16.msra.mxu0 %v5926
        %6130 = vmatprep.subr.bf16.mxu0 %v5935
        %6131 = vmatpush1.bf16.msra.mxu0 %v5934
        %6132 = vmatprep.subr.bf16.mxu0 %v5943
        %6133 = vmatpush1.bf16.msra.mxu0 %v5942
        %6134 = vmatprep.subr.bf16.mxu0 %v5951
        %6135 = vmatpush1.bf16.msra.mxu0 %v5950
        %6136 = vmatprep.subr.bf16.mxu0 %v5959
        %6137 = vmatpush1.bf16.msra.mxu0 %v5958
        %6138 = vmatprep.subr.bf16.mxu0 %v5967
        %6139 = vmatpush1.bf16.msra.mxu0 %v5966
        %6140 = vmatprep.subr.bf16.mxu0 %v5975
        %6141 = vmatpush1.bf16.msra.mxu0 %v5974
        %6142 = vmatprep.mubr.bf16.mxu0 %v5467
        %6143 = vmatmul.mubr.bf16.gmra.mrb[0].mxu0 %v5460
        %v6144 = vpop.f32.mrb[0].mxu0
        %v6145 = vadd.f32 %v5417, %v6144
        %v6146 = vpop.f32.mrb[0].mxu0
        %v6147 = vadd.f32 %v5421, %v6146
        %v6148 = vpop.f32.mrb[0].mxu0
        %v6149 = vpop.f32.mrb[0].mxu0
        %6150 = vdwg.mxu0
        %6151 = vmatprep.subr.bf16.mxu0 %v5857
        %6152 = vmatpush1.bf16.msra.mxu0 %v5856
        %6153 = vmatprep.subr.bf16.mxu0 %v5865
        %6154 = vmatpush1.bf16.msra.mxu0 %v5864
        %6155 = vmatprep.subr.bf16.mxu0 %v5873
        %6156 = vmatpush1.bf16.msra.mxu0 %v5872
        %6157 = vmatprep.subr.bf16.mxu0 %v5881
        %6158 = vmatpush1.bf16.msra.mxu0 %v5880
        %6159 = vmatprep.subr.bf16.mxu0 %v5889
        %6160 = vmatpush1.bf16.msra.mxu0 %v5888
        %6161 = vmatprep.subr.bf16.mxu0 %v5897
        %6162 = vmatpush1.bf16.msra.mxu0 %v5896
        %6163 = vmatprep.subr.bf16.mxu0 %v5905
        %6164 = vmatpush1.bf16.msra.mxu0 %v5904
        %6165 = vmatprep.subr.bf16.mxu0 %v5913
        %6166 = vmatpush1.bf16.msra.mxu0 %v5912
        %6167 = vmatprep.subr.bf16.mxu0 %v5921
        %6168 = vmatpush1.bf16.msra.mxu0 %v5920
        %6169 = vmatprep.subr.bf16.mxu0 %v5929
        %6170 = vmatpush1.bf16.msra.mxu0 %v5928
        %6171 = vmatprep.subr.bf16.mxu0 %v5937
        %6172 = vmatpush1.bf16.msra.mxu0 %v5936
        %6173 = vmatprep.subr.bf16.mxu0 %v5945
        %6174 = vmatpush1.bf16.msra.mxu0 %v5944
        %6175 = vmatprep.subr.bf16.mxu0 %v5953
        %6176 = vmatpush1.bf16.msra.mxu0 %v5952
        %6177 = vmatprep.subr.bf16.mxu0 %v5961
        %6178 = vmatpush1.bf16.msra.mxu0 %v5960
        %6179 = vmatprep.subr.bf16.mxu0 %v5969
        %6180 = vmatpush1.bf16.msra.mxu0 %v5968
        %6181 = vmatprep.subr.bf16.mxu0 %v5977
        %6182 = vmatpush1.bf16.msra.mxu0 %v5976
        %6183 = vmatprep.mubr.bf16.mxu0 %v5467
        %6184 = vmatmul.mubr.bf16.gmra.mrb[0].mxu0 %v5460
        %v6185 = vpop.f32.mrb[0].mxu0
        %v6186 = vadd.f32 %v5425, %v6185
        %v6187 = vpop.f32.mrb[0].mxu0
        %v6188 = vadd.f32 %v5429, %v6187
        %v6189 = vpop.f32.mrb[0].mxu0
        %v6190 = vpop.f32.mrb[0].mxu0
        %6191 = vdwg.mxu0
        %6192 = vmatprep.subr.bf16.mxu0 %v5859
        %6193 = vmatpush1.bf16.msra.mxu0 %v5858
        %6194 = vmatprep.subr.bf16.mxu0 %v5867
        %6195 = vmatpush1.bf16.msra.mxu0 %v5866
        %6196 = vmatprep.subr.bf16.mxu0 %v5875
        %6197 = vmatpush1.bf16.msra.mxu0 %v5874
        %6198 = vmatprep.subr.bf16.mxu0 %v5883
        %6199 = vmatpush1.bf16.msra.mxu0 %v5882
        %6200 = vmatprep.subr.bf16.mxu0 %v5891
        %6201 = vmatpush1.bf16.msra.mxu0 %v5890
        %6202 = vmatprep.subr.bf16.mxu0 %v5899
        %6203 = vmatpush1.bf16.msra.mxu0 %v5898
        %6204 = vmatprep.subr.bf16.mxu0 %v5907
        %6205 = vmatpush1.bf16.msra.mxu0 %v5906
        %6206 = vmatprep.subr.bf16.mxu0 %v5915
        %6207 = vmatpush1.bf16.msra.mxu0 %v5914
        %6208 = vmatprep.subr.bf16.mxu0 %v5923
        %6209 = vmatpush1.bf16.msra.mxu0 %v5922
        %6210 = vmatprep.subr.bf16.mxu0 %v5931
        %6211 = vmatpush1.bf16.msra.mxu0 %v5930
        %6212 = vmatprep.subr.bf16.mxu0 %v5939
        %6213 = vmatpush1.bf16.msra.mxu0 %v5938
        %6214 = vmatprep.subr.bf16.mxu0 %v5947
        %6215 = vmatpush1.bf16.msra.mxu0 %v5946
        %6216 = vmatprep.subr.bf16.mxu0 %v5955
        %6217 = vmatpush1.bf16.msra.mxu0 %v5954
        %6218 = vmatprep.subr.bf16.mxu0 %v5963
        %6219 = vmatpush1.bf16.msra.mxu0 %v5962
        %6220 = vmatprep.subr.bf16.mxu0 %v5971
        %6221 = vmatpush1.bf16.msra.mxu0 %v5970
        %6222 = vmatprep.subr.bf16.mxu0 %v5979
        %6223 = vmatpush1.bf16.msra.mxu0 %v5978
        %6224 = vmatprep.mubr.bf16.mxu0 %v5467
        %6225 = vmatmul.mubr.bf16.gmra.mrb[0].mxu0 %v5460
        %v6226 = vpop.f32.mrb[0].mxu0
        %v6227 = vadd.f32 %v5433, %v6226
        %v6228 = vpop.f32.mrb[0].mxu0
        %v6229 = vadd.f32 %v5437, %v6228
        %v6230 = vpop.f32.mrb[0].mxu0
        %v6231 = vpop.f32.mrb[0].mxu0
        %6232 = vdwg.mxu0
        %6233 = vmatprep.subr.bf16.mxu0 %v5861
        %6234 = vmatpush1.bf16.msra.mxu0 %v5860
        %6235 = vmatprep.subr.bf16.mxu0 %v5869
        %6236 = vmatpush1.bf16.msra.mxu0 %v5868
        %6237 = vmatprep.subr.bf16.mxu0 %v5877
        %6238 = vmatpush1.bf16.msra.mxu0 %v5876
        %6239 = vmatprep.subr.bf16.mxu0 %v5885
        %6240 = vmatpush1.bf16.msra.mxu0 %v5884
        %6241 = vmatprep.subr.bf16.mxu0 %v5893
        %6242 = vmatpush1.bf16.msra.mxu0 %v5892
        %6243 = vmatprep.subr.bf16.mxu0 %v5901
        %6244 = vmatpush1.bf16.msra.mxu0 %v5900
        %6245 = vmatprep.subr.bf16.mxu0 %v5909
        %6246 = vmatpush1.bf16.msra.mxu0 %v5908
        %6247 = vmatprep.subr.bf16.mxu0 %v5917
        %6248 = vmatpush1.bf16.msra.mxu0 %v5916
        %6249 = vmatprep.subr.bf16.mxu0 %v5925
        %6250 = vmatpush1.bf16.msra.mxu0 %v5924
        %6251 = vmatprep.subr.bf16.mxu0 %v5933
        %6252 = vmatpush1.bf16.msra.mxu0 %v5932
        %6253 = vmatprep.subr.bf16.mxu0 %v5941
        %6254 = vmatpush1.bf16.msra.mxu0 %v5940
        %6255 = vmatprep.subr.bf16.mxu0 %v5949
        %6256 = vmatpush1.bf16.msra.mxu0 %v5948
        %6257 = vmatprep.subr.bf16.mxu0 %v5957
        %6258 = vmatpush1.bf16.msra.mxu0 %v5956
        %6259 = vmatprep.subr.bf16.mxu0 %v5965
        %6260 = vmatpush1.bf16.msra.mxu0 %v5964
        %6261 = vmatprep.subr.bf16.mxu0 %v5973
        %6262 = vmatpush1.bf16.msra.mxu0 %v5972
        %6263 = vmatprep.subr.bf16.mxu0 %v5981
        %6264 = vmatpush1.bf16.msra.mxu0 %v5980
        %6265 = vmatprep.mubr.bf16.mxu0 %v5467
        %6266 = vmatmul.mubr.bf16.gmra.mrb[0].mxu0 %v5460
        %v6267 = vpop.f32.mrb[0].mxu0
        %v6268 = vadd.f32 %v5441, %v6267
        %v6269 = vpop.f32.mrb[0].mxu0
        %v6270 = vadd.f32 %v5445, %v6269
        %v6271 = vpop.f32.mrb[0].mxu0
        %v6272 = vpop.f32.mrb[0].mxu0
        %6273 = vdwg.mxu0
        %6274 = vst [vmem:[%s911] sm:$0xff] %v6145
        %6275 = vst [vmem:[%s911 + $0x8] sm:$0xff] %v6147
        %6276 = vst [vmem:[%s911 + $0x10] sm:$0xff] %v6186
        %6277 = vst [vmem:[%s911 + $0x18] sm:$0xff] %v6188
        %6278 = vst [vmem:[%s911 + $0x20] sm:$0xff] %v6227
        %6279 = vst [vmem:[%s911 + $0x28] sm:$0xff] %v6229
        %6280 = vst [vmem:[%s911 + $0x30] sm:$0xff] %v6268
        %6281 = vst [vmem:[%s911 + $0x38] sm:$0xff] %v6270
        %v6282 = vld [vmem:[#allocation25] sm:$0xf]
        %v6283 = vld [vmem:[#allocation25 + $0x4] sm:$0xf]
        %v6284 = vld [vmem:[#allocation25 + $0x8] sm:$0xf]
        %v6285 = vld [vmem:[#allocation25 + $0xc] sm:$0xf]
        %v6286 = vld [vmem:[#allocation25 + $0x10] sm:$0xf]
        %v6287 = vld [vmem:[#allocation25 + $0x14] sm:$0xf]
        %v6288 = vld [vmem:[#allocation25 + $0x18] sm:$0xf]
        %v6289 = vld [vmem:[#allocation25 + $0x1c] sm:$0xf]
        %v6290 = vld [vmem:[#allocation25 + $0x20] sm:$0xf]
        %v6291 = vld [vmem:[#allocation25 + $0x24] sm:$0xf]
        %v6292 = vld [vmem:[#allocation25 + $0x28] sm:$0xf]
        %v6293 = vld [vmem:[#allocation25 + $0x2c] sm:$0xf]
        %v6294 = vld [vmem:[#allocation25 + $0x30] sm:$0xf]
        %v6295 = vld [vmem:[#allocation25 + $0x34] sm:$0xf]
        %v6296 = vld [vmem:[#allocation25 + $0x38] sm:$0xf]
        %v6297 = vld [vmem:[#allocation25 + $0x3c] sm:$0xf]
        %v6298 = vld [vmem:[#allocation25 + $0x40] sm:$0xf]
        %v6299 = vld [vmem:[#allocation25 + $0x44] sm:$0xf]
        %v6300 = vld [vmem:[#allocation25 + $0x48] sm:$0xf]
        %v6301 = vld [vmem:[#allocation25 + $0x4c] sm:$0xf]
        %v6302 = vld [vmem:[#allocation25 + $0x50] sm:$0xf]
        %v6303 = vld [vmem:[#allocation25 + $0x54] sm:$0xf]
        %v6304 = vld [vmem:[#allocation25 + $0x58] sm:$0xf]
        %v6305 = vld [vmem:[#allocation25 + $0x5c] sm:$0xf]
        %v6306 = vld [vmem:[#allocation25 + $0x60] sm:$0xf]
        %v6307 = vld [vmem:[#allocation25 + $0x64] sm:$0xf]
        %v6308 = vld [vmem:[#allocation25 + $0x68] sm:$0xf]
        %v6309 = vld [vmem:[#allocation25 + $0x6c] sm:$0xf]
        %v6310 = vld [vmem:[#allocation25 + $0x70] sm:$0xf]
        %v6311 = vld [vmem:[#allocation25 + $0x74] sm:$0xf]
        %v6312 = vld [vmem:[#allocation25 + $0x78] sm:$0xf]
        %v6313 = vld [vmem:[#allocation25 + $0x7c] sm:$0xf]
        %v6314 = vpack.c.bf16 %v5278, %v5278
        %v6315 = vpack.c.bf16 %v5279, %v5279
        %v6316 = vld [vmem:[%s18] sm:$0x1]
        %v6349 = vunpack.c.l.b16 %v6282
        %v6350 = vunpack.c.l.b16 %v6283
        %v6351 = vunpack.c.l.b16 %v6284
        %v6352 = vunpack.c.l.b16 %v6285
        %v6353 = vunpack.c.l.b16 %v6286
        %v6354 = vunpack.c.l.b16 %v6287
        %v6355 = vunpack.c.l.b16 %v6288
        %v6356 = vunpack.c.l.b16 %v6289
        %v6357 = vunpack.c.l.b16 %v6290
        %v6358 = vunpack.c.l.b16 %v6291
        %v6359 = vunpack.c.l.b16 %v6292
        %v6360 = vunpack.c.l.b16 %v6293
        %v6361 = vunpack.c.l.b16 %v6294
        %v6362 = vunpack.c.l.b16 %v6295
        %v6363 = vunpack.c.l.b16 %v6296
        %v6364 = vunpack.c.l.b16 %v6297
        %v6365 = vunpack.c.l.b16 %v6298
        %v6366 = vunpack.c.l.b16 %v6299
        %v6367 = vunpack.c.l.b16 %v6300
        %v6368 = vunpack.c.l.b16 %v6301
        %v6369 = vunpack.c.l.b16 %v6302
        %v6370 = vunpack.c.l.b16 %v6303
        %v6371 = vunpack.c.l.b16 %v6304
        %v6372 = vunpack.c.l.b16 %v6305
        %v6373 = vunpack.c.l.b16 %v6306
        %v6374 = vunpack.c.l.b16 %v6307
        %v6375 = vunpack.c.l.b16 %v6308
        %v6376 = vunpack.c.l.b16 %v6309
        %v6377 = vunpack.c.l.b16 %v6310
        %v6378 = vunpack.c.l.b16 %v6311
        %v6379 = vunpack.c.l.b16 %v6312
        %v6380 = vunpack.c.l.b16 %v6313
        %v6381 = vpack.c.b16 %v6350, %v6349
        %v6382 = vpack.c.b16 %v6352, %v6351
        %v6383 = vpack.c.b16 %v6354, %v6353
        %v6384 = vpack.c.b16 %v6356, %v6355
        %v6385 = vpack.c.b16 %v6358, %v6357
        %v6386 = vpack.c.b16 %v6360, %v6359
        %v6387 = vpack.c.b16 %v6362, %v6361
        %v6388 = vpack.c.b16 %v6364, %v6363
        %v6389 = vpack.c.b16 %v6366, %v6365
        %v6390 = vpack.c.b16 %v6368, %v6367
        %v6391 = vpack.c.b16 %v6370, %v6369
        %v6392 = vpack.c.b16 %v6372, %v6371
        %v6393 = vpack.c.b16 %v6374, %v6373
        %v6394 = vpack.c.b16 %v6376, %v6375
        %v6395 = vpack.c.b16 %v6378, %v6377
        %v6396 = vpack.c.b16 %v6380, %v6379
        %6413 = vmatprep.subr.bf16.mxu0 0
        %6414 = vmatpush1.bf16.msra.mxu0 %v6381
        %6415 = vmatprep.subr.bf16.mxu0 0
        %6416 = vmatpush1.bf16.msra.mxu0 %v6382
        %6417 = vmatprep.subr.bf16.mxu0 0
        %6418 = vmatpush1.bf16.msra.mxu0 %v6383
        %6419 = vmatprep.subr.bf16.mxu0 0
        %6420 = vmatpush1.bf16.msra.mxu0 %v6384
        %6421 = vmatprep.subr.bf16.mxu0 0
        %6422 = vmatpush1.bf16.msra.mxu0 %v6385
        %6423 = vmatprep.subr.bf16.mxu0 0
        %6424 = vmatpush1.bf16.msra.mxu0 %v6386
        %6425 = vmatprep.subr.bf16.mxu0 0
        %6426 = vmatpush1.bf16.msra.mxu0 %v6387
        %6427 = vmatprep.subr.bf16.mxu0 0
        %6428 = vmatpush1.bf16.msra.mxu0 %v6388
        %6429 = vmatprep.subr.bf16.mxu0 0
        %6430 = vmatpush1.bf16.msra.mxu0 %v6389
        %6431 = vmatprep.subr.bf16.mxu0 0
        %6432 = vmatpush1.bf16.msra.mxu0 %v6390
        %6433 = vmatprep.subr.bf16.mxu0 0
        %6434 = vmatpush1.bf16.msra.mxu0 %v6391
        %6435 = vmatprep.subr.bf16.mxu0 0
        %6436 = vmatpush1.bf16.msra.mxu0 %v6392
        %6437 = vmatprep.subr.bf16.mxu0 0
        %6438 = vmatpush1.bf16.msra.mxu0 %v6393
        %6439 = vmatprep.subr.bf16.mxu0 0
        %6440 = vmatpush1.bf16.msra.mxu0 %v6394
        %6441 = vmatprep.subr.bf16.mxu0 0
        %6442 = vmatpush1.bf16.msra.mxu0 %v6395
        %6443 = vmatprep.subr.bf16.mxu0 0
        %6444 = vmatpush1.bf16.msra.mxu0 %v6396
        %6445 = vmatprep.mubr.bf16.mxu0 %v6315
        %6446 = vmatmul.mubr.bf16.gmra.mrb[0].mxu0 %v6314
        %v6447 = vpop.f32.mrb[0].mxu0
        %v6448 = vadd.f32 %v6316, %v6447
        %v6449 = vpop.f32.mrb[0].mxu0
        %v6450 = vpop.f32.mrb[0].mxu0
        %v6451 = vpop.f32.mrb[0].mxu0
        %6452 = vdwg.mxu0
        %6453 = vst [vmem:[%s904] sm:$0x1] %v6448
        %s6454 = sand.u32 %s505, 1
        %s6455 = scalar_lea.sflag [#allocation4], %s6454
        %s6456 = sand.u32 %s505, 1
        %s6457 = scalar_lea.vmem [#allocation28], %s6456
        %s6458 = sand.u32 %s531, 1
        %s6459 = scalar_lea.sflag [#allocation30], %s6458
        %s6460 = sand.u32 %s531, 1
        %s6461 = smul.addr %s6460, 64
        %s6462 = scalar_lea.vmem [#allocation29], %s6461
        // Predicated region
        $region169: #{pose_raw2_bert7_forward.1} parent=103 // pred_check
          %p6463 = pneg %p515
        $region170: #{pose_raw2_bert7_forward.1} parent=103 // pred_check_branch
          %6465 = sbr.rel (%p6463) target = $region172
        $region171: #{pose_raw2_bert7_forward.1} parent=103 // pred_region
          %s6467 = ssub.s32 16, 16
          %6468 = vsyncadd %s6455, %s6467
          %s6469 = smul.addr %s51, 16
          %s6470 = scalar_lea.hbm %s21, %s6469
          %s6472 = sshll.u32 %s6457, 4
          %s6473 = int_to_ptr.vmem [resolvable:$true] %s6472
          %6475 = dma.vmem_to_hbm [thread:$0]  %s6473, 16, %s6470, %s6455
        $region172: #{pose_raw2_bert7_forward.1} parent=103 // pred_fallthru
          _
        // Predicated region
        $region173: #{pose_raw2_bert7_forward.1} parent=103 // pred_check
          %p6476 = pneg %p541
        $region174: #{pose_raw2_bert7_forward.1} parent=103 // pred_check_branch
          %6478 = sbr.rel (%p6476) target = $region176
        $region175: #{pose_raw2_bert7_forward.1} parent=103 // pred_region
          %s6480 = ssub.s32 1024, 1024
          %6481 = vsyncadd %s6459, %s6480
          %s6482 = smul.addr %s51, 8
          %s6483 = smul.addr %s6482, 128
          %s6484 = scalar_lea.hbm %s22, %s6483
          %s6486 = sshll.u32 %s6462, 4
          %s6487 = int_to_ptr.vmem [resolvable:$true] %s6486
          %6489 = dma.vmem_to_hbm [thread:$0]  %s6487, 1024, %s6484, %s6459
        $region176: #{pose_raw2_bert7_forward.1} parent=103 // pred_fallthru
          _
      $region104: #{pose_raw2_bert7_forward.1} parent=5 // pred_fallthru
        _
      %p6490 = scmp.le.s32.totalorder 2, %s46
      // Predicated region
      $region177: #{pose_raw2_bert7_forward.1} parent=5 // pred_check
        %p6491 = pneg %p6490
      $region178: #{pose_raw2_bert7_forward.1} parent=5 // pred_check_branch
        %6493 = sbr.rel (%p6491) target = $region180
      $region179: #{pose_raw2_bert7_forward.1} parent=5 // pred_region
        %s6494 = ssub.s32 %s46, 2
        // Predicated region
        $region181: #{pose_raw2_bert7_forward.1} parent=179 // pred_check
          %p6495 = pneg %p521
        $region182: #{pose_raw2_bert7_forward.1} parent=179 // pred_check_branch
          %6497 = sbr.rel (%p6495) target = $region184
        $region183: #{pose_raw2_bert7_forward.1} parent=179 // pred_region
          %s6498 = sand.u32 %s506, 1
          %s6499 = scalar_lea.sflag [#allocation4], %s6498
          %s6500 = sand.u32 %s506, 1
          %s6501 = scalar_lea.vmem [#allocation28], %s6500
          %6502 = dma.done %s6499, 16
        $region184: #{pose_raw2_bert7_forward.1} parent=179 // pred_fallthru
          _
        // Predicated region
        $region185: #{pose_raw2_bert7_forward.1} parent=179 // pred_check
          %p6503 = pneg %p547
        $region186: #{pose_raw2_bert7_forward.1} parent=179 // pred_check_branch
          %6505 = sbr.rel (%p6503) target = $region188
        $region187: #{pose_raw2_bert7_forward.1} parent=179 // pred_region
          %s6506 = sand.u32 %s532, 1
          %s6507 = scalar_lea.sflag [#allocation30], %s6506
          %s6508 = sand.u32 %s532, 1
          %s6509 = smul.addr %s6508, 64
          %s6510 = scalar_lea.vmem [#allocation29], %s6509
          %6511 = dma.done %s6507, 1024
        $region188: #{pose_raw2_bert7_forward.1} parent=179 // pred_fallthru
          _
      $region180: #{pose_raw2_bert7_forward.1} parent=5 // pred_fallthru
        _
    $region6: #{pose_raw2_bert7_forward.1} parent=1 // loop_footer
      %s50 = sadd.s32 1, %s46
    $region7: #{pose_raw2_bert7_forward.1} parent=1 // loop_footer_branch
      %45 = sbr.rel target = $region3
    $region8: #{pose_raw2_bert7_forward.1} parent=1 // loop_exit
      _
    %6512 = vsyncpa [#allocation3], 1
    %s6513 = scalar_lea.sflag [#allocation3], 1
    %6514 = vsyncpa %s6513, 1
    %6515 = vsyncpa [#allocation6], 1
    %6516 = vsyncpa [#allocation9], 1
    %6517 = vsyncpa [#allocation12], 1
    %6518 = vsyncpa [#allocation15], 1
    %6519 = vsyncpa [#allocation18], 1
    %6520 = vsyncpa [#allocation21], 1
    %6521 = vsyncpa [#allocation24], 1
    %6522 = vsyncpa [#allocation27], 1
    %6523 = vsyncpa [#allocation4], 1
    %s6524 = scalar_lea.sflag [#allocation4], 1
    %6525 = vsyncpa %s6524, 1
    %6526 = vsyncpa [#allocation30], 1
    %s6527 = scalar_lea.sflag [#allocation30], 1
    %6528 = vsyncpa %s6527, 1

</llo_original>
